<compile_context>
chip_gen: v7x
topology: tpu7x:2x2x1
jax: 0.10.0
libtpu: 0.0.40
codegen_flags: <defaults>
</compile_context>

<pallas_src>
import jax
import jax.numpy as jnp
from jax.experimental import pallas as pl
from jax.experimental.pallas import tpu as pltpu


def _hist_kernel(x_ref, centers_ref, widths_ref, p_ref, o_ref):
    # x_ref:       (1, C_TILE, H*W)            spatial flattened onto lanes
    # centers_ref: (num_bins, C_TILE, 1)
    # widths_ref:  (num_bins, C_TILE, 1)
    # p_ref:       (H*W, HO*WO)                pooling matrix, entries {0, 1/K^2}
    # o_ref:       (1, num_bins, C_TILE, HO*WO)
    num_bins = centers_ref.shape[0]
    x = x_ref[0]                                   # (C_TILE, HW)
    p = p_ref[...]                                 # (HW, HO*WO)

    # RBF bin memberships, one lane-dense (C_TILE, HW) slab per bin (static
    # unroll over the small num_bins).  centers/widths broadcast implicitly
    # along the lane axis from (C_TILE, 1).
    ys = []
    for b in range(num_bins):
        z = (x + centers_ref[b]) * widths_ref[b]
        ys.append(jnp.exp(-(z * z)))

    # normalize_bins: one reciprocal per pixel per input channel, then num_bins
    # multiplies (cheaper than num_bins full-slab divides on the VALU).
    # approx=True (EUP vrcp) is left off to stay safely inside the 1e-4 check.
    denom = ys[0]
    for b in range(1, num_bins):
        denom = denom + ys[b]
    inv = pl.reciprocal(denom + 1e-5, approx=False)

    # normalize_count (AvgPool2d, padding=0): (C_TILE, HW) @ (HW, HO*WO) on the
    # MXU.  Precision.HIGHEST keeps f32-equivalent accuracy (DEFAULT single-pass
    # bf16 misses the 1e-4 tolerance); the kernel is VPU/EUP-bound anyway.
    for b in range(num_bins):
        pooled = jnp.dot(ys[b] * inv, p,
                         preferred_element_type=jnp.float32,
                         precision=jax.lax.Precision.HIGHEST)
        o_ref[0, b] = pooled.astype(o_ref.dtype)


def _round_up(v, m):
    return ((v + m - 1) // m) * m


def _pick_channel_tile(C, num_bins, HW, HOWO, N, budget_bytes):
    """Largest legal channel tile whose estimated VMEM working set fits budget.

    Legal tiles are divisors of C that are multiples of 8 (sublane rule for the
    (C_TILE, H*W) blocks), plus C itself (full-extent blocks are always legal).
    """
    candidates = sorted({d for d in range(8, C + 1, 8) if C % d == 0} | {C})
    HWp = _round_up(HW, 128)
    HOWOp = _round_up(HOWO, 128)

    def est_bytes(ct):
        ct8 = _round_up(ct, 8)
        elems = 0
        elems += 2 * ct8 * HWp                       # x block (double-buffered)
        elems += (num_bins + 3) * ct8 * HWp          # live y_b / denom / temps
        elems += 2 * 2 * num_bins * ct8 * 128        # centers + widths blocks
        elems += 2 * num_bins * ct8 * HOWOp          # output block (double-buffered)
        elems += 2 * HWp * HOWOp                     # pooling matrix
        return 4 * elems

    fitting = [d for d in candidates if est_bytes(d) <= budget_bytes]
    ct = max(fitting) if fitting else min(candidates)
    # v7x has 2 TensorCores: prefer >= 4 parallel grid steps when a smaller
    # legal tile exists (also improves DMA/compute pipelining on v5e/v6e).
    while N * (C // ct) < 4:
        smaller = [d for d in candidates if d < ct]
        if not smaller:
            break
        ct = max(smaller)
    return ct


def histogram_layer(x, centers, widths, *, num_bins, kernel_size, stride):
    N, C, H, W = x.shape
    CB = C * num_bins
    assert centers.shape == (CB,) and widths.shape == (CB,)
    K = kernel_size
    HO = (H - K) // stride + 1
    WO = (W - K) // stride + 1
    HW, HOWO = H * W, HO * WO

    # Pooling matrix P[h*W + w, ho*WO + wo] = 1/K^2 inside the (ho, wo) window
    # (VALID pooling, padding=0 -- module defaults).
    h = jnp.arange(H)
    ho = jnp.arange(HO)
    mh = ((h[:, None] >= ho[None, :] * stride)
          & (h[:, None] < ho[None, :] * stride + K)).astype(jnp.float32)   # (H, HO)
    w = jnp.arange(W)
    wo = jnp.arange(WO)
    mw = ((w[:, None] >= wo[None, :] * stride)
          & (w[:, None] < wo[None, :] * stride + K)).astype(jnp.float32)   # (W, WO)
    P = (mh[:, None, :, None] * mw[None, :, None, :]).reshape(HW, HOWO) / float(K * K)

    # Lane-dense input; bin axis leading on the parameters so per-bin (C_TILE, 1)
    # slices broadcast along lanes in-kernel.  PyTorch channel order is
    # c*num_bins + b, hence the reshape(C, num_bins).T below.
    x2 = x.reshape(N, C, HW).astype(jnp.float32)
    c_arr = centers.astype(jnp.float32).reshape(C, num_bins).T.reshape(num_bins, C, 1)
    w_arr = widths.astype(jnp.float32).reshape(C, num_bins).T.reshape(num_bins, C, 1)

    # Size the channel tile per-generation from the actual VMEM capacity
    # (v7x: 64 MiB, v5e/v6e: 128 MiB) and raise the scoped VMEM limit explicitly.
    try:
        vmem_cap = int(pltpu.get_tpu_info().vmem_capacity_bytes)
    except Exception:  # query unavailable: assume the smallest (v7x, 64 MiB)
        vmem_cap = 64 * 1024 * 1024
    budget = vmem_cap // 4
    vmem_limit = (vmem_cap * 3) // 4
    C_TILE = _pick_channel_tile(C, num_bins, HW, HOWO, N, budget)
    n_ctiles = C // C_TILE

    out = pl.pallas_call(
        _hist_kernel,
        out_shape=jax.ShapeDtypeStruct((N, num_bins, C, HOWO), jnp.float32),
        grid_spec=pltpu.PrefetchScalarGridSpec(
            num_scalar_prefetch=0,
            grid=(N, n_ctiles),
            in_specs=[
                pl.BlockSpec((1, C_TILE, HW), lambda n, c: (n, c, 0)),
                pl.BlockSpec((num_bins, C_TILE, 1), lambda n, c: (0, c, 0)),
                pl.BlockSpec((num_bins, C_TILE, 1), lambda n, c: (0, c, 0)),
                pl.BlockSpec((HW, HOWO), lambda n, c: (0, 0)),
            ],
            out_specs=pl.BlockSpec((1, num_bins, C_TILE, HOWO),
                                   lambda n, c: (n, 0, c, 0)),
        ),
        compiler_params=pltpu.CompilerParams(
            dimension_semantics=("parallel", "parallel"),
            vmem_limit_bytes=int(vmem_limit),
        ),
    )(x2, c_arr, w_arr, P)

    # (N, num_bins, C, HO*WO) -> (N, C*num_bins, HO, WO)  (PyTorch channel order)
    return out.transpose(0, 2, 1, 3).reshape(N, CB, HO, WO)


def histogram_layer_ref(x, centers, widths, *, num_bins, kernel_size, stride):
    """Pure-JAX reference matching the PyTorch forward (module defaults)."""
    N, C, H, W = x.shape
    xb = jnp.repeat(x, num_bins, axis=1)                                    # grouped conv, w=1
    z = (xb + centers[None, :, None, None]) * widths[None, :, None, None]   # depthwise conv
    y = jnp.exp(-z ** 2)
    ys = y.reshape(N, C, num_bins, H, W).sum(2) + 1e-5
    y = y / jnp.repeat(ys, num_bins, axis=1)
    K = kernel_size
    s = jax.lax.reduce_window(y, 0.0, jax.lax.add,
                              (1, 1, K, K), (1, 1, stride, stride), 'VALID')
    return s / (K * K)


if __name__ == "__main__":
    key = jax.random.PRNGKey(0)
    k1, k2, k3 = jax.random.split(key, 3)

    N, C, H, W = 2, 4, 16, 16
    num_bins = 4
    kernel_size = 4
    stride = 4
    CB = C * num_bins

    x = jax.random.normal(k1, (N, C, H, W), dtype=jnp.float32)
    # deterministic synthetic parameters:
    #   centers <-> bin_centers_conv.bias          (shape: num_bins*in_channels)
    #   widths  <-> bin_widths_conv.weight[:,0,0,0] (shape: num_bins*in_channels)
    centers = jax.random.uniform(k2, (CB,), minval=-1.0, maxval=1.0, dtype=jnp.float32)
    widths = jax.random.uniform(k3, (CB,), minval=0.2, maxval=1.0, dtype=jnp.float32)

    out = histogram_layer(x, centers, widths, num_bins=num_bins,
                          kernel_size=kernel_size, stride=stride)
    out = jax.block_until_ready(out)

    ref = histogram_layer_ref(x, centers, widths, num_bins=num_bins,
                              kernel_size=kernel_size, stride=stride)
    HO = (H - kernel_size) // stride + 1
    WO = (W - kernel_size) // stride + 1
    assert out.shape == (N, CB, HO, WO), out.shape
    assert jnp.allclose(out, ref, atol=1e-4, rtol=1e-4), float(jnp.max(jnp.abs(out - ref)))
    print("KERNEL_OK")
</pallas_src>

<mosaic_0001>
module attributes {stable_mosaic.version = 11 : i64} {
  func.func @_hist_kernel(%arg0: i32, %arg1: i32, %arg2: memref<1x4x256xf32, #tpu.memory_space<vmem>>, %arg3: memref<4x4x1xf32, #tpu.memory_space<vmem>>, %arg4: memref<4x4x1xf32, #tpu.memory_space<vmem>>, %arg5: memref<256x16xf32, #tpu.memory_space<vmem>>, %arg6: memref<1x4x4x16xf32, #tpu.memory_space<vmem>>) attributes {dimension_semantics = [#tpu.dimension_semantics<parallel>, #tpu.dimension_semantics<parallel>], iteration_bounds = array<i64: 2, 1>, scalar_prefetch = 0 : i64, scratch_operands = 0 : i64, tpu.core_type = #tpu.core_type<tc>, window_params = [{transform_indices = @transform_0, window_bounds = array<i64: 1, 4, 256>}, {transform_indices = @transform_1, window_bounds = array<i64: 4, 4, 1>}, {transform_indices = @transform_2, window_bounds = array<i64: 4, 4, 1>}, {pipeline_mode = #tpu.pipeline_mode<synchronous>, transform_indices = @transform_3, window_bounds = array<i64: 256, 16>}, {transform_indices = @transform_4, window_bounds = array<i64: 1, 4, 4, 16>}]} {
    %c0 = arith.constant 0 : index
    %c0_0 = arith.constant 0 : index
    %c0_1 = arith.constant 0 : index
    %0 = vector.load %arg2[%c0, %c0_0, %c0_1] : memref<1x4x256xf32, #tpu.memory_space<vmem>>, vector<1x4x256xf32>
    %1 = vector.shape_cast %0 : vector<1x4x256xf32> to vector<4x256xf32>
    %c0_2 = arith.constant 0 : index
    %c0_3 = arith.constant 0 : index
    %2 = vector.load %arg5[%c0_2, %c0_3] : memref<256x16xf32, #tpu.memory_space<vmem>>, vector<256x16xf32>
    %c0_4 = arith.constant 0 : index
    %c0_5 = arith.constant 0 : index
    %c0_6 = arith.constant 0 : index
    %3 = vector.load %arg3[%c0_4, %c0_5, %c0_6] : memref<4x4x1xf32, #tpu.memory_space<vmem>>, vector<1x4x1xf32>
    %4 = vector.shape_cast %3 : vector<1x4x1xf32> to vector<4x1xf32>
    %5 = vector.broadcast %4 : vector<4x1xf32> to vector<4x256xf32>
    %6 = arith.addf %1, %5 : vector<4x256xf32>
    %c0_7 = arith.constant 0 : index
    %c0_8 = arith.constant 0 : index
    %c0_9 = arith.constant 0 : index
    %7 = vector.load %arg4[%c0_7, %c0_8, %c0_9] : memref<4x4x1xf32, #tpu.memory_space<vmem>>, vector<1x4x1xf32>
    %8 = vector.shape_cast %7 : vector<1x4x1xf32> to vector<4x1xf32>
    %9 = vector.broadcast %8 : vector<4x1xf32> to vector<4x256xf32>
    %10 = arith.mulf %6, %9 : vector<4x256xf32>
    %11 = arith.mulf %10, %10 : vector<4x256xf32>
    %cst = arith.constant 0.000000e+00 : f32
    %12 = vector.broadcast %cst : f32 to vector<4x256xf32>
    %13 = arith.subf %12, %11 : vector<4x256xf32>
    %14 = math.exp %13 : vector<4x256xf32>
    %c1 = arith.constant 1 : index
    %c0_10 = arith.constant 0 : index
    %c0_11 = arith.constant 0 : index
    %15 = vector.load %arg3[%c1, %c0_10, %c0_11] : memref<4x4x1xf32, #tpu.memory_space<vmem>>, vector<1x4x1xf32>
    %16 = vector.shape_cast %15 : vector<1x4x1xf32> to vector<4x1xf32>
    %17 = vector.broadcast %16 : vector<4x1xf32> to vector<4x256xf32>
    %18 = arith.addf %1, %17 : vector<4x256xf32>
    %c1_12 = arith.constant 1 : index
    %c0_13 = arith.constant 0 : index
    %c0_14 = arith.constant 0 : index
    %19 = vector.load %arg4[%c1_12, %c0_13, %c0_14] : memref<4x4x1xf32, #tpu.memory_space<vmem>>, vector<1x4x1xf32>
    %20 = vector.shape_cast %19 : vector<1x4x1xf32> to vector<4x1xf32>
    %21 = vector.broadcast %20 : vector<4x1xf32> to vector<4x256xf32>
    %22 = arith.mulf %18, %21 : vector<4x256xf32>
    %23 = arith.mulf %22, %22 : vector<4x256xf32>
    %cst_15 = arith.constant 0.000000e+00 : f32
    %24 = vector.broadcast %cst_15 : f32 to vector<4x256xf32>
    %25 = arith.subf %24, %23 : vector<4x256xf32>
    %26 = math.exp %25 : vector<4x256xf32>
    %c2 = arith.constant 2 : index
    %c0_16 = arith.constant 0 : index
    %c0_17 = arith.constant 0 : index
    %27 = vector.load %arg3[%c2, %c0_16, %c0_17] : memref<4x4x1xf32, #tpu.memory_space<vmem>>, vector<1x4x1xf32>
    %28 = vector.shape_cast %27 : vector<1x4x1xf32> to vector<4x1xf32>
    %29 = vector.broadcast %28 : vector<4x1xf32> to vector<4x256xf32>
    %30 = arith.addf %1, %29 : vector<4x256xf32>
    %c2_18 = arith.constant 2 : index
    %c0_19 = arith.constant 0 : index
    %c0_20 = arith.constant 0 : index
    %31 = vector.load %arg4[%c2_18, %c0_19, %c0_20] : memref<4x4x1xf32, #tpu.memory_space<vmem>>, vector<1x4x1xf32>
    %32 = vector.shape_cast %31 : vector<1x4x1xf32> to vector<4x1xf32>
    %33 = vector.broadcast %32 : vector<4x1xf32> to vector<4x256xf32>
    %34 = arith.mulf %30, %33 : vector<4x256xf32>
    %35 = arith.mulf %34, %34 : vector<4x256xf32>
    %cst_21 = arith.constant 0.000000e+00 : f32
    %36 = vector.broadcast %cst_21 : f32 to vector<4x256xf32>
    %37 = arith.subf %36, %35 : vector<4x256xf32>
    %38 = math.exp %37 : vector<4x256xf32>
    %c3 = arith.constant 3 : index
    %c0_22 = arith.constant 0 : index
    %c0_23 = arith.constant 0 : index
    %39 = vector.load %arg3[%c3, %c0_22, %c0_23] : memref<4x4x1xf32, #tpu.memory_space<vmem>>, vector<1x4x1xf32>
    %40 = vector.shape_cast %39 : vector<1x4x1xf32> to vector<4x1xf32>
    %41 = vector.broadcast %40 : vector<4x1xf32> to vector<4x256xf32>
    %42 = arith.addf %1, %41 : vector<4x256xf32>
    %c3_24 = arith.constant 3 : index
    %c0_25 = arith.constant 0 : index
    %c0_26 = arith.constant 0 : index
    %43 = vector.load %arg4[%c3_24, %c0_25, %c0_26] : memref<4x4x1xf32, #tpu.memory_space<vmem>>, vector<1x4x1xf32>
    %44 = vector.shape_cast %43 : vector<1x4x1xf32> to vector<4x1xf32>
    %45 = vector.broadcast %44 : vector<4x1xf32> to vector<4x256xf32>
    %46 = arith.mulf %42, %45 : vector<4x256xf32>
    %47 = arith.mulf %46, %46 : vector<4x256xf32>
    %cst_27 = arith.constant 0.000000e+00 : f32
    %48 = vector.broadcast %cst_27 : f32 to vector<4x256xf32>
    %49 = arith.subf %48, %47 : vector<4x256xf32>
    %50 = math.exp %49 : vector<4x256xf32>
    %51 = arith.addf %14, %26 : vector<4x256xf32>
    %52 = arith.addf %51, %38 : vector<4x256xf32>
    %53 = arith.addf %52, %50 : vector<4x256xf32>
    %cst_28 = arith.constant 9.99999974E-6 : f32
    %54 = vector.broadcast %cst_28 : f32 to vector<4x256xf32>
    %55 = arith.addf %53, %54 : vector<4x256xf32>
    %56 = tpu.reciprocal %55 : vector<4x256xf32> -> vector<4x256xf32>
    %57 = arith.mulf %14, %56 : vector<4x256xf32>
    %cst_29 = arith.constant dense<0.000000e+00> : vector<4x16xf32>
    %58 = tpu.matmul %57, %2, %cst_29 {dimension_numbers = #tpu.dot_dimension_numbers<[1], [0], [0], [1], [0, 0, 1, 1], [], []>, precision = #tpu.contract_precision<fp32>} : vector<4x256xf32>, vector<256x16xf32>, vector<4x16xf32> -> vector<4x16xf32>
    %c0_30 = arith.constant 0 : index
    %c0_31 = arith.constant 0 : index
    %c0_32 = arith.constant 0 : index
    %c0_33 = arith.constant 0 : index
    %59 = vector.load %arg6[%c0_30, %c0_31, %c0_32, %c0_33] : memref<1x4x4x16xf32, #tpu.memory_space<vmem>>, vector<1x1x4x16xf32>
    %60 = vector.shape_cast %59 : vector<1x1x4x16xf32> to vector<4x16xf32>
    %61 = vector.shape_cast %58 : vector<4x16xf32> to vector<1x1x4x16xf32>
    tpu.vector_store %arg6[%c0_30, %c0_31, %c0_32, %c0_33], %61 {strides = array<i32>} : memref<1x4x4x16xf32, #tpu.memory_space<vmem>>, vector<1x1x4x16xf32>,
    %62 = arith.mulf %26, %56 : vector<4x256xf32>
    %cst_34 = arith.constant dense<0.000000e+00> : vector<4x16xf32>
    %63 = tpu.matmul %62, %2, %cst_34 {dimension_numbers = #tpu.dot_dimension_numbers<[1], [0], [0], [1], [0, 0, 1, 1], [], []>, precision = #tpu.contract_precision<fp32>} : vector<4x256xf32>, vector<256x16xf32>, vector<4x16xf32> -> vector<4x16xf32>
    %c0_35 = arith.constant 0 : index
    %c1_36 = arith.constant 1 : index
    %c0_37 = arith.constant 0 : index
    %c0_38 = arith.constant 0 : index
    %64 = vector.load %arg6[%c0_35, %c1_36, %c0_37, %c0_38] : memref<1x4x4x16xf32, #tpu.memory_space<vmem>>, vector<1x1x4x16xf32>
    %65 = vector.shape_cast %64 : vector<1x1x4x16xf32> to vector<4x16xf32>
    %66 = vector.shape_cast %63 : vector<4x16xf32> to vector<1x1x4x16xf32>
    tpu.vector_store %arg6[%c0_35, %c1_36, %c0_37, %c0_38], %66 {strides = array<i32>} : memref<1x4x4x16xf32, #tpu.memory_space<vmem>>, vector<1x1x4x16xf32>,
    %67 = arith.mulf %38, %56 : vector<4x256xf32>
    %cst_39 = arith.constant dense<0.000000e+00> : vector<4x16xf32>
    %68 = tpu.matmul %67, %2, %cst_39 {dimension_numbers = #tpu.dot_dimension_numbers<[1], [0], [0], [1], [0, 0, 1, 1], [], []>, precision = #tpu.contract_precision<fp32>} : vector<4x256xf32>, vector<256x16xf32>, vector<4x16xf32> -> vector<4x16xf32>
    %c0_40 = arith.constant 0 : index
    %c2_41 = arith.constant 2 : index
    %c0_42 = arith.constant 0 : index
    %c0_43 = arith.constant 0 : index
    %69 = vector.load %arg6[%c0_40, %c2_41, %c0_42, %c0_43] : memref<1x4x4x16xf32, #tpu.memory_space<vmem>>, vector<1x1x4x16xf32>
    %70 = vector.shape_cast %69 : vector<1x1x4x16xf32> to vector<4x16xf32>
    %71 = vector.shape_cast %68 : vector<4x16xf32> to vector<1x1x4x16xf32>
    tpu.vector_store %arg6[%c0_40, %c2_41, %c0_42, %c0_43], %71 {strides = array<i32>} : memref<1x4x4x16xf32, #tpu.memory_space<vmem>>, vector<1x1x4x16xf32>,
    %72 = arith.mulf %50, %56 : vector<4x256xf32>
    %cst_44 = arith.constant dense<0.000000e+00> : vector<4x16xf32>
    %73 = tpu.matmul %72, %2, %cst_44 {dimension_numbers = #tpu.dot_dimension_numbers<[1], [0], [0], [1], [0, 0, 1, 1], [], []>, precision = #tpu.contract_precision<fp32>} : vector<4x256xf32>, vector<256x16xf32>, vector<4x16xf32> -> vector<4x16xf32>
    %c0_45 = arith.constant 0 : index
    %c3_46 = arith.constant 3 : index
    %c0_47 = arith.constant 0 : index
    %c0_48 = arith.constant 0 : index
    %74 = vector.load %arg6[%c0_45, %c3_46, %c0_47, %c0_48] : memref<1x4x4x16xf32, #tpu.memory_space<vmem>>, vector<1x1x4x16xf32>
    %75 = vector.shape_cast %74 : vector<1x1x4x16xf32> to vector<4x16xf32>
    %76 = vector.shape_cast %73 : vector<4x16xf32> to vector<1x1x4x16xf32>
    tpu.vector_store %arg6[%c0_45, %c3_46, %c0_47, %c0_48], %76 {strides = array<i32>} : memref<1x4x4x16xf32, #tpu.memory_space<vmem>>, vector<1x1x4x16xf32>,
    return
  }
  func.func @transform_0(%arg0: i32, %arg1: i32) -> (i32, i32, i32) {
    %c0_i32 = arith.constant 0 : i32
    %c0_i32_0 = arith.constant 0 : i32
    return %arg0, %arg1, %c0_i32 : i32, i32, i32
  }
  func.func @transform_1(%arg0: i32, %arg1: i32) -> (i32, i32, i32) {
    %c0_i32 = arith.constant 0 : i32
    %c0_i32_0 = arith.constant 0 : i32
    %c0_i32_1 = arith.constant 0 : i32
    return %c0_i32, %arg1, %c0_i32_0 : i32, i32, i32
  }
  func.func @transform_2(%arg0: i32, %arg1: i32) -> (i32, i32, i32) {
    %c0_i32 = arith.constant 0 : i32
    %c0_i32_0 = arith.constant 0 : i32
    %c0_i32_1 = arith.constant 0 : i32
    return %c0_i32, %arg1, %c0_i32_0 : i32, i32, i32
  }
  func.func @transform_3(%arg0: i32, %arg1: i32) -> (i32, i32) {
    %c0_i32 = arith.constant 0 : i32
    %c0_i32_0 = arith.constant 0 : i32
    %c0_i32_1 = arith.constant 0 : i32
    return %c0_i32, %c0_i32_0 : i32, i32
  }
  func.func @transform_4(%arg0: i32, %arg1: i32) -> (i32, i32, i32, i32) {
    %c0_i32 = arith.constant 0 : i32
    %c0_i32_0 = arith.constant 0 : i32
    %c0_i32_1 = arith.constant 0 : i32
    return %arg0, %c0_i32, %arg1, %c0_i32_0 : i32, i32, i32, i32
  }
}

</mosaic_0001>

<llo_original>
// kernel: tpu_custom_call.1
$region0: #{tpu_custom_call.1}
  #allocation0 [shape = 'u32[]', space=smem, size = 0x4, offset = 0x4, fixed_abs, tag = 'smem constant byte address 0x4 - core index']
  #allocation1 [shape = 'u32[144,128]{1,0:T(1,128)}', space=vmem, size = 0x12000, scoped, tag = 'internal scratch']
  %s0 = inlined_call_operand.vmem [shape: f32[2,4,256], index: 0, kind: input, shape index: {}]
  %s1 = inlined_call_operand.vmem [shape: f32[4,4,1], index: 1, kind: input, shape index: {}]
  %s2 = inlined_call_operand.vmem [shape: f32[4,4,1], index: 2, kind: input, shape index: {}]
  %s3 = inlined_call_operand.vmem [shape: f32[256,16], index: 3, kind: input, shape index: {}]
  %s4 = inlined_call_operand.hbm [shape: f32[2,4,4,16], index: 4, kind: output, shape index: {}]
  %s5 = sld [smem:[#allocation0]]
  $region49: #{tpu_custom_call.1} parent=0
    _
  %s7 = ssub.s32 1, %s5
  %s8 = scalar_select 0, %s7, %s5
  $region1: #{tpu_custom_call.1} parent=0
    #allocation2 [shape = 'u8[16384]{0}', space=vmem, size = 0x4000, scoped, tag = 'output window, operand 0']
    #allocation3 [shape = 's32[2]{0}', space=sflag, size = 0x8, scoped, tag = 'scoped memory for tpu_custom_call.1']
    %9 = vsyncpa [#allocation3], 0
    %s10 = scalar_lea.sflag [#allocation3], 1
    %11 = vsyncpa %s10, 0
    loop: start=0, step=1, limit=4
    $region2: #{tpu_custom_call.1} parent=1 // loop_pre_header
      _
    $region3: #{tpu_custom_call.1} parent=1 // loop_header
      %s13 = sphi 0, %s17
      %p14 = scmp.ge.s32.totalorder %s13, 4
      %s20 = sphi 0, %s32
      %s21 = sphi 0, %s28
      %s22 = sphi 0, %s20
      %s23 = sphi 0, %s21
      %s24 = sphi 0, %s22
      %s25 = sphi 0, %s23
      %s37 = sphi 0, %s39
      %s40 = sphi 0, %s37
      %s41 = sphi 0, %s40
      %s57 = sphi 0, %s41
      %s63 = sphi 0, %s65
      %s66 = sphi 0, %s63
      %s67 = sphi 0, %s66
      %s83 = sphi 0, %s67
      %s89 = sphi 0, %s91
      %s92 = sphi 0, %s89
      %s93 = sphi 0, %s92
      %s109 = sphi 0, %s93
      %s113 = sphi 0, %s113
      %s115 = sphi 0, %s113
      %s116 = sphi 0, %s115
      %s130 = sphi 0, %s116
      %s138 = sphi 0, %s140
      %s141 = sphi 0, %s138
      %s142 = sphi 0, %s141
      %s158 = sphi 0, %s142
    $region4: #{tpu_custom_call.1} parent=1 // loop_header_branch
      %16 = sbr.rel (%p14) target = $region8
    $region5: #{tpu_custom_call.1} parent=1 // loop_body
      %s18 = ssub.s32 %s13, 1
      %s19 = ssub.s32 %s13, 2
      %s26 = sadd.s32 1, %s21
      %p27 = scmp.ge.s32.totalorder %s26, 1
      %s28 = scalar_select %p27, 0, %s26
      %s29 = sadd.s32 1, %s20
      %s30 = scalar_select %p27, %s29, %s20
      %p31 = scmp.ge.s32.totalorder %s30, 2
      %s32 = scalar_select %p31, 0, %s30
      %s33 = ssub.s32 %s20, %s32
      %s34 = ssub.s32 %s21, %s28
      %s35 = sor.u32 %s33, %s34
      %p36 = scmp.eq.s32.totalorder %s35, 0
      %s38 = sadd.s32 %s37, 1
      %s39 = scalar_select %p36, %s37, %s38
      %p42 = pneg %p36
      %p43 = scmp.eq.s32.totalorder %s13, 1
      %p44 = por %p42, %p43
      %p45 = scmp.ne.s32.totalorder %s37, %s40
      %p46 = scmp.eq.s32.totalorder %s13, 0
      %p47 = por %p45, %p46
      %p48 = scmp.ne.s32.totalorder %s37, %s40
      %p49 = scmp.eq.s32.totalorder %s18, 1
      %p50 = por %p48, %p49
      %p51 = scmp.ne.s32.totalorder %s40, %s41
      %p52 = scmp.eq.s32.totalorder %s18, 0
      %p53 = por %p51, %p52
      %p54 = scmp.ne.s32.totalorder %s40, %s41
      %p55 = scmp.eq.s32.totalorder %s19, 1
      %p56 = por %p54, %p55
      %p58 = scmp.ne.s32.totalorder %s41, %s57
      %p59 = scmp.eq.s32.totalorder %s19, 0
      %p60 = por %p58, %p59
      %s61 = ssub.s32 %s21, %s28
      %p62 = scmp.eq.s32.totalorder %s61, 0
      %s64 = sadd.s32 %s63, 1
      %s65 = scalar_select %p62, %s63, %s64
      %p68 = pneg %p62
      %p69 = scmp.eq.s32.totalorder %s13, 1
      %p70 = por %p68, %p69
      %p71 = scmp.ne.s32.totalorder %s63, %s66
      %p72 = scmp.eq.s32.totalorder %s13, 0
      %p73 = por %p71, %p72
      %p74 = scmp.ne.s32.totalorder %s63, %s66
      %p75 = scmp.eq.s32.totalorder %s18, 1
      %p76 = por %p74, %p75
      %p77 = scmp.ne.s32.totalorder %s66, %s67
      %p78 = scmp.eq.s32.totalorder %s18, 0
      %p79 = por %p77, %p78
      %p80 = scmp.ne.s32.totalorder %s66, %s67
      %p81 = scmp.eq.s32.totalorder %s19, 1
      %p82 = por %p80, %p81
      %p84 = scmp.ne.s32.totalorder %s67, %s83
      %p85 = scmp.eq.s32.totalorder %s19, 0
      %p86 = por %p84, %p85
      %s87 = ssub.s32 %s21, %s28
      %p88 = scmp.eq.s32.totalorder %s87, 0
      %s90 = sadd.s32 %s89, 1
      %s91 = scalar_select %p88, %s89, %s90
      %p94 = pneg %p88
      %p95 = scmp.eq.s32.totalorder %s13, 1
      %p96 = por %p94, %p95
      %p97 = scmp.ne.s32.totalorder %s89, %s92
      %p98 = scmp.eq.s32.totalorder %s13, 0
      %p99 = por %p97, %p98
      %p100 = scmp.ne.s32.totalorder %s89, %s92
      %p101 = scmp.eq.s32.totalorder %s18, 1
      %p102 = por %p100, %p101
      %p103 = scmp.ne.s32.totalorder %s92, %s93
      %p104 = scmp.eq.s32.totalorder %s18, 0
      %p105 = por %p103, %p104
      %p106 = scmp.ne.s32.totalorder %s92, %s93
      %p107 = scmp.eq.s32.totalorder %s19, 1
      %p108 = por %p106, %p107
      %p110 = scmp.ne.s32.totalorder %s93, %s109
      %p111 = scmp.eq.s32.totalorder %s19, 0
      %p112 = por %p110, %p111
      %s114 = sadd.s32 %s113, 1
      %p117 = scmp.eq.s32.totalorder %s13, 1
      %p118 = scmp.ne.s32.totalorder %s113, %s115
      %p119 = scmp.eq.s32.totalorder %s13, 0
      %p120 = por %p118, %p119
      %p121 = scmp.ne.s32.totalorder %s113, %s115
      %p122 = scmp.eq.s32.totalorder %s18, 1
      %p123 = por %p121, %p122
      %p124 = scmp.ne.s32.totalorder %s115, %s116
      %p125 = scmp.eq.s32.totalorder %s18, 0
      %p126 = por %p124, %p125
      %p127 = scmp.ne.s32.totalorder %s115, %s116
      %p128 = scmp.eq.s32.totalorder %s19, 1
      %p129 = por %p127, %p128
      %p131 = scmp.ne.s32.totalorder %s116, %s130
      %p132 = scmp.eq.s32.totalorder %s19, 0
      %p133 = por %p131, %p132
      %s134 = ssub.s32 %s20, %s32
      %s135 = ssub.s32 %s21, %s28
      %s136 = sor.u32 %s134, %s135
      %p137 = scmp.eq.s32.totalorder %s136, 0
      %s139 = sadd.s32 %s138, 1
      %s140 = scalar_select %p137, %s138, %s139
      %p143 = pneg %p137
      %p144 = scmp.eq.s32.totalorder %s13, 1
      %p145 = por %p143, %p144
      %p146 = scmp.ne.s32.totalorder %s138, %s141
      %p147 = scmp.eq.s32.totalorder %s13, 0
      %p148 = por %p146, %p147
      %p149 = scmp.ne.s32.totalorder %s138, %s141
      %p150 = scmp.eq.s32.totalorder %s18, 1
      %p151 = por %p149, %p150
      %p152 = scmp.ne.s32.totalorder %s141, %s142
      %p153 = scmp.eq.s32.totalorder %s18, 0
      %p154 = por %p152, %p153
      %p155 = scmp.ne.s32.totalorder %s141, %s142
      %p156 = scmp.eq.s32.totalorder %s19, 1
      %p157 = por %p155, %p156
      %p159 = scmp.ne.s32.totalorder %s142, %s158
      %p160 = scmp.eq.s32.totalorder %s19, 0
      %p161 = por %p159, %p160
      %p162 = scmp.le.s32.totalorder 1, %s13
      %p163 = scmp.lt.s32.totalorder %s13, 3
      %p164 = pnand %p162, %p163
      %p165 = pneg %p164
      // Predicated region
      $region9: #{tpu_custom_call.1} parent=5 // pred_check
        _
      $region10: #{tpu_custom_call.1} parent=5 // pred_check_branch
        %167 = sbr.rel (%p164) target = $region12
      $region11: #{tpu_custom_call.1} parent=5 // pred_region
        %s168 = ssub.s32 %s13, 1
        // Predicated region
        $region13: #{tpu_custom_call.1} parent=11 // pred_check
          %p169 = pneg %p79
        $region14: #{tpu_custom_call.1} parent=11 // pred_check_branch
          %171 = sbr.rel (%p169) target = $region16
        $region15: #{tpu_custom_call.1} parent=11 // pred_region
          %p172 = scmp.lt.s32.totalorder %s23, 0
          %s173 = scalar_select %p172, %s23, 0
          %s174 = smul.addr %s173, 4
          %s175 = scalar_lea.vmem %s1, %s174
        $region16: #{tpu_custom_call.1} parent=11 // pred_fallthru
          _
        // Predicated region
        $region17: #{tpu_custom_call.1} parent=11 // pred_check
          %p176 = pneg %p105
        $region18: #{tpu_custom_call.1} parent=11 // pred_check_branch
          %178 = sbr.rel (%p176) target = $region20
        $region19: #{tpu_custom_call.1} parent=11 // pred_region
          %p179 = scmp.lt.s32.totalorder %s23, 0
          %s180 = scalar_select %p179, %s23, 0
          %s181 = smul.addr %s180, 4
          %s182 = scalar_lea.vmem %s2, %s181
        $region20: #{tpu_custom_call.1} parent=11 // pred_fallthru
          _
        // Predicated region
        $region21: #{tpu_custom_call.1} parent=11 // pred_check
          %p183 = pneg %p126
        $region22: #{tpu_custom_call.1} parent=11 // pred_check_branch
          %185 = sbr.rel (%p183) target = $region24
        $region23: #{tpu_custom_call.1} parent=11 // pred_region
          _
        $region24: #{tpu_custom_call.1} parent=11 // pred_fallthru
          _
      $region12: #{tpu_custom_call.1} parent=5 // pred_fallthru
        _
      %p186 = scmp.lt.s32.totalorder %s13, 2
      // Predicated region
      $region25: #{tpu_custom_call.1} parent=5 // pred_check
        %p187 = pneg %p186
      $region26: #{tpu_custom_call.1} parent=5 // pred_check_branch
        %189 = sbr.rel (%p187) target = $region28
      $region27: #{tpu_custom_call.1} parent=5 // pred_region
        // Predicated region
        $region29: #{tpu_custom_call.1} parent=27 // pred_check
          %p190 = pneg %p47
        $region30: #{tpu_custom_call.1} parent=27 // pred_check_branch
          %192 = sbr.rel (%p190) target = $region32
        $region31: #{tpu_custom_call.1} parent=27 // pred_region
          %p193 = scmp.lt.s32.totalorder %s20, 1
          %s194 = scalar_select %p193, %s20, 1
          %p195 = scmp.lt.s32.totalorder %s21, 0
          %s196 = scalar_select %p195, %s21, 0
          %s197 = smul.addr %s196, 2
          %s198 = smul.addr %s194, 2
          %s199 = sadd.s32 %s197, %s198
          %s200 = smul.addr %s199, 4
          %s201 = scalar_lea.vmem %s0, %s200
        $region32: #{tpu_custom_call.1} parent=27 // pred_fallthru
          _
      $region28: #{tpu_custom_call.1} parent=5 // pred_fallthru
        _
      %p202 = scmp.le.s32.totalorder 1, %s13
      %p203 = scmp.lt.s32.totalorder %s13, 3
      %p204 = pnand %p202, %p203
      %p205 = pneg %p204
      // Predicated region
      $region33: #{tpu_custom_call.1} parent=5 // pred_check
        _
      $region34: #{tpu_custom_call.1} parent=5 // pred_check_branch
        %207 = sbr.rel (%p204) target = $region36
      $region35: #{tpu_custom_call.1} parent=5 // pred_region
        %s208 = ssub.s32 %s13, 1
        %p209 = scmp.lt.s32.totalorder %s22, 1
        %s210 = scalar_select %p209, %s22, 1
        %p211 = scmp.lt.s32.totalorder %s23, 0
        %s212 = scalar_select %p211, %s23, 0
        %s213 = smul.addr %s212, 2
        %s214 = smul.addr %s210, 2
        %s215 = sadd.s32 %s213, %s214
        %s216 = smul.addr %s215, 4
        %s217 = scalar_lea.vmem %s0, %s216
        %p218 = pneg %p53
        %p219 = pneg %p50
        %p220 = scmp.lt.s32.totalorder %s23, 0
        %s221 = scalar_select %p220, %s23, 0
        %s222 = smul.addr %s221, 4
        %s223 = scalar_lea.vmem %s1, %s222
        %p224 = pneg %p79
        %p225 = pneg %p76
        %p226 = scmp.lt.s32.totalorder %s23, 0
        %s227 = scalar_select %p226, %s23, 0
        %s228 = smul.addr %s227, 4
        %s229 = scalar_lea.vmem %s2, %s228
        %p230 = pneg %p105
        %p231 = pneg %p102
        %p232 = pneg %p126
        %p233 = pneg %p123
        %p234 = pneg %p154
        %p235 = pneg %p151
        %s236 = sand.u32 %s141, 1
        %s237 = scalar_lea.sflag [#allocation3], %s236
        %s238 = sand.u32 %s141, 1
        %s239 = smul.addr %s238, 16
        %s240 = scalar_lea.vmem [#allocation2], %s239
        %p241 = scmp.lt.s32.totalorder %s22, 1
        %s242 = scalar_select %p241, %s22, 1
        %p243 = scmp.lt.s32.totalorder %s23, 0
        %s244 = scalar_select %p243, %s23, 0
        %s245 = smul.addr %s244, 2
        %s246 = smul.addr %s242, 2
        %s247 = sadd.s32 %s245, %s246
        %s248 = smul.addr %s247, 4
        %s249 = scalar_lea.vmem %s0, %s248
        %p250 = scmp.lt.s32.totalorder %s23, 0
        %s251 = scalar_select %p250, %s23, 0
        %s252 = smul.addr %s251, 4
        %s253 = scalar_lea.vmem %s1, %s252
        %p254 = scmp.lt.s32.totalorder %s23, 0
        %s255 = scalar_select %p254, %s23, 0
        %s256 = smul.addr %s255, 4
        %s257 = scalar_lea.vmem %s2, %s256
        %v258 = vld [vmem:[%s249] sm:$0xff]
        %v259 = vld [vmem:[%s3] sm:$0xff]
        %v260 = vld [vmem:[%s3 + $0x8] sm:$0xff]
        %v261 = vld [vmem:[%s3 + $0x10] sm:$0xff]
        %v262 = vld [vmem:[%s3 + $0x18] sm:$0xff]
        %v263 = vld [vmem:[%s3 + $0x20] sm:$0xff]
        %v264 = vld [vmem:[%s3 + $0x28] sm:$0xff]
        %v265 = vld [vmem:[%s3 + $0x30] sm:$0xff]
        %v266 = vld [vmem:[%s3 + $0x38] sm:$0xff]
        %v267 = vld [vmem:[%s3 + $0x40] sm:$0xff]
        %v268 = vld [vmem:[%s3 + $0x48] sm:$0xff]
        %v269 = vld [vmem:[%s3 + $0x50] sm:$0xff]
        %v270 = vld [vmem:[%s3 + $0x58] sm:$0xff]
        %v271 = vld [vmem:[%s3 + $0x60] sm:$0xff]
        %v272 = vld [vmem:[%s3 + $0x68] sm:$0xff]
        %v273 = vld [vmem:[%s3 + $0x70] sm:$0xff]
        %v274 = vld [vmem:[%s3 + $0x78] sm:$0xff]
        %v275 = vld [vmem:[%s3 + $0x80] sm:$0xff]
        %v276 = vld [vmem:[%s3 + $0x88] sm:$0xff]
        %v277 = vld [vmem:[%s3 + $0x90] sm:$0xff]
        %v278 = vld [vmem:[%s3 + $0x98] sm:$0xff]
        %v279 = vld [vmem:[%s3 + $0xa0] sm:$0xff]
        %v280 = vld [vmem:[%s3 + $0xa8] sm:$0xff]
        %v281 = vld [vmem:[%s3 + $0xb0] sm:$0xff]
        %v282 = vld [vmem:[%s3 + $0xb8] sm:$0xff]
        %v283 = vld [vmem:[%s3 + $0xc0] sm:$0xff]
        %v284 = vld [vmem:[%s3 + $0xc8] sm:$0xff]
        %v285 = vld [vmem:[%s3 + $0xd0] sm:$0xff]
        %v286 = vld [vmem:[%s3 + $0xd8] sm:$0xff]
        %v287 = vld [vmem:[%s3 + $0xe0] sm:$0xff]
        %v288 = vld [vmem:[%s3 + $0xe8] sm:$0xff]
        %v289 = vld [vmem:[%s3 + $0xf0] sm:$0xff]
        %v290 = vld [vmem:[%s3 + $0xf8] sm:$0xff]
        %v291 = vld [vmem:[%s253] sm:$0xf]
        %293 = vset.pattern.permute.xlu0 0
        %294 = vperm.xlu0 %293, %v291
        %v295 = vpop.permute.xlu0 %294
        %v297 = vunpack.c.l.s4 839922192
        %v298 = vunpack.c.0.s8 %v297
        %v299 = vlaneseq
        %v300 = vshrl.u32 %v299, 7
        %v301 = vsub.s32 %v298, %v300
        %v302 = vrot.slane %v295, %v301
        %v304 = vadd.f32 %v258, %v302
        %v305 = vld [vmem:[%s257] sm:$0xf]
        %307 = vset.pattern.permute.xlu0 0
        %308 = vperm.xlu0 %307, %v305
        %v309 = vpop.permute.xlu0 %308
        %v311 = vunpack.c.l.s4 839922192
        %v312 = vunpack.c.0.s8 %v311
        %v313 = vlaneseq
        %v314 = vshrl.u32 %v313, 7
        %v315 = vsub.s32 %v312, %v314
        %v316 = vrot.slane %v309, %v315
        %v318 = vmul.f32 %v304, %v316
        %v319 = vmul.f32 %v318, %v318
        %v320 = vsub.f32 0.0, %v319
        %v321 = vmul.f32 %v320, 1.442695
        %v322 = vpow.pop %v321
        %s323 = scalar_lea.vmem %s253, 4
        %v324 = vld [vmem:[%s323] sm:$0xf]
        %326 = vset.pattern.permute.xlu0 0
        %327 = vperm.xlu0 %326, %v324
        %v328 = vpop.permute.xlu0 %327
        %v330 = vunpack.c.l.s4 839922192
        %v331 = vunpack.c.0.s8 %v330
        %v332 = vlaneseq
        %v333 = vshrl.u32 %v332, 7
        %v334 = vsub.s32 %v331, %v333
        %v335 = vrot.slane %v328, %v334
        %v337 = vadd.f32 %v258, %v335
        %s338 = scalar_lea.vmem %s257, 4
        %v339 = vld [vmem:[%s338] sm:$0xf]
        %341 = vset.pattern.permute.xlu0 0
        %342 = vperm.xlu0 %341, %v339
        %v343 = vpop.permute.xlu0 %342
        %v345 = vunpack.c.l.s4 839922192
        %v346 = vunpack.c.0.s8 %v345
        %v347 = vlaneseq
        %v348 = vshrl.u32 %v347, 7
        %v349 = vsub.s32 %v346, %v348
        %v350 = vrot.slane %v343, %v349
        %v352 = vmul.f32 %v337, %v350
        %v353 = vmul.f32 %v352, %v352
        %v354 = vsub.f32 0.0, %v353
        %v355 = vmul.f32 %v354, 1.442695
        %v356 = vpow.pop %v355
        %s357 = scalar_lea.vmem %s253, 8
        %v358 = vld [vmem:[%s357] sm:$0xf]
        %360 = vset.pattern.permute.xlu0 0
        %361 = vperm.xlu0 %360, %v358
        %v362 = vpop.permute.xlu0 %361
        %v364 = vunpack.c.l.s4 839922192
        %v365 = vunpack.c.0.s8 %v364
        %v366 = vlaneseq
        %v367 = vshrl.u32 %v366, 7
        %v368 = vsub.s32 %v365, %v367
        %v369 = vrot.slane %v362, %v368
        %v371 = vadd.f32 %v258, %v369
        %s372 = scalar_lea.vmem %s257, 8
        %v373 = vld [vmem:[%s372] sm:$0xf]
        %375 = vset.pattern.permute.xlu0 0
        %376 = vperm.xlu0 %375, %v373
        %v377 = vpop.permute.xlu0 %376
        %v379 = vunpack.c.l.s4 839922192
        %v380 = vunpack.c.0.s8 %v379
        %v381 = vlaneseq
        %v382 = vshrl.u32 %v381, 7
        %v383 = vsub.s32 %v380, %v382
        %v384 = vrot.slane %v377, %v383
        %v386 = vmul.f32 %v371, %v384
        %v387 = vmul.f32 %v386, %v386
        %v388 = vsub.f32 0.0, %v387
        %v389 = vmul.f32 %v388, 1.442695
        %v390 = vpow.pop %v389
        %s391 = scalar_lea.vmem %s253, 12
        %v392 = vld [vmem:[%s391] sm:$0xf]
        %394 = vset.pattern.permute.xlu0 0
        %395 = vperm.xlu0 %394, %v392
        %v396 = vpop.permute.xlu0 %395
        %v398 = vunpack.c.l.s4 839922192
        %v399 = vunpack.c.0.s8 %v398
        %v400 = vlaneseq
        %v401 = vshrl.u32 %v400, 7
        %v402 = vsub.s32 %v399, %v401
        %v403 = vrot.slane %v396, %v402
        %v405 = vadd.f32 %v258, %v403
        %s406 = scalar_lea.vmem %s257, 12
        %v407 = vld [vmem:[%s406] sm:$0xf]
        %409 = vset.pattern.permute.xlu0 0
        %410 = vperm.xlu0 %409, %v407
        %v411 = vpop.permute.xlu0 %410
        %v413 = vunpack.c.l.s4 839922192
        %v414 = vunpack.c.0.s8 %v413
        %v415 = vlaneseq
        %v416 = vshrl.u32 %v415, 7
        %v417 = vsub.s32 %v414, %v416
        %v418 = vrot.slane %v411, %v417
        %v420 = vmul.f32 %v405, %v418
        %v421 = vmul.f32 %v420, %v420
        %v422 = vsub.f32 0.0, %v421
        %v423 = vmul.f32 %v422, 1.442695
        %v424 = vpow.pop %v423
        %v425 = vadd.f32 %v322, %v356
        %v426 = vadd.f32 %v425, %v390
        %v427 = vadd.f32 %v426, %v424
        %v428 = vadd.f32 %v427, 1e-05
        %v429 = vrcp.pop %v428
        %v430 = vmul.f32 %v322, %v429
        %v432 = vcombine.high %v430, %v430
        %434 = vmatprep.subr.mxu0 0.0
        %v435 = vand.u32 %v259, 4294901760
        %436 = vmatpush1.msra.mxu0 %v435
        %437 = vmatprep.subr.mxu0 0.0
        %v438 = vand.u32 %v260, 4294901760
        %439 = vmatpush1.msra.mxu0 %v438
        %440 = vmatprep.subr.mxu0 0.0
        %v441 = vand.u32 %v261, 4294901760
        %442 = vmatpush1.msra.mxu0 %v441
        %443 = vmatprep.subr.mxu0 0.0
        %v444 = vand.u32 %v262, 4294901760
        %445 = vmatpush1.msra.mxu0 %v444
        %446 = vmatprep.subr.mxu0 0.0
        %v447 = vand.u32 %v263, 4294901760
        %448 = vmatpush1.msra.mxu0 %v447
        %449 = vmatprep.subr.mxu0 0.0
        %v450 = vand.u32 %v264, 4294901760
        %451 = vmatpush1.msra.mxu0 %v450
        %452 = vmatprep.subr.mxu0 0.0
        %v453 = vand.u32 %v265, 4294901760
        %454 = vmatpush1.msra.mxu0 %v453
        %455 = vmatprep.subr.mxu0 0.0
        %v456 = vand.u32 %v266, 4294901760
        %457 = vmatpush1.msra.mxu0 %v456
        %458 = vmatprep.subr.mxu0 0.0
        %v459 = vand.u32 %v267, 4294901760
        %460 = vmatpush1.msra.mxu0 %v459
        %461 = vmatprep.subr.mxu0 0.0
        %v462 = vand.u32 %v268, 4294901760
        %463 = vmatpush1.msra.mxu0 %v462
        %464 = vmatprep.subr.mxu0 0.0
        %v465 = vand.u32 %v269, 4294901760
        %466 = vmatpush1.msra.mxu0 %v465
        %467 = vmatprep.subr.mxu0 0.0
        %v468 = vand.u32 %v270, 4294901760
        %469 = vmatpush1.msra.mxu0 %v468
        %470 = vmatprep.subr.mxu0 0.0
        %v471 = vand.u32 %v271, 4294901760
        %472 = vmatpush1.msra.mxu0 %v471
        %473 = vmatprep.subr.mxu0 0.0
        %v474 = vand.u32 %v272, 4294901760
        %475 = vmatpush1.msra.mxu0 %v474
        %476 = vmatprep.subr.mxu0 0.0
        %v477 = vand.u32 %v273, 4294901760
        %478 = vmatpush1.msra.mxu0 %v477
        %479 = vmatprep.subr.mxu0 0.0
        %v480 = vand.u32 %v274, 4294901760
        %481 = vmatpush1.msra.mxu0 %v480
        %482 = vmatprep.subr.mxu0 0.0
        %v483 = vand.u32 %v275, 4294901760
        %484 = vmatpush1.msra.mxu0 %v483
        %485 = vmatprep.subr.mxu0 0.0
        %v486 = vand.u32 %v276, 4294901760
        %487 = vmatpush1.msra.mxu0 %v486
        %488 = vmatprep.subr.mxu0 0.0
        %v489 = vand.u32 %v277, 4294901760
        %490 = vmatpush1.msra.mxu0 %v489
        %491 = vmatprep.subr.mxu0 0.0
        %v492 = vand.u32 %v278, 4294901760
        %493 = vmatpush1.msra.mxu0 %v492
        %494 = vmatprep.subr.mxu0 0.0
        %v495 = vand.u32 %v279, 4294901760
        %496 = vmatpush1.msra.mxu0 %v495
        %497 = vmatprep.subr.mxu0 0.0
        %v498 = vand.u32 %v280, 4294901760
        %499 = vmatpush1.msra.mxu0 %v498
        %500 = vmatprep.subr.mxu0 0.0
        %v501 = vand.u32 %v281, 4294901760
        %502 = vmatpush1.msra.mxu0 %v501
        %503 = vmatprep.subr.mxu0 0.0
        %v504 = vand.u32 %v282, 4294901760
        %505 = vmatpush1.msra.mxu0 %v504
        %506 = vmatprep.subr.mxu0 0.0
        %v507 = vand.u32 %v283, 4294901760
        %508 = vmatpush1.msra.mxu0 %v507
        %509 = vmatprep.subr.mxu0 0.0
        %v510 = vand.u32 %v284, 4294901760
        %511 = vmatpush1.msra.mxu0 %v510
        %512 = vmatprep.subr.mxu0 0.0
        %v513 = vand.u32 %v285, 4294901760
        %514 = vmatpush1.msra.mxu0 %v513
        %515 = vmatprep.subr.mxu0 0.0
        %v516 = vand.u32 %v286, 4294901760
        %517 = vmatpush1.msra.mxu0 %v516
        %518 = vmatprep.subr.mxu0 0.0
        %v519 = vand.u32 %v287, 4294901760
        %520 = vmatpush1.msra.mxu0 %v519
        %521 = vmatprep.subr.mxu0 0.0
        %v522 = vand.u32 %v288, 4294901760
        %523 = vmatpush1.msra.mxu0 %v522
        %524 = vmatprep.subr.mxu0 0.0
        %v525 = vand.u32 %v289, 4294901760
        %526 = vmatpush1.msra.mxu0 %v525
        %527 = vmatprep.subr.mxu0 0.0
        %v528 = vand.u32 %v290, 4294901760
        %529 = vmatpush1.msra.mxu0 %v528
        %v530 = vand.u32 %v432, 4294901760
        %v531 = vsub.f32 %v432, %v530
        %v532 = vand.u32 %v531, 4294901760
        %v533 = vsub.f32 %v531, %v532
        %v534 = vand.u32 %v533, 4294901760
        %535 = vmatprep.mubr.f32.mxu0 %v534
        %v536 = vand.u32 %v430, 4294901760
        %v537 = vsub.f32 %v430, %v536
        %v538 = vand.u32 %v537, 4294901760
        %v539 = vsub.f32 %v537, %v538
        %v540 = vand.u32 %v539, 4294901760
        %541 = vmatmul.mubr.f32.gmra.mrb[0].mxu0 %v540
        %v542 = vpop.f32.mrb[0].mxu0
        %v543 = vadd.f32 0.0, %v542
        %v544 = vpop.f32.mrb[0].mxu0
        %545 = vdwg.mxu0
        %546 = vmatprep.subr.mxu0 0.0
        %v547 = vand.u32 %v259, 4294901760
        %v548 = vsub.f32 %v259, %v547
        %v549 = vand.u32 %v548, 4294901760
        %v550 = vsub.f32 %v548, %v549
        %v551 = vand.u32 %v550, 4294901760
        %552 = vmatpush1.msra.mxu0 %v551
        %553 = vmatprep.subr.mxu0 0.0
        %v554 = vand.u32 %v260, 4294901760
        %v555 = vsub.f32 %v260, %v554
        %v556 = vand.u32 %v555, 4294901760
        %v557 = vsub.f32 %v555, %v556
        %v558 = vand.u32 %v557, 4294901760
        %559 = vmatpush1.msra.mxu0 %v558
        %560 = vmatprep.subr.mxu0 0.0
        %v561 = vand.u32 %v261, 4294901760
        %v562 = vsub.f32 %v261, %v561
        %v563 = vand.u32 %v562, 4294901760
        %v564 = vsub.f32 %v562, %v563
        %v565 = vand.u32 %v564, 4294901760
        %566 = vmatpush1.msra.mxu0 %v565
        %567 = vmatprep.subr.mxu0 0.0
        %v568 = vand.u32 %v262, 4294901760
        %v569 = vsub.f32 %v262, %v568
        %v570 = vand.u32 %v569, 4294901760
        %v571 = vsub.f32 %v569, %v570
        %v572 = vand.u32 %v571, 4294901760
        %573 = vmatpush1.msra.mxu0 %v572
        %574 = vmatprep.subr.mxu0 0.0
        %v575 = vand.u32 %v263, 4294901760
        %v576 = vsub.f32 %v263, %v575
        %v577 = vand.u32 %v576, 4294901760
        %v578 = vsub.f32 %v576, %v577
        %v579 = vand.u32 %v578, 4294901760
        %580 = vmatpush1.msra.mxu0 %v579
        %581 = vmatprep.subr.mxu0 0.0
        %v582 = vand.u32 %v264, 4294901760
        %v583 = vsub.f32 %v264, %v582
        %v584 = vand.u32 %v583, 4294901760
        %v585 = vsub.f32 %v583, %v584
        %v586 = vand.u32 %v585, 4294901760
        %587 = vmatpush1.msra.mxu0 %v586
        %588 = vmatprep.subr.mxu0 0.0
        %v589 = vand.u32 %v265, 4294901760
        %v590 = vsub.f32 %v265, %v589
        %v591 = vand.u32 %v590, 4294901760
        %v592 = vsub.f32 %v590, %v591
        %v593 = vand.u32 %v592, 4294901760
        %594 = vmatpush1.msra.mxu0 %v593
        %595 = vmatprep.subr.mxu0 0.0
        %v596 = vand.u32 %v266, 4294901760
        %v597 = vsub.f32 %v266, %v596
        %v598 = vand.u32 %v597, 4294901760
        %v599 = vsub.f32 %v597, %v598
        %v600 = vand.u32 %v599, 4294901760
        %601 = vmatpush1.msra.mxu0 %v600
        %602 = vmatprep.subr.mxu0 0.0
        %v603 = vand.u32 %v267, 4294901760
        %v604 = vsub.f32 %v267, %v603
        %v605 = vand.u32 %v604, 4294901760
        %v606 = vsub.f32 %v604, %v605
        %v607 = vand.u32 %v606, 4294901760
        %608 = vmatpush1.msra.mxu0 %v607
        %609 = vmatprep.subr.mxu0 0.0
        %v610 = vand.u32 %v268, 4294901760
        %v611 = vsub.f32 %v268, %v610
        %v612 = vand.u32 %v611, 4294901760
        %v613 = vsub.f32 %v611, %v612
        %v614 = vand.u32 %v613, 4294901760
        %615 = vmatpush1.msra.mxu0 %v614
        %616 = vmatprep.subr.mxu0 0.0
        %v617 = vand.u32 %v269, 4294901760
        %v618 = vsub.f32 %v269, %v617
        %v619 = vand.u32 %v618, 4294901760
        %v620 = vsub.f32 %v618, %v619
        %v621 = vand.u32 %v620, 4294901760
        %622 = vmatpush1.msra.mxu0 %v621
        %623 = vmatprep.subr.mxu0 0.0
        %v624 = vand.u32 %v270, 4294901760
        %v625 = vsub.f32 %v270, %v624
        %v626 = vand.u32 %v625, 4294901760
        %v627 = vsub.f32 %v625, %v626
        %v628 = vand.u32 %v627, 4294901760
        %629 = vmatpush1.msra.mxu0 %v628
        %630 = vmatprep.subr.mxu0 0.0
        %v631 = vand.u32 %v271, 4294901760
        %v632 = vsub.f32 %v271, %v631
        %v633 = vand.u32 %v632, 4294901760
        %v634 = vsub.f32 %v632, %v633
        %v635 = vand.u32 %v634, 4294901760
        %636 = vmatpush1.msra.mxu0 %v635
        %637 = vmatprep.subr.mxu0 0.0
        %v638 = vand.u32 %v272, 4294901760
        %v639 = vsub.f32 %v272, %v638
        %v640 = vand.u32 %v639, 4294901760
        %v641 = vsub.f32 %v639, %v640
        %v642 = vand.u32 %v641, 4294901760
        %643 = vmatpush1.msra.mxu0 %v642
        %644 = vmatprep.subr.mxu0 0.0
        %v645 = vand.u32 %v273, 4294901760
        %v646 = vsub.f32 %v273, %v645
        %v647 = vand.u32 %v646, 4294901760
        %v648 = vsub.f32 %v646, %v647
        %v649 = vand.u32 %v648, 4294901760
        %650 = vmatpush1.msra.mxu0 %v649
        %651 = vmatprep.subr.mxu0 0.0
        %v652 = vand.u32 %v274, 4294901760
        %v653 = vsub.f32 %v274, %v652
        %v654 = vand.u32 %v653, 4294901760
        %v655 = vsub.f32 %v653, %v654
        %v656 = vand.u32 %v655, 4294901760
        %657 = vmatpush1.msra.mxu0 %v656
        %658 = vmatprep.subr.mxu0 0.0
        %v659 = vand.u32 %v275, 4294901760
        %v660 = vsub.f32 %v275, %v659
        %v661 = vand.u32 %v660, 4294901760
        %v662 = vsub.f32 %v660, %v661
        %v663 = vand.u32 %v662, 4294901760
        %664 = vmatpush1.msra.mxu0 %v663
        %665 = vmatprep.subr.mxu0 0.0
        %v666 = vand.u32 %v276, 4294901760
        %v667 = vsub.f32 %v276, %v666
        %v668 = vand.u32 %v667, 4294901760
        %v669 = vsub.f32 %v667, %v668
        %v670 = vand.u32 %v669, 4294901760
        %671 = vmatpush1.msra.mxu0 %v670
        %672 = vmatprep.subr.mxu0 0.0
        %v673 = vand.u32 %v277, 4294901760
        %v674 = vsub.f32 %v277, %v673
        %v675 = vand.u32 %v674, 4294901760
        %v676 = vsub.f32 %v674, %v675
        %v677 = vand.u32 %v676, 4294901760
        %678 = vmatpush1.msra.mxu0 %v677
        %679 = vmatprep.subr.mxu0 0.0
        %v680 = vand.u32 %v278, 4294901760
        %v681 = vsub.f32 %v278, %v680
        %v682 = vand.u32 %v681, 4294901760
        %v683 = vsub.f32 %v681, %v682
        %v684 = vand.u32 %v683, 4294901760
        %685 = vmatpush1.msra.mxu0 %v684
        %686 = vmatprep.subr.mxu0 0.0
        %v687 = vand.u32 %v279, 4294901760
        %v688 = vsub.f32 %v279, %v687
        %v689 = vand.u32 %v688, 4294901760
        %v690 = vsub.f32 %v688, %v689
        %v691 = vand.u32 %v690, 4294901760
        %692 = vmatpush1.msra.mxu0 %v691
        %693 = vmatprep.subr.mxu0 0.0
        %v694 = vand.u32 %v280, 4294901760
        %v695 = vsub.f32 %v280, %v694
        %v696 = vand.u32 %v695, 4294901760
        %v697 = vsub.f32 %v695, %v696
        %v698 = vand.u32 %v697, 4294901760
        %699 = vmatpush1.msra.mxu0 %v698
        %700 = vmatprep.subr.mxu0 0.0
        %v701 = vand.u32 %v281, 4294901760
        %v702 = vsub.f32 %v281, %v701
        %v703 = vand.u32 %v702, 4294901760
        %v704 = vsub.f32 %v702, %v703
        %v705 = vand.u32 %v704, 4294901760
        %706 = vmatpush1.msra.mxu0 %v705
        %707 = vmatprep.subr.mxu0 0.0
        %v708 = vand.u32 %v282, 4294901760
        %v709 = vsub.f32 %v282, %v708
        %v710 = vand.u32 %v709, 4294901760
        %v711 = vsub.f32 %v709, %v710
        %v712 = vand.u32 %v711, 4294901760
        %713 = vmatpush1.msra.mxu0 %v712
        %714 = vmatprep.subr.mxu0 0.0
        %v715 = vand.u32 %v283, 4294901760
        %v716 = vsub.f32 %v283, %v715
        %v717 = vand.u32 %v716, 4294901760
        %v718 = vsub.f32 %v716, %v717
        %v719 = vand.u32 %v718, 4294901760
        %720 = vmatpush1.msra.mxu0 %v719
        %721 = vmatprep.subr.mxu0 0.0
        %v722 = vand.u32 %v284, 4294901760
        %v723 = vsub.f32 %v284, %v722
        %v724 = vand.u32 %v723, 4294901760
        %v725 = vsub.f32 %v723, %v724
        %v726 = vand.u32 %v725, 4294901760
        %727 = vmatpush1.msra.mxu0 %v726
        %728 = vmatprep.subr.mxu0 0.0
        %v729 = vand.u32 %v285, 4294901760
        %v730 = vsub.f32 %v285, %v729
        %v731 = vand.u32 %v730, 4294901760
        %v732 = vsub.f32 %v730, %v731
        %v733 = vand.u32 %v732, 4294901760
        %734 = vmatpush1.msra.mxu0 %v733
        %735 = vmatprep.subr.mxu0 0.0
        %v736 = vand.u32 %v286, 4294901760
        %v737 = vsub.f32 %v286, %v736
        %v738 = vand.u32 %v737, 4294901760
        %v739 = vsub.f32 %v737, %v738
        %v740 = vand.u32 %v739, 4294901760
        %741 = vmatpush1.msra.mxu0 %v740
        %742 = vmatprep.subr.mxu0 0.0
        %v743 = vand.u32 %v287, 4294901760
        %v744 = vsub.f32 %v287, %v743
        %v745 = vand.u32 %v744, 4294901760
        %v746 = vsub.f32 %v744, %v745
        %v747 = vand.u32 %v746, 4294901760
        %748 = vmatpush1.msra.mxu0 %v747
        %749 = vmatprep.subr.mxu0 0.0
        %v750 = vand.u32 %v288, 4294901760
        %v751 = vsub.f32 %v288, %v750
        %v752 = vand.u32 %v751, 4294901760
        %v753 = vsub.f32 %v751, %v752
        %v754 = vand.u32 %v753, 4294901760
        %755 = vmatpush1.msra.mxu0 %v754
        %756 = vmatprep.subr.mxu0 0.0
        %v757 = vand.u32 %v289, 4294901760
        %v758 = vsub.f32 %v289, %v757
        %v759 = vand.u32 %v758, 4294901760
        %v760 = vsub.f32 %v758, %v759
        %v761 = vand.u32 %v760, 4294901760
        %762 = vmatpush1.msra.mxu0 %v761
        %763 = vmatprep.subr.mxu0 0.0
        %v764 = vand.u32 %v290, 4294901760
        %v765 = vsub.f32 %v290, %v764
        %v766 = vand.u32 %v765, 4294901760
        %v767 = vsub.f32 %v765, %v766
        %v768 = vand.u32 %v767, 4294901760
        %769 = vmatpush1.msra.mxu0 %v768
        %v770 = vand.u32 %v432, 4294901760
        %771 = vmatprep.mubr.f32.mxu0 %v770
        %v772 = vand.u32 %v430, 4294901760
        %773 = vmatmul.mubr.f32.gmra.mrb[0].mxu0 %v772
        %v774 = vpop.f32.mrb[0].mxu0
        %v775 = vadd.f32 %v543, %v774
        %v776 = vpop.f32.mrb[0].mxu0
        %777 = vdwg.mxu0
        %778 = vmatprep.subr.mxu0 0.0
        %v779 = vand.u32 %v259, 4294901760
        %v780 = vsub.f32 %v259, %v779
        %781 = vmatpush1.msra.mxu0 %v780
        %782 = vmatprep.subr.mxu0 0.0
        %v783 = vand.u32 %v260, 4294901760
        %v784 = vsub.f32 %v260, %v783
        %785 = vmatpush1.msra.mxu0 %v784
        %786 = vmatprep.subr.mxu0 0.0
        %v787 = vand.u32 %v261, 4294901760
        %v788 = vsub.f32 %v261, %v787
        %789 = vmatpush1.msra.mxu0 %v788
        %790 = vmatprep.subr.mxu0 0.0
        %v791 = vand.u32 %v262, 4294901760
        %v792 = vsub.f32 %v262, %v791
        %793 = vmatpush1.msra.mxu0 %v792
        %794 = vmatprep.subr.mxu0 0.0
        %v795 = vand.u32 %v263, 4294901760
        %v796 = vsub.f32 %v263, %v795
        %797 = vmatpush1.msra.mxu0 %v796
        %798 = vmatprep.subr.mxu0 0.0
        %v799 = vand.u32 %v264, 4294901760
        %v800 = vsub.f32 %v264, %v799
        %801 = vmatpush1.msra.mxu0 %v800
        %802 = vmatprep.subr.mxu0 0.0
        %v803 = vand.u32 %v265, 4294901760
        %v804 = vsub.f32 %v265, %v803
        %805 = vmatpush1.msra.mxu0 %v804
        %806 = vmatprep.subr.mxu0 0.0
        %v807 = vand.u32 %v266, 4294901760
        %v808 = vsub.f32 %v266, %v807
        %809 = vmatpush1.msra.mxu0 %v808
        %810 = vmatprep.subr.mxu0 0.0
        %v811 = vand.u32 %v267, 4294901760
        %v812 = vsub.f32 %v267, %v811
        %813 = vmatpush1.msra.mxu0 %v812
        %814 = vmatprep.subr.mxu0 0.0
        %v815 = vand.u32 %v268, 4294901760
        %v816 = vsub.f32 %v268, %v815
        %817 = vmatpush1.msra.mxu0 %v816
        %818 = vmatprep.subr.mxu0 0.0
        %v819 = vand.u32 %v269, 4294901760
        %v820 = vsub.f32 %v269, %v819
        %821 = vmatpush1.msra.mxu0 %v820
        %822 = vmatprep.subr.mxu0 0.0
        %v823 = vand.u32 %v270, 4294901760
        %v824 = vsub.f32 %v270, %v823
        %825 = vmatpush1.msra.mxu0 %v824
        %826 = vmatprep.subr.mxu0 0.0
        %v827 = vand.u32 %v271, 4294901760
        %v828 = vsub.f32 %v271, %v827
        %829 = vmatpush1.msra.mxu0 %v828
        %830 = vmatprep.subr.mxu0 0.0
        %v831 = vand.u32 %v272, 4294901760
        %v832 = vsub.f32 %v272, %v831
        %833 = vmatpush1.msra.mxu0 %v832
        %834 = vmatprep.subr.mxu0 0.0
        %v835 = vand.u32 %v273, 4294901760
        %v836 = vsub.f32 %v273, %v835
        %837 = vmatpush1.msra.mxu0 %v836
        %838 = vmatprep.subr.mxu0 0.0
        %v839 = vand.u32 %v274, 4294901760
        %v840 = vsub.f32 %v274, %v839
        %841 = vmatpush1.msra.mxu0 %v840
        %842 = vmatprep.subr.mxu0 0.0
        %v843 = vand.u32 %v275, 4294901760
        %v844 = vsub.f32 %v275, %v843
        %845 = vmatpush1.msra.mxu0 %v844
        %846 = vmatprep.subr.mxu0 0.0
        %v847 = vand.u32 %v276, 4294901760
        %v848 = vsub.f32 %v276, %v847
        %849 = vmatpush1.msra.mxu0 %v848
        %850 = vmatprep.subr.mxu0 0.0
        %v851 = vand.u32 %v277, 4294901760
        %v852 = vsub.f32 %v277, %v851
        %853 = vmatpush1.msra.mxu0 %v852
        %854 = vmatprep.subr.mxu0 0.0
        %v855 = vand.u32 %v278, 4294901760
        %v856 = vsub.f32 %v278, %v855
        %857 = vmatpush1.msra.mxu0 %v856
        %858 = vmatprep.subr.mxu0 0.0
        %v859 = vand.u32 %v279, 4294901760
        %v860 = vsub.f32 %v279, %v859
        %861 = vmatpush1.msra.mxu0 %v860
        %862 = vmatprep.subr.mxu0 0.0
        %v863 = vand.u32 %v280, 4294901760
        %v864 = vsub.f32 %v280, %v863
        %865 = vmatpush1.msra.mxu0 %v864
        %866 = vmatprep.subr.mxu0 0.0
        %v867 = vand.u32 %v281, 4294901760
        %v868 = vsub.f32 %v281, %v867
        %869 = vmatpush1.msra.mxu0 %v868
        %870 = vmatprep.subr.mxu0 0.0
        %v871 = vand.u32 %v282, 4294901760
        %v872 = vsub.f32 %v282, %v871
        %873 = vmatpush1.msra.mxu0 %v872
        %874 = vmatprep.subr.mxu0 0.0
        %v875 = vand.u32 %v283, 4294901760
        %v876 = vsub.f32 %v283, %v875
        %877 = vmatpush1.msra.mxu0 %v876
        %878 = vmatprep.subr.mxu0 0.0
        %v879 = vand.u32 %v284, 4294901760
        %v880 = vsub.f32 %v284, %v879
        %881 = vmatpush1.msra.mxu0 %v880
        %882 = vmatprep.subr.mxu0 0.0
        %v883 = vand.u32 %v285, 4294901760
        %v884 = vsub.f32 %v285, %v883
        %885 = vmatpush1.msra.mxu0 %v884
        %886 = vmatprep.subr.mxu0 0.0
        %v887 = vand.u32 %v286, 4294901760
        %v888 = vsub.f32 %v286, %v887
        %889 = vmatpush1.msra.mxu0 %v888
        %890 = vmatprep.subr.mxu0 0.0
        %v891 = vand.u32 %v287, 4294901760
        %v892 = vsub.f32 %v287, %v891
        %893 = vmatpush1.msra.mxu0 %v892
        %894 = vmatprep.subr.mxu0 0.0
        %v895 = vand.u32 %v288, 4294901760
        %v896 = vsub.f32 %v288, %v895
        %897 = vmatpush1.msra.mxu0 %v896
        %898 = vmatprep.subr.mxu0 0.0
        %v899 = vand.u32 %v289, 4294901760
        %v900 = vsub.f32 %v289, %v899
        %901 = vmatpush1.msra.mxu0 %v900
        %902 = vmatprep.subr.mxu0 0.0
        %v903 = vand.u32 %v290, 4294901760
        %v904 = vsub.f32 %v290, %v903
        %905 = vmatpush1.msra.mxu0 %v904
        %v906 = vand.u32 %v432, 4294901760
        %v907 = vsub.f32 %v432, %v906
        %908 = vmatprep.mubr.f32.mxu0 %v907
        %v909 = vand.u32 %v430, 4294901760
        %v910 = vsub.f32 %v430, %v909
        %911 = vmatmul.mubr.f32.gmra.mrb[0].mxu0 %v910
        %v912 = vpop.f32.mrb[0].mxu0
        %v913 = vadd.f32 %v775, %v912
        %v914 = vpop.f32.mrb[0].mxu0
        %915 = vdwg.mxu0
        %916 = vmatprep.subr.mxu0 0.0
        %v917 = vand.u32 %v259, 4294901760
        %918 = vmatpush1.msra.mxu0 %v917
        %919 = vmatprep.subr.mxu0 0.0
        %v920 = vand.u32 %v260, 4294901760
        %921 = vmatpush1.msra.mxu0 %v920
        %922 = vmatprep.subr.mxu0 0.0
        %v923 = vand.u32 %v261, 4294901760
        %924 = vmatpush1.msra.mxu0 %v923
        %925 = vmatprep.subr.mxu0 0.0
        %v926 = vand.u32 %v262, 4294901760
        %927 = vmatpush1.msra.mxu0 %v926
        %928 = vmatprep.subr.mxu0 0.0
        %v929 = vand.u32 %v263, 4294901760
        %930 = vmatpush1.msra.mxu0 %v929
        %931 = vmatprep.subr.mxu0 0.0
        %v932 = vand.u32 %v264, 4294901760
        %933 = vmatpush1.msra.mxu0 %v932
        %934 = vmatprep.subr.mxu0 0.0
        %v935 = vand.u32 %v265, 4294901760
        %936 = vmatpush1.msra.mxu0 %v935
        %937 = vmatprep.subr.mxu0 0.0
        %v938 = vand.u32 %v266, 4294901760
        %939 = vmatpush1.msra.mxu0 %v938
        %940 = vmatprep.subr.mxu0 0.0
        %v941 = vand.u32 %v267, 4294901760
        %942 = vmatpush1.msra.mxu0 %v941
        %943 = vmatprep.subr.mxu0 0.0
        %v944 = vand.u32 %v268, 4294901760
        %945 = vmatpush1.msra.mxu0 %v944
        %946 = vmatprep.subr.mxu0 0.0
        %v947 = vand.u32 %v269, 4294901760
        %948 = vmatpush1.msra.mxu0 %v947
        %949 = vmatprep.subr.mxu0 0.0
        %v950 = vand.u32 %v270, 4294901760
        %951 = vmatpush1.msra.mxu0 %v950
        %952 = vmatprep.subr.mxu0 0.0
        %v953 = vand.u32 %v271, 4294901760
        %954 = vmatpush1.msra.mxu0 %v953
        %955 = vmatprep.subr.mxu0 0.0
        %v956 = vand.u32 %v272, 4294901760
        %957 = vmatpush1.msra.mxu0 %v956
        %958 = vmatprep.subr.mxu0 0.0
        %v959 = vand.u32 %v273, 4294901760
        %960 = vmatpush1.msra.mxu0 %v959
        %961 = vmatprep.subr.mxu0 0.0
        %v962 = vand.u32 %v274, 4294901760
        %963 = vmatpush1.msra.mxu0 %v962
        %964 = vmatprep.subr.mxu0 0.0
        %v965 = vand.u32 %v275, 4294901760
        %966 = vmatpush1.msra.mxu0 %v965
        %967 = vmatprep.subr.mxu0 0.0
        %v968 = vand.u32 %v276, 4294901760
        %969 = vmatpush1.msra.mxu0 %v968
        %970 = vmatprep.subr.mxu0 0.0
        %v971 = vand.u32 %v277, 4294901760
        %972 = vmatpush1.msra.mxu0 %v971
        %973 = vmatprep.subr.mxu0 0.0
        %v974 = vand.u32 %v278, 4294901760
        %975 = vmatpush1.msra.mxu0 %v974
        %976 = vmatprep.subr.mxu0 0.0
        %v977 = vand.u32 %v279, 4294901760
        %978 = vmatpush1.msra.mxu0 %v977
        %979 = vmatprep.subr.mxu0 0.0
        %v980 = vand.u32 %v280, 4294901760
        %981 = vmatpush1.msra.mxu0 %v980
        %982 = vmatprep.subr.mxu0 0.0
        %v983 = vand.u32 %v281, 4294901760
        %984 = vmatpush1.msra.mxu0 %v983
        %985 = vmatprep.subr.mxu0 0.0
        %v986 = vand.u32 %v282, 4294901760
        %987 = vmatpush1.msra.mxu0 %v986
        %988 = vmatprep.subr.mxu0 0.0
        %v989 = vand.u32 %v283, 4294901760
        %990 = vmatpush1.msra.mxu0 %v989
        %991 = vmatprep.subr.mxu0 0.0
        %v992 = vand.u32 %v284, 4294901760
        %993 = vmatpush1.msra.mxu0 %v992
        %994 = vmatprep.subr.mxu0 0.0
        %v995 = vand.u32 %v285, 4294901760
        %996 = vmatpush1.msra.mxu0 %v995
        %997 = vmatprep.subr.mxu0 0.0
        %v998 = vand.u32 %v286, 4294901760
        %999 = vmatpush1.msra.mxu0 %v998
        %1000 = vmatprep.subr.mxu0 0.0
        %v1001 = vand.u32 %v287, 4294901760
        %1002 = vmatpush1.msra.mxu0 %v1001
        %1003 = vmatprep.subr.mxu0 0.0
        %v1004 = vand.u32 %v288, 4294901760
        %1005 = vmatpush1.msra.mxu0 %v1004
        %1006 = vmatprep.subr.mxu0 0.0
        %v1007 = vand.u32 %v289, 4294901760
        %1008 = vmatpush1.msra.mxu0 %v1007
        %1009 = vmatprep.subr.mxu0 0.0
        %v1010 = vand.u32 %v290, 4294901760
        %1011 = vmatpush1.msra.mxu0 %v1010
        %v1012 = vand.u32 %v432, 4294901760
        %v1013 = vsub.f32 %v432, %v1012
        %v1014 = vand.u32 %v1013, 4294901760
        %1015 = vmatprep.mubr.f32.mxu0 %v1014
        %v1016 = vand.u32 %v430, 4294901760
        %v1017 = vsub.f32 %v430, %v1016
        %v1018 = vand.u32 %v1017, 4294901760
        %1019 = vmatmul.mubr.f32.gmra.mrb[0].mxu0 %v1018
        %v1020 = vpop.f32.mrb[0].mxu0
        %v1021 = vadd.f32 %v913, %v1020
        %v1022 = vpop.f32.mrb[0].mxu0
        %1023 = vdwg.mxu0
        %1024 = vmatprep.subr.mxu0 0.0
        %v1025 = vand.u32 %v259, 4294901760
        %v1026 = vsub.f32 %v259, %v1025
        %v1027 = vand.u32 %v1026, 4294901760
        %1028 = vmatpush1.msra.mxu0 %v1027
        %1029 = vmatprep.subr.mxu0 0.0
        %v1030 = vand.u32 %v260, 4294901760
        %v1031 = vsub.f32 %v260, %v1030
        %v1032 = vand.u32 %v1031, 4294901760
        %1033 = vmatpush1.msra.mxu0 %v1032
        %1034 = vmatprep.subr.mxu0 0.0
        %v1035 = vand.u32 %v261, 4294901760
        %v1036 = vsub.f32 %v261, %v1035
        %v1037 = vand.u32 %v1036, 4294901760
        %1038 = vmatpush1.msra.mxu0 %v1037
        %1039 = vmatprep.subr.mxu0 0.0
        %v1040 = vand.u32 %v262, 4294901760
        %v1041 = vsub.f32 %v262, %v1040
        %v1042 = vand.u32 %v1041, 4294901760
        %1043 = vmatpush1.msra.mxu0 %v1042
        %1044 = vmatprep.subr.mxu0 0.0
        %v1045 = vand.u32 %v263, 4294901760
        %v1046 = vsub.f32 %v263, %v1045
        %v1047 = vand.u32 %v1046, 4294901760
        %1048 = vmatpush1.msra.mxu0 %v1047
        %1049 = vmatprep.subr.mxu0 0.0
        %v1050 = vand.u32 %v264, 4294901760
        %v1051 = vsub.f32 %v264, %v1050
        %v1052 = vand.u32 %v1051, 4294901760
        %1053 = vmatpush1.msra.mxu0 %v1052
        %1054 = vmatprep.subr.mxu0 0.0
        %v1055 = vand.u32 %v265, 4294901760
        %v1056 = vsub.f32 %v265, %v1055
        %v1057 = vand.u32 %v1056, 4294901760
        %1058 = vmatpush1.msra.mxu0 %v1057
        %1059 = vmatprep.subr.mxu0 0.0
        %v1060 = vand.u32 %v266, 4294901760
        %v1061 = vsub.f32 %v266, %v1060
        %v1062 = vand.u32 %v1061, 4294901760
        %1063 = vmatpush1.msra.mxu0 %v1062
        %1064 = vmatprep.subr.mxu0 0.0
        %v1065 = vand.u32 %v267, 4294901760
        %v1066 = vsub.f32 %v267, %v1065
        %v1067 = vand.u32 %v1066, 4294901760
        %1068 = vmatpush1.msra.mxu0 %v1067
        %1069 = vmatprep.subr.mxu0 0.0
        %v1070 = vand.u32 %v268, 4294901760
        %v1071 = vsub.f32 %v268, %v1070
        %v1072 = vand.u32 %v1071, 4294901760
        %1073 = vmatpush1.msra.mxu0 %v1072
        %1074 = vmatprep.subr.mxu0 0.0
        %v1075 = vand.u32 %v269, 4294901760
        %v1076 = vsub.f32 %v269, %v1075
        %v1077 = vand.u32 %v1076, 4294901760
        %1078 = vmatpush1.msra.mxu0 %v1077
        %1079 = vmatprep.subr.mxu0 0.0
        %v1080 = vand.u32 %v270, 4294901760
        %v1081 = vsub.f32 %v270, %v1080
        %v1082 = vand.u32 %v1081, 4294901760
        %1083 = vmatpush1.msra.mxu0 %v1082
        %1084 = vmatprep.subr.mxu0 0.0
        %v1085 = vand.u32 %v271, 4294901760
        %v1086 = vsub.f32 %v271, %v1085
        %v1087 = vand.u32 %v1086, 4294901760
        %1088 = vmatpush1.msra.mxu0 %v1087
        %1089 = vmatprep.subr.mxu0 0.0
        %v1090 = vand.u32 %v272, 4294901760
        %v1091 = vsub.f32 %v272, %v1090
        %v1092 = vand.u32 %v1091, 4294901760
        %1093 = vmatpush1.msra.mxu0 %v1092
        %1094 = vmatprep.subr.mxu0 0.0
        %v1095 = vand.u32 %v273, 4294901760
        %v1096 = vsub.f32 %v273, %v1095
        %v1097 = vand.u32 %v1096, 4294901760
        %1098 = vmatpush1.msra.mxu0 %v1097
        %1099 = vmatprep.subr.mxu0 0.0
        %v1100 = vand.u32 %v274, 4294901760
        %v1101 = vsub.f32 %v274, %v1100
        %v1102 = vand.u32 %v1101, 4294901760
        %1103 = vmatpush1.msra.mxu0 %v1102
        %1104 = vmatprep.subr.mxu0 0.0
        %v1105 = vand.u32 %v275, 4294901760
        %v1106 = vsub.f32 %v275, %v1105
        %v1107 = vand.u32 %v1106, 4294901760
        %1108 = vmatpush1.msra.mxu0 %v1107
        %1109 = vmatprep.subr.mxu0 0.0
        %v1110 = vand.u32 %v276, 4294901760
        %v1111 = vsub.f32 %v276, %v1110
        %v1112 = vand.u32 %v1111, 4294901760
        %1113 = vmatpush1.msra.mxu0 %v1112
        %1114 = vmatprep.subr.mxu0 0.0
        %v1115 = vand.u32 %v277, 4294901760
        %v1116 = vsub.f32 %v277, %v1115
        %v1117 = vand.u32 %v1116, 4294901760
        %1118 = vmatpush1.msra.mxu0 %v1117
        %1119 = vmatprep.subr.mxu0 0.0
        %v1120 = vand.u32 %v278, 4294901760
        %v1121 = vsub.f32 %v278, %v1120
        %v1122 = vand.u32 %v1121, 4294901760
        %1123 = vmatpush1.msra.mxu0 %v1122
        %1124 = vmatprep.subr.mxu0 0.0
        %v1125 = vand.u32 %v279, 4294901760
        %v1126 = vsub.f32 %v279, %v1125
        %v1127 = vand.u32 %v1126, 4294901760
        %1128 = vmatpush1.msra.mxu0 %v1127
        %1129 = vmatprep.subr.mxu0 0.0
        %v1130 = vand.u32 %v280, 4294901760
        %v1131 = vsub.f32 %v280, %v1130
        %v1132 = vand.u32 %v1131, 4294901760
        %1133 = vmatpush1.msra.mxu0 %v1132
        %1134 = vmatprep.subr.mxu0 0.0
        %v1135 = vand.u32 %v281, 4294901760
        %v1136 = vsub.f32 %v281, %v1135
        %v1137 = vand.u32 %v1136, 4294901760
        %1138 = vmatpush1.msra.mxu0 %v1137
        %1139 = vmatprep.subr.mxu0 0.0
        %v1140 = vand.u32 %v282, 4294901760
        %v1141 = vsub.f32 %v282, %v1140
        %v1142 = vand.u32 %v1141, 4294901760
        %1143 = vmatpush1.msra.mxu0 %v1142
        %1144 = vmatprep.subr.mxu0 0.0
        %v1145 = vand.u32 %v283, 4294901760
        %v1146 = vsub.f32 %v283, %v1145
        %v1147 = vand.u32 %v1146, 4294901760
        %1148 = vmatpush1.msra.mxu0 %v1147
        %1149 = vmatprep.subr.mxu0 0.0
        %v1150 = vand.u32 %v284, 4294901760
        %v1151 = vsub.f32 %v284, %v1150
        %v1152 = vand.u32 %v1151, 4294901760
        %1153 = vmatpush1.msra.mxu0 %v1152
        %1154 = vmatprep.subr.mxu0 0.0
        %v1155 = vand.u32 %v285, 4294901760
        %v1156 = vsub.f32 %v285, %v1155
        %v1157 = vand.u32 %v1156, 4294901760
        %1158 = vmatpush1.msra.mxu0 %v1157
        %1159 = vmatprep.subr.mxu0 0.0
        %v1160 = vand.u32 %v286, 4294901760
        %v1161 = vsub.f32 %v286, %v1160
        %v1162 = vand.u32 %v1161, 4294901760
        %1163 = vmatpush1.msra.mxu0 %v1162
        %1164 = vmatprep.subr.mxu0 0.0
        %v1165 = vand.u32 %v287, 4294901760
        %v1166 = vsub.f32 %v287, %v1165
        %v1167 = vand.u32 %v1166, 4294901760
        %1168 = vmatpush1.msra.mxu0 %v1167
        %1169 = vmatprep.subr.mxu0 0.0
        %v1170 = vand.u32 %v288, 4294901760
        %v1171 = vsub.f32 %v288, %v1170
        %v1172 = vand.u32 %v1171, 4294901760
        %1173 = vmatpush1.msra.mxu0 %v1172
        %1174 = vmatprep.subr.mxu0 0.0
        %v1175 = vand.u32 %v289, 4294901760
        %v1176 = vsub.f32 %v289, %v1175
        %v1177 = vand.u32 %v1176, 4294901760
        %1178 = vmatpush1.msra.mxu0 %v1177
        %1179 = vmatprep.subr.mxu0 0.0
        %v1180 = vand.u32 %v290, 4294901760
        %v1181 = vsub.f32 %v290, %v1180
        %v1182 = vand.u32 %v1181, 4294901760
        %1183 = vmatpush1.msra.mxu0 %v1182
        %v1184 = vand.u32 %v432, 4294901760
        %1185 = vmatprep.mubr.f32.mxu0 %v1184
        %v1186 = vand.u32 %v430, 4294901760
        %1187 = vmatmul.mubr.f32.gmra.mrb[0].mxu0 %v1186
        %v1188 = vpop.f32.mrb[0].mxu0
        %v1189 = vadd.f32 %v1021, %v1188
        %v1190 = vpop.f32.mrb[0].mxu0
        %1191 = vdwg.mxu0
        %1192 = vmatprep.subr.mxu0 0.0
        %v1193 = vand.u32 %v259, 4294901760
        %1194 = vmatpush1.msra.mxu0 %v1193
        %1195 = vmatprep.subr.mxu0 0.0
        %v1196 = vand.u32 %v260, 4294901760
        %1197 = vmatpush1.msra.mxu0 %v1196
        %1198 = vmatprep.subr.mxu0 0.0
        %v1199 = vand.u32 %v261, 4294901760
        %1200 = vmatpush1.msra.mxu0 %v1199
        %1201 = vmatprep.subr.mxu0 0.0
        %v1202 = vand.u32 %v262, 4294901760
        %1203 = vmatpush1.msra.mxu0 %v1202
        %1204 = vmatprep.subr.mxu0 0.0
        %v1205 = vand.u32 %v263, 4294901760
        %1206 = vmatpush1.msra.mxu0 %v1205
        %1207 = vmatprep.subr.mxu0 0.0
        %v1208 = vand.u32 %v264, 4294901760
        %1209 = vmatpush1.msra.mxu0 %v1208
        %1210 = vmatprep.subr.mxu0 0.0
        %v1211 = vand.u32 %v265, 4294901760
        %1212 = vmatpush1.msra.mxu0 %v1211
        %1213 = vmatprep.subr.mxu0 0.0
        %v1214 = vand.u32 %v266, 4294901760
        %1215 = vmatpush1.msra.mxu0 %v1214
        %1216 = vmatprep.subr.mxu0 0.0
        %v1217 = vand.u32 %v267, 4294901760
        %1218 = vmatpush1.msra.mxu0 %v1217
        %1219 = vmatprep.subr.mxu0 0.0
        %v1220 = vand.u32 %v268, 4294901760
        %1221 = vmatpush1.msra.mxu0 %v1220
        %1222 = vmatprep.subr.mxu0 0.0
        %v1223 = vand.u32 %v269, 4294901760
        %1224 = vmatpush1.msra.mxu0 %v1223
        %1225 = vmatprep.subr.mxu0 0.0
        %v1226 = vand.u32 %v270, 4294901760
        %1227 = vmatpush1.msra.mxu0 %v1226
        %1228 = vmatprep.subr.mxu0 0.0
        %v1229 = vand.u32 %v271, 4294901760
        %1230 = vmatpush1.msra.mxu0 %v1229
        %1231 = vmatprep.subr.mxu0 0.0
        %v1232 = vand.u32 %v272, 4294901760
        %1233 = vmatpush1.msra.mxu0 %v1232
        %1234 = vmatprep.subr.mxu0 0.0
        %v1235 = vand.u32 %v273, 4294901760
        %1236 = vmatpush1.msra.mxu0 %v1235
        %1237 = vmatprep.subr.mxu0 0.0
        %v1238 = vand.u32 %v274, 4294901760
        %1239 = vmatpush1.msra.mxu0 %v1238
        %1240 = vmatprep.subr.mxu0 0.0
        %v1241 = vand.u32 %v275, 4294901760
        %1242 = vmatpush1.msra.mxu0 %v1241
        %1243 = vmatprep.subr.mxu0 0.0
        %v1244 = vand.u32 %v276, 4294901760
        %1245 = vmatpush1.msra.mxu0 %v1244
        %1246 = vmatprep.subr.mxu0 0.0
        %v1247 = vand.u32 %v277, 4294901760
        %1248 = vmatpush1.msra.mxu0 %v1247
        %1249 = vmatprep.subr.mxu0 0.0
        %v1250 = vand.u32 %v278, 4294901760
        %1251 = vmatpush1.msra.mxu0 %v1250
        %1252 = vmatprep.subr.mxu0 0.0
        %v1253 = vand.u32 %v279, 4294901760
        %1254 = vmatpush1.msra.mxu0 %v1253
        %1255 = vmatprep.subr.mxu0 0.0
        %v1256 = vand.u32 %v280, 4294901760
        %1257 = vmatpush1.msra.mxu0 %v1256
        %1258 = vmatprep.subr.mxu0 0.0
        %v1259 = vand.u32 %v281, 4294901760
        %1260 = vmatpush1.msra.mxu0 %v1259
        %1261 = vmatprep.subr.mxu0 0.0
        %v1262 = vand.u32 %v282, 4294901760
        %1263 = vmatpush1.msra.mxu0 %v1262
        %1264 = vmatprep.subr.mxu0 0.0
        %v1265 = vand.u32 %v283, 4294901760
        %1266 = vmatpush1.msra.mxu0 %v1265
        %1267 = vmatprep.subr.mxu0 0.0
        %v1268 = vand.u32 %v284, 4294901760
        %1269 = vmatpush1.msra.mxu0 %v1268
        %1270 = vmatprep.subr.mxu0 0.0
        %v1271 = vand.u32 %v285, 4294901760
        %1272 = vmatpush1.msra.mxu0 %v1271
        %1273 = vmatprep.subr.mxu0 0.0
        %v1274 = vand.u32 %v286, 4294901760
        %1275 = vmatpush1.msra.mxu0 %v1274
        %1276 = vmatprep.subr.mxu0 0.0
        %v1277 = vand.u32 %v287, 4294901760
        %1278 = vmatpush1.msra.mxu0 %v1277
        %1279 = vmatprep.subr.mxu0 0.0
        %v1280 = vand.u32 %v288, 4294901760
        %1281 = vmatpush1.msra.mxu0 %v1280
        %1282 = vmatprep.subr.mxu0 0.0
        %v1283 = vand.u32 %v289, 4294901760
        %1284 = vmatpush1.msra.mxu0 %v1283
        %1285 = vmatprep.subr.mxu0 0.0
        %v1286 = vand.u32 %v290, 4294901760
        %1287 = vmatpush1.msra.mxu0 %v1286
        %v1288 = vand.u32 %v432, 4294901760
        %1289 = vmatprep.mubr.f32.mxu0 %v1288
        %v1290 = vand.u32 %v430, 4294901760
        %1291 = vmatmul.mubr.f32.gmra.mrb[0].mxu0 %v1290
        %v1292 = vpop.f32.mrb[0].mxu0
        %v1293 = vadd.f32 %v1189, %v1292
        %v1294 = vpop.f32.mrb[0].mxu0
        %1295 = vdwg.mxu0
        %vm1296 = vcmask 125952
        %1297 = vst.msk [vmem:[%s240] sm:$0xf] %vm1296, %v1293
        %v1298 = vmul.f32 %v356, %v429
        %v1300 = vcombine.high %v1298, %v1298
        %1302 = vmatprep.subr.mxu0 0.0
        %v1303 = vand.u32 %v259, 4294901760
        %1304 = vmatpush1.msra.mxu0 %v1303
        %1305 = vmatprep.subr.mxu0 0.0
        %v1306 = vand.u32 %v260, 4294901760
        %1307 = vmatpush1.msra.mxu0 %v1306
        %1308 = vmatprep.subr.mxu0 0.0
        %v1309 = vand.u32 %v261, 4294901760
        %1310 = vmatpush1.msra.mxu0 %v1309
        %1311 = vmatprep.subr.mxu0 0.0
        %v1312 = vand.u32 %v262, 4294901760
        %1313 = vmatpush1.msra.mxu0 %v1312
        %1314 = vmatprep.subr.mxu0 0.0
        %v1315 = vand.u32 %v263, 4294901760
        %1316 = vmatpush1.msra.mxu0 %v1315
        %1317 = vmatprep.subr.mxu0 0.0
        %v1318 = vand.u32 %v264, 4294901760
        %1319 = vmatpush1.msra.mxu0 %v1318
        %1320 = vmatprep.subr.mxu0 0.0
        %v1321 = vand.u32 %v265, 4294901760
        %1322 = vmatpush1.msra.mxu0 %v1321
        %1323 = vmatprep.subr.mxu0 0.0
        %v1324 = vand.u32 %v266, 4294901760
        %1325 = vmatpush1.msra.mxu0 %v1324
        %1326 = vmatprep.subr.mxu0 0.0
        %v1327 = vand.u32 %v267, 4294901760
        %1328 = vmatpush1.msra.mxu0 %v1327
        %1329 = vmatprep.subr.mxu0 0.0
        %v1330 = vand.u32 %v268, 4294901760
        %1331 = vmatpush1.msra.mxu0 %v1330
        %1332 = vmatprep.subr.mxu0 0.0
        %v1333 = vand.u32 %v269, 4294901760
        %1334 = vmatpush1.msra.mxu0 %v1333
        %1335 = vmatprep.subr.mxu0 0.0
        %v1336 = vand.u32 %v270, 4294901760
        %1337 = vmatpush1.msra.mxu0 %v1336
        %1338 = vmatprep.subr.mxu0 0.0
        %v1339 = vand.u32 %v271, 4294901760
        %1340 = vmatpush1.msra.mxu0 %v1339
        %1341 = vmatprep.subr.mxu0 0.0
        %v1342 = vand.u32 %v272, 4294901760
        %1343 = vmatpush1.msra.mxu0 %v1342
        %1344 = vmatprep.subr.mxu0 0.0
        %v1345 = vand.u32 %v273, 4294901760
        %1346 = vmatpush1.msra.mxu0 %v1345
        %1347 = vmatprep.subr.mxu0 0.0
        %v1348 = vand.u32 %v274, 4294901760
        %1349 = vmatpush1.msra.mxu0 %v1348
        %1350 = vmatprep.subr.mxu0 0.0
        %v1351 = vand.u32 %v275, 4294901760
        %1352 = vmatpush1.msra.mxu0 %v1351
        %1353 = vmatprep.subr.mxu0 0.0
        %v1354 = vand.u32 %v276, 4294901760
        %1355 = vmatpush1.msra.mxu0 %v1354
        %1356 = vmatprep.subr.mxu0 0.0
        %v1357 = vand.u32 %v277, 4294901760
        %1358 = vmatpush1.msra.mxu0 %v1357
        %1359 = vmatprep.subr.mxu0 0.0
        %v1360 = vand.u32 %v278, 4294901760
        %1361 = vmatpush1.msra.mxu0 %v1360
        %1362 = vmatprep.subr.mxu0 0.0
        %v1363 = vand.u32 %v279, 4294901760
        %1364 = vmatpush1.msra.mxu0 %v1363
        %1365 = vmatprep.subr.mxu0 0.0
        %v1366 = vand.u32 %v280, 4294901760
        %1367 = vmatpush1.msra.mxu0 %v1366
        %1368 = vmatprep.subr.mxu0 0.0
        %v1369 = vand.u32 %v281, 4294901760
        %1370 = vmatpush1.msra.mxu0 %v1369
        %1371 = vmatprep.subr.mxu0 0.0
        %v1372 = vand.u32 %v282, 4294901760
        %1373 = vmatpush1.msra.mxu0 %v1372
        %1374 = vmatprep.subr.mxu0 0.0
        %v1375 = vand.u32 %v283, 4294901760
        %1376 = vmatpush1.msra.mxu0 %v1375
        %1377 = vmatprep.subr.mxu0 0.0
        %v1378 = vand.u32 %v284, 4294901760
        %1379 = vmatpush1.msra.mxu0 %v1378
        %1380 = vmatprep.subr.mxu0 0.0
        %v1381 = vand.u32 %v285, 4294901760
        %1382 = vmatpush1.msra.mxu0 %v1381
        %1383 = vmatprep.subr.mxu0 0.0
        %v1384 = vand.u32 %v286, 4294901760
        %1385 = vmatpush1.msra.mxu0 %v1384
        %1386 = vmatprep.subr.mxu0 0.0
        %v1387 = vand.u32 %v287, 4294901760
        %1388 = vmatpush1.msra.mxu0 %v1387
        %1389 = vmatprep.subr.mxu0 0.0
        %v1390 = vand.u32 %v288, 4294901760
        %1391 = vmatpush1.msra.mxu0 %v1390
        %1392 = vmatprep.subr.mxu0 0.0
        %v1393 = vand.u32 %v289, 4294901760
        %1394 = vmatpush1.msra.mxu0 %v1393
        %1395 = vmatprep.subr.mxu0 0.0
        %v1396 = vand.u32 %v290, 4294901760
        %1397 = vmatpush1.msra.mxu0 %v1396
        %v1398 = vand.u32 %v1300, 4294901760
        %v1399 = vsub.f32 %v1300, %v1398
        %v1400 = vand.u32 %v1399, 4294901760
        %v1401 = vsub.f32 %v1399, %v1400
        %v1402 = vand.u32 %v1401, 4294901760
        %1403 = vmatprep.mubr.f32.mxu0 %v1402
        %v1404 = vand.u32 %v1298, 4294901760
        %v1405 = vsub.f32 %v1298, %v1404
        %v1406 = vand.u32 %v1405, 4294901760
        %v1407 = vsub.f32 %v1405, %v1406
        %v1408 = vand.u32 %v1407, 4294901760
        %1409 = vmatmul.mubr.f32.gmra.mrb[0].mxu0 %v1408
        %v1410 = vpop.f32.mrb[0].mxu0
        %v1411 = vadd.f32 0.0, %v1410
        %v1412 = vpop.f32.mrb[0].mxu0
        %1413 = vdwg.mxu0
        %1414 = vmatprep.subr.mxu0 0.0
        %v1415 = vand.u32 %v259, 4294901760
        %v1416 = vsub.f32 %v259, %v1415
        %v1417 = vand.u32 %v1416, 4294901760
        %v1418 = vsub.f32 %v1416, %v1417
        %v1419 = vand.u32 %v1418, 4294901760
        %1420 = vmatpush1.msra.mxu0 %v1419
        %1421 = vmatprep.subr.mxu0 0.0
        %v1422 = vand.u32 %v260, 4294901760
        %v1423 = vsub.f32 %v260, %v1422
        %v1424 = vand.u32 %v1423, 4294901760
        %v1425 = vsub.f32 %v1423, %v1424
        %v1426 = vand.u32 %v1425, 4294901760
        %1427 = vmatpush1.msra.mxu0 %v1426
        %1428 = vmatprep.subr.mxu0 0.0
        %v1429 = vand.u32 %v261, 4294901760
        %v1430 = vsub.f32 %v261, %v1429
        %v1431 = vand.u32 %v1430, 4294901760
        %v1432 = vsub.f32 %v1430, %v1431
        %v1433 = vand.u32 %v1432, 4294901760
        %1434 = vmatpush1.msra.mxu0 %v1433
        %1435 = vmatprep.subr.mxu0 0.0
        %v1436 = vand.u32 %v262, 4294901760
        %v1437 = vsub.f32 %v262, %v1436
        %v1438 = vand.u32 %v1437, 4294901760
        %v1439 = vsub.f32 %v1437, %v1438
        %v1440 = vand.u32 %v1439, 4294901760
        %1441 = vmatpush1.msra.mxu0 %v1440
        %1442 = vmatprep.subr.mxu0 0.0
        %v1443 = vand.u32 %v263, 4294901760
        %v1444 = vsub.f32 %v263, %v1443
        %v1445 = vand.u32 %v1444, 4294901760
        %v1446 = vsub.f32 %v1444, %v1445
        %v1447 = vand.u32 %v1446, 4294901760
        %1448 = vmatpush1.msra.mxu0 %v1447
        %1449 = vmatprep.subr.mxu0 0.0
        %v1450 = vand.u32 %v264, 4294901760
        %v1451 = vsub.f32 %v264, %v1450
        %v1452 = vand.u32 %v1451, 4294901760
        %v1453 = vsub.f32 %v1451, %v1452
        %v1454 = vand.u32 %v1453, 4294901760
        %1455 = vmatpush1.msra.mxu0 %v1454
        %1456 = vmatprep.subr.mxu0 0.0
        %v1457 = vand.u32 %v265, 4294901760
        %v1458 = vsub.f32 %v265, %v1457
        %v1459 = vand.u32 %v1458, 4294901760
        %v1460 = vsub.f32 %v1458, %v1459
        %v1461 = vand.u32 %v1460, 4294901760
        %1462 = vmatpush1.msra.mxu0 %v1461
        %1463 = vmatprep.subr.mxu0 0.0
        %v1464 = vand.u32 %v266, 4294901760
        %v1465 = vsub.f32 %v266, %v1464
        %v1466 = vand.u32 %v1465, 4294901760
        %v1467 = vsub.f32 %v1465, %v1466
        %v1468 = vand.u32 %v1467, 4294901760
        %1469 = vmatpush1.msra.mxu0 %v1468
        %1470 = vmatprep.subr.mxu0 0.0
        %v1471 = vand.u32 %v267, 4294901760
        %v1472 = vsub.f32 %v267, %v1471
        %v1473 = vand.u32 %v1472, 4294901760
        %v1474 = vsub.f32 %v1472, %v1473
        %v1475 = vand.u32 %v1474, 4294901760
        %1476 = vmatpush1.msra.mxu0 %v1475
        %1477 = vmatprep.subr.mxu0 0.0
        %v1478 = vand.u32 %v268, 4294901760
        %v1479 = vsub.f32 %v268, %v1478
        %v1480 = vand.u32 %v1479, 4294901760
        %v1481 = vsub.f32 %v1479, %v1480
        %v1482 = vand.u32 %v1481, 4294901760
        %1483 = vmatpush1.msra.mxu0 %v1482
        %1484 = vmatprep.subr.mxu0 0.0
        %v1485 = vand.u32 %v269, 4294901760
        %v1486 = vsub.f32 %v269, %v1485
        %v1487 = vand.u32 %v1486, 4294901760
        %v1488 = vsub.f32 %v1486, %v1487
        %v1489 = vand.u32 %v1488, 4294901760
        %1490 = vmatpush1.msra.mxu0 %v1489
        %1491 = vmatprep.subr.mxu0 0.0
        %v1492 = vand.u32 %v270, 4294901760
        %v1493 = vsub.f32 %v270, %v1492
        %v1494 = vand.u32 %v1493, 4294901760
        %v1495 = vsub.f32 %v1493, %v1494
        %v1496 = vand.u32 %v1495, 4294901760
        %1497 = vmatpush1.msra.mxu0 %v1496
        %1498 = vmatprep.subr.mxu0 0.0
        %v1499 = vand.u32 %v271, 4294901760
        %v1500 = vsub.f32 %v271, %v1499
        %v1501 = vand.u32 %v1500, 4294901760
        %v1502 = vsub.f32 %v1500, %v1501
        %v1503 = vand.u32 %v1502, 4294901760
        %1504 = vmatpush1.msra.mxu0 %v1503
        %1505 = vmatprep.subr.mxu0 0.0
        %v1506 = vand.u32 %v272, 4294901760
        %v1507 = vsub.f32 %v272, %v1506
        %v1508 = vand.u32 %v1507, 4294901760
        %v1509 = vsub.f32 %v1507, %v1508
        %v1510 = vand.u32 %v1509, 4294901760
        %1511 = vmatpush1.msra.mxu0 %v1510
        %1512 = vmatprep.subr.mxu0 0.0
        %v1513 = vand.u32 %v273, 4294901760
        %v1514 = vsub.f32 %v273, %v1513
        %v1515 = vand.u32 %v1514, 4294901760
        %v1516 = vsub.f32 %v1514, %v1515
        %v1517 = vand.u32 %v1516, 4294901760
        %1518 = vmatpush1.msra.mxu0 %v1517
        %1519 = vmatprep.subr.mxu0 0.0
        %v1520 = vand.u32 %v274, 4294901760
        %v1521 = vsub.f32 %v274, %v1520
        %v1522 = vand.u32 %v1521, 4294901760
        %v1523 = vsub.f32 %v1521, %v1522
        %v1524 = vand.u32 %v1523, 4294901760
        %1525 = vmatpush1.msra.mxu0 %v1524
        %1526 = vmatprep.subr.mxu0 0.0
        %v1527 = vand.u32 %v275, 4294901760
        %v1528 = vsub.f32 %v275, %v1527
        %v1529 = vand.u32 %v1528, 4294901760
        %v1530 = vsub.f32 %v1528, %v1529
        %v1531 = vand.u32 %v1530, 4294901760
        %1532 = vmatpush1.msra.mxu0 %v1531
        %1533 = vmatprep.subr.mxu0 0.0
        %v1534 = vand.u32 %v276, 4294901760
        %v1535 = vsub.f32 %v276, %v1534
        %v1536 = vand.u32 %v1535, 4294901760
        %v1537 = vsub.f32 %v1535, %v1536
        %v1538 = vand.u32 %v1537, 4294901760
        %1539 = vmatpush1.msra.mxu0 %v1538
        %1540 = vmatprep.subr.mxu0 0.0
        %v1541 = vand.u32 %v277, 4294901760
        %v1542 = vsub.f32 %v277, %v1541
        %v1543 = vand.u32 %v1542, 4294901760
        %v1544 = vsub.f32 %v1542, %v1543
        %v1545 = vand.u32 %v1544, 4294901760
        %1546 = vmatpush1.msra.mxu0 %v1545
        %1547 = vmatprep.subr.mxu0 0.0
        %v1548 = vand.u32 %v278, 4294901760
        %v1549 = vsub.f32 %v278, %v1548
        %v1550 = vand.u32 %v1549, 4294901760
        %v1551 = vsub.f32 %v1549, %v1550
        %v1552 = vand.u32 %v1551, 4294901760
        %1553 = vmatpush1.msra.mxu0 %v1552
        %1554 = vmatprep.subr.mxu0 0.0
        %v1555 = vand.u32 %v279, 4294901760
        %v1556 = vsub.f32 %v279, %v1555
        %v1557 = vand.u32 %v1556, 4294901760
        %v1558 = vsub.f32 %v1556, %v1557
        %v1559 = vand.u32 %v1558, 4294901760
        %1560 = vmatpush1.msra.mxu0 %v1559
        %1561 = vmatprep.subr.mxu0 0.0
        %v1562 = vand.u32 %v280, 4294901760
        %v1563 = vsub.f32 %v280, %v1562
        %v1564 = vand.u32 %v1563, 4294901760
        %v1565 = vsub.f32 %v1563, %v1564
        %v1566 = vand.u32 %v1565, 4294901760
        %1567 = vmatpush1.msra.mxu0 %v1566
        %1568 = vmatprep.subr.mxu0 0.0
        %v1569 = vand.u32 %v281, 4294901760
        %v1570 = vsub.f32 %v281, %v1569
        %v1571 = vand.u32 %v1570, 4294901760
        %v1572 = vsub.f32 %v1570, %v1571
        %v1573 = vand.u32 %v1572, 4294901760
        %1574 = vmatpush1.msra.mxu0 %v1573
        %1575 = vmatprep.subr.mxu0 0.0
        %v1576 = vand.u32 %v282, 4294901760
        %v1577 = vsub.f32 %v282, %v1576
        %v1578 = vand.u32 %v1577, 4294901760
        %v1579 = vsub.f32 %v1577, %v1578
        %v1580 = vand.u32 %v1579, 4294901760
        %1581 = vmatpush1.msra.mxu0 %v1580
        %1582 = vmatprep.subr.mxu0 0.0
        %v1583 = vand.u32 %v283, 4294901760
        %v1584 = vsub.f32 %v283, %v1583
        %v1585 = vand.u32 %v1584, 4294901760
        %v1586 = vsub.f32 %v1584, %v1585
        %v1587 = vand.u32 %v1586, 4294901760
        %1588 = vmatpush1.msra.mxu0 %v1587
        %1589 = vmatprep.subr.mxu0 0.0
        %v1590 = vand.u32 %v284, 4294901760
        %v1591 = vsub.f32 %v284, %v1590
        %v1592 = vand.u32 %v1591, 4294901760
        %v1593 = vsub.f32 %v1591, %v1592
        %v1594 = vand.u32 %v1593, 4294901760
        %1595 = vmatpush1.msra.mxu0 %v1594
        %1596 = vmatprep.subr.mxu0 0.0
        %v1597 = vand.u32 %v285, 4294901760
        %v1598 = vsub.f32 %v285, %v1597
        %v1599 = vand.u32 %v1598, 4294901760
        %v1600 = vsub.f32 %v1598, %v1599
        %v1601 = vand.u32 %v1600, 4294901760
        %1602 = vmatpush1.msra.mxu0 %v1601
        %1603 = vmatprep.subr.mxu0 0.0
        %v1604 = vand.u32 %v286, 4294901760
        %v1605 = vsub.f32 %v286, %v1604
        %v1606 = vand.u32 %v1605, 4294901760
        %v1607 = vsub.f32 %v1605, %v1606
        %v1608 = vand.u32 %v1607, 4294901760
        %1609 = vmatpush1.msra.mxu0 %v1608
        %1610 = vmatprep.subr.mxu0 0.0
        %v1611 = vand.u32 %v287, 4294901760
        %v1612 = vsub.f32 %v287, %v1611
        %v1613 = vand.u32 %v1612, 4294901760
        %v1614 = vsub.f32 %v1612, %v1613
        %v1615 = vand.u32 %v1614, 4294901760
        %1616 = vmatpush1.msra.mxu0 %v1615
        %1617 = vmatprep.subr.mxu0 0.0
        %v1618 = vand.u32 %v288, 4294901760
        %v1619 = vsub.f32 %v288, %v1618
        %v1620 = vand.u32 %v1619, 4294901760
        %v1621 = vsub.f32 %v1619, %v1620
        %v1622 = vand.u32 %v1621, 4294901760
        %1623 = vmatpush1.msra.mxu0 %v1622
        %1624 = vmatprep.subr.mxu0 0.0
        %v1625 = vand.u32 %v289, 4294901760
        %v1626 = vsub.f32 %v289, %v1625
        %v1627 = vand.u32 %v1626, 4294901760
        %v1628 = vsub.f32 %v1626, %v1627
        %v1629 = vand.u32 %v1628, 4294901760
        %1630 = vmatpush1.msra.mxu0 %v1629
        %1631 = vmatprep.subr.mxu0 0.0
        %v1632 = vand.u32 %v290, 4294901760
        %v1633 = vsub.f32 %v290, %v1632
        %v1634 = vand.u32 %v1633, 4294901760
        %v1635 = vsub.f32 %v1633, %v1634
        %v1636 = vand.u32 %v1635, 4294901760
        %1637 = vmatpush1.msra.mxu0 %v1636
        %v1638 = vand.u32 %v1300, 4294901760
        %1639 = vmatprep.mubr.f32.mxu0 %v1638
        %v1640 = vand.u32 %v1298, 4294901760
        %1641 = vmatmul.mubr.f32.gmra.mrb[0].mxu0 %v1640
        %v1642 = vpop.f32.mrb[0].mxu0
        %v1643 = vadd.f32 %v1411, %v1642
        %v1644 = vpop.f32.mrb[0].mxu0
        %1645 = vdwg.mxu0
        %1646 = vmatprep.subr.mxu0 0.0
        %v1647 = vand.u32 %v259, 4294901760
        %v1648 = vsub.f32 %v259, %v1647
        %1649 = vmatpush1.msra.mxu0 %v1648
        %1650 = vmatprep.subr.mxu0 0.0
        %v1651 = vand.u32 %v260, 4294901760
        %v1652 = vsub.f32 %v260, %v1651
        %1653 = vmatpush1.msra.mxu0 %v1652
        %1654 = vmatprep.subr.mxu0 0.0
        %v1655 = vand.u32 %v261, 4294901760
        %v1656 = vsub.f32 %v261, %v1655
        %1657 = vmatpush1.msra.mxu0 %v1656
        %1658 = vmatprep.subr.mxu0 0.0
        %v1659 = vand.u32 %v262, 4294901760
        %v1660 = vsub.f32 %v262, %v1659
        %1661 = vmatpush1.msra.mxu0 %v1660
        %1662 = vmatprep.subr.mxu0 0.0
        %v1663 = vand.u32 %v263, 4294901760
        %v1664 = vsub.f32 %v263, %v1663
        %1665 = vmatpush1.msra.mxu0 %v1664
        %1666 = vmatprep.subr.mxu0 0.0
        %v1667 = vand.u32 %v264, 4294901760
        %v1668 = vsub.f32 %v264, %v1667
        %1669 = vmatpush1.msra.mxu0 %v1668
        %1670 = vmatprep.subr.mxu0 0.0
        %v1671 = vand.u32 %v265, 4294901760
        %v1672 = vsub.f32 %v265, %v1671
        %1673 = vmatpush1.msra.mxu0 %v1672
        %1674 = vmatprep.subr.mxu0 0.0
        %v1675 = vand.u32 %v266, 4294901760
        %v1676 = vsub.f32 %v266, %v1675
        %1677 = vmatpush1.msra.mxu0 %v1676
        %1678 = vmatprep.subr.mxu0 0.0
        %v1679 = vand.u32 %v267, 4294901760
        %v1680 = vsub.f32 %v267, %v1679
        %1681 = vmatpush1.msra.mxu0 %v1680
        %1682 = vmatprep.subr.mxu0 0.0
        %v1683 = vand.u32 %v268, 4294901760
        %v1684 = vsub.f32 %v268, %v1683
        %1685 = vmatpush1.msra.mxu0 %v1684
        %1686 = vmatprep.subr.mxu0 0.0
        %v1687 = vand.u32 %v269, 4294901760
        %v1688 = vsub.f32 %v269, %v1687
        %1689 = vmatpush1.msra.mxu0 %v1688
        %1690 = vmatprep.subr.mxu0 0.0
        %v1691 = vand.u32 %v270, 4294901760
        %v1692 = vsub.f32 %v270, %v1691
        %1693 = vmatpush1.msra.mxu0 %v1692
        %1694 = vmatprep.subr.mxu0 0.0
        %v1695 = vand.u32 %v271, 4294901760
        %v1696 = vsub.f32 %v271, %v1695
        %1697 = vmatpush1.msra.mxu0 %v1696
        %1698 = vmatprep.subr.mxu0 0.0
        %v1699 = vand.u32 %v272, 4294901760
        %v1700 = vsub.f32 %v272, %v1699
        %1701 = vmatpush1.msra.mxu0 %v1700
        %1702 = vmatprep.subr.mxu0 0.0
        %v1703 = vand.u32 %v273, 4294901760
        %v1704 = vsub.f32 %v273, %v1703
        %1705 = vmatpush1.msra.mxu0 %v1704
        %1706 = vmatprep.subr.mxu0 0.0
        %v1707 = vand.u32 %v274, 4294901760
        %v1708 = vsub.f32 %v274, %v1707
        %1709 = vmatpush1.msra.mxu0 %v1708
        %1710 = vmatprep.subr.mxu0 0.0
        %v1711 = vand.u32 %v275, 4294901760
        %v1712 = vsub.f32 %v275, %v1711
        %1713 = vmatpush1.msra.mxu0 %v1712
        %1714 = vmatprep.subr.mxu0 0.0
        %v1715 = vand.u32 %v276, 4294901760
        %v1716 = vsub.f32 %v276, %v1715
        %1717 = vmatpush1.msra.mxu0 %v1716
        %1718 = vmatprep.subr.mxu0 0.0
        %v1719 = vand.u32 %v277, 4294901760
        %v1720 = vsub.f32 %v277, %v1719
        %1721 = vmatpush1.msra.mxu0 %v1720
        %1722 = vmatprep.subr.mxu0 0.0
        %v1723 = vand.u32 %v278, 4294901760
        %v1724 = vsub.f32 %v278, %v1723
        %1725 = vmatpush1.msra.mxu0 %v1724
        %1726 = vmatprep.subr.mxu0 0.0
        %v1727 = vand.u32 %v279, 4294901760
        %v1728 = vsub.f32 %v279, %v1727
        %1729 = vmatpush1.msra.mxu0 %v1728
        %1730 = vmatprep.subr.mxu0 0.0
        %v1731 = vand.u32 %v280, 4294901760
        %v1732 = vsub.f32 %v280, %v1731
        %1733 = vmatpush1.msra.mxu0 %v1732
        %1734 = vmatprep.subr.mxu0 0.0
        %v1735 = vand.u32 %v281, 4294901760
        %v1736 = vsub.f32 %v281, %v1735
        %1737 = vmatpush1.msra.mxu0 %v1736
        %1738 = vmatprep.subr.mxu0 0.0
        %v1739 = vand.u32 %v282, 4294901760
        %v1740 = vsub.f32 %v282, %v1739
        %1741 = vmatpush1.msra.mxu0 %v1740
        %1742 = vmatprep.subr.mxu0 0.0
        %v1743 = vand.u32 %v283, 4294901760
        %v1744 = vsub.f32 %v283, %v1743
        %1745 = vmatpush1.msra.mxu0 %v1744
        %1746 = vmatprep.subr.mxu0 0.0
        %v1747 = vand.u32 %v284, 4294901760
        %v1748 = vsub.f32 %v284, %v1747
        %1749 = vmatpush1.msra.mxu0 %v1748
        %1750 = vmatprep.subr.mxu0 0.0
        %v1751 = vand.u32 %v285, 4294901760
        %v1752 = vsub.f32 %v285, %v1751
        %1753 = vmatpush1.msra.mxu0 %v1752
        %1754 = vmatprep.subr.mxu0 0.0
        %v1755 = vand.u32 %v286, 4294901760
        %v1756 = vsub.f32 %v286, %v1755
        %1757 = vmatpush1.msra.mxu0 %v1756
        %1758 = vmatprep.subr.mxu0 0.0
        %v1759 = vand.u32 %v287, 4294901760
        %v1760 = vsub.f32 %v287, %v1759
        %1761 = vmatpush1.msra.mxu0 %v1760
        %1762 = vmatprep.subr.mxu0 0.0
        %v1763 = vand.u32 %v288, 4294901760
        %v1764 = vsub.f32 %v288, %v1763
        %1765 = vmatpush1.msra.mxu0 %v1764
        %1766 = vmatprep.subr.mxu0 0.0
        %v1767 = vand.u32 %v289, 4294901760
        %v1768 = vsub.f32 %v289, %v1767
        %1769 = vmatpush1.msra.mxu0 %v1768
        %1770 = vmatprep.subr.mxu0 0.0
        %v1771 = vand.u32 %v290, 4294901760
        %v1772 = vsub.f32 %v290, %v1771
        %1773 = vmatpush1.msra.mxu0 %v1772
        %v1774 = vand.u32 %v1300, 4294901760
        %v1775 = vsub.f32 %v1300, %v1774
        %1776 = vmatprep.mubr.f32.mxu0 %v1775
        %v1777 = vand.u32 %v1298, 4294901760
        %v1778 = vsub.f32 %v1298, %v1777
        %1779 = vmatmul.mubr.f32.gmra.mrb[0].mxu0 %v1778
        %v1780 = vpop.f32.mrb[0].mxu0
        %v1781 = vadd.f32 %v1643, %v1780
        %v1782 = vpop.f32.mrb[0].mxu0
        %1783 = vdwg.mxu0
        %1784 = vmatprep.subr.mxu0 0.0
        %v1785 = vand.u32 %v259, 4294901760
        %1786 = vmatpush1.msra.mxu0 %v1785
        %1787 = vmatprep.subr.mxu0 0.0
        %v1788 = vand.u32 %v260, 4294901760
        %1789 = vmatpush1.msra.mxu0 %v1788
        %1790 = vmatprep.subr.mxu0 0.0
        %v1791 = vand.u32 %v261, 4294901760
        %1792 = vmatpush1.msra.mxu0 %v1791
        %1793 = vmatprep.subr.mxu0 0.0
        %v1794 = vand.u32 %v262, 4294901760
        %1795 = vmatpush1.msra.mxu0 %v1794
        %1796 = vmatprep.subr.mxu0 0.0
        %v1797 = vand.u32 %v263, 4294901760
        %1798 = vmatpush1.msra.mxu0 %v1797
        %1799 = vmatprep.subr.mxu0 0.0
        %v1800 = vand.u32 %v264, 4294901760
        %1801 = vmatpush1.msra.mxu0 %v1800
        %1802 = vmatprep.subr.mxu0 0.0
        %v1803 = vand.u32 %v265, 4294901760
        %1804 = vmatpush1.msra.mxu0 %v1803
        %1805 = vmatprep.subr.mxu0 0.0
        %v1806 = vand.u32 %v266, 4294901760
        %1807 = vmatpush1.msra.mxu0 %v1806
        %1808 = vmatprep.subr.mxu0 0.0
        %v1809 = vand.u32 %v267, 4294901760
        %1810 = vmatpush1.msra.mxu0 %v1809
        %1811 = vmatprep.subr.mxu0 0.0
        %v1812 = vand.u32 %v268, 4294901760
        %1813 = vmatpush1.msra.mxu0 %v1812
        %1814 = vmatprep.subr.mxu0 0.0
        %v1815 = vand.u32 %v269, 4294901760
        %1816 = vmatpush1.msra.mxu0 %v1815
        %1817 = vmatprep.subr.mxu0 0.0
        %v1818 = vand.u32 %v270, 4294901760
        %1819 = vmatpush1.msra.mxu0 %v1818
        %1820 = vmatprep.subr.mxu0 0.0
        %v1821 = vand.u32 %v271, 4294901760
        %1822 = vmatpush1.msra.mxu0 %v1821
        %1823 = vmatprep.subr.mxu0 0.0
        %v1824 = vand.u32 %v272, 4294901760
        %1825 = vmatpush1.msra.mxu0 %v1824
        %1826 = vmatprep.subr.mxu0 0.0
        %v1827 = vand.u32 %v273, 4294901760
        %1828 = vmatpush1.msra.mxu0 %v1827
        %1829 = vmatprep.subr.mxu0 0.0
        %v1830 = vand.u32 %v274, 4294901760
        %1831 = vmatpush1.msra.mxu0 %v1830
        %1832 = vmatprep.subr.mxu0 0.0
        %v1833 = vand.u32 %v275, 4294901760
        %1834 = vmatpush1.msra.mxu0 %v1833
        %1835 = vmatprep.subr.mxu0 0.0
        %v1836 = vand.u32 %v276, 4294901760
        %1837 = vmatpush1.msra.mxu0 %v1836
        %1838 = vmatprep.subr.mxu0 0.0
        %v1839 = vand.u32 %v277, 4294901760
        %1840 = vmatpush1.msra.mxu0 %v1839
        %1841 = vmatprep.subr.mxu0 0.0
        %v1842 = vand.u32 %v278, 4294901760
        %1843 = vmatpush1.msra.mxu0 %v1842
        %1844 = vmatprep.subr.mxu0 0.0
        %v1845 = vand.u32 %v279, 4294901760
        %1846 = vmatpush1.msra.mxu0 %v1845
        %1847 = vmatprep.subr.mxu0 0.0
        %v1848 = vand.u32 %v280, 4294901760
        %1849 = vmatpush1.msra.mxu0 %v1848
        %1850 = vmatprep.subr.mxu0 0.0
        %v1851 = vand.u32 %v281, 4294901760
        %1852 = vmatpush1.msra.mxu0 %v1851
        %1853 = vmatprep.subr.mxu0 0.0
        %v1854 = vand.u32 %v282, 4294901760
        %1855 = vmatpush1.msra.mxu0 %v1854
        %1856 = vmatprep.subr.mxu0 0.0
        %v1857 = vand.u32 %v283, 4294901760
        %1858 = vmatpush1.msra.mxu0 %v1857
        %1859 = vmatprep.subr.mxu0 0.0
        %v1860 = vand.u32 %v284, 4294901760
        %1861 = vmatpush1.msra.mxu0 %v1860
        %1862 = vmatprep.subr.mxu0 0.0
        %v1863 = vand.u32 %v285, 4294901760
        %1864 = vmatpush1.msra.mxu0 %v1863
        %1865 = vmatprep.subr.mxu0 0.0
        %v1866 = vand.u32 %v286, 4294901760
        %1867 = vmatpush1.msra.mxu0 %v1866
        %1868 = vmatprep.subr.mxu0 0.0
        %v1869 = vand.u32 %v287, 4294901760
        %1870 = vmatpush1.msra.mxu0 %v1869
        %1871 = vmatprep.subr.mxu0 0.0
        %v1872 = vand.u32 %v288, 4294901760
        %1873 = vmatpush1.msra.mxu0 %v1872
        %1874 = vmatprep.subr.mxu0 0.0
        %v1875 = vand.u32 %v289, 4294901760
        %1876 = vmatpush1.msra.mxu0 %v1875
        %1877 = vmatprep.subr.mxu0 0.0
        %v1878 = vand.u32 %v290, 4294901760
        %1879 = vmatpush1.msra.mxu0 %v1878
        %v1880 = vand.u32 %v1300, 4294901760
        %v1881 = vsub.f32 %v1300, %v1880
        %v1882 = vand.u32 %v1881, 4294901760
        %1883 = vmatprep.mubr.f32.mxu0 %v1882
        %v1884 = vand.u32 %v1298, 4294901760
        %v1885 = vsub.f32 %v1298, %v1884
        %v1886 = vand.u32 %v1885, 4294901760
        %1887 = vmatmul.mubr.f32.gmra.mrb[0].mxu0 %v1886
        %v1888 = vpop.f32.mrb[0].mxu0
        %v1889 = vadd.f32 %v1781, %v1888
        %v1890 = vpop.f32.mrb[0].mxu0
        %1891 = vdwg.mxu0
        %1892 = vmatprep.subr.mxu0 0.0
        %v1893 = vand.u32 %v259, 4294901760
        %v1894 = vsub.f32 %v259, %v1893
        %v1895 = vand.u32 %v1894, 4294901760
        %1896 = vmatpush1.msra.mxu0 %v1895
        %1897 = vmatprep.subr.mxu0 0.0
        %v1898 = vand.u32 %v260, 4294901760
        %v1899 = vsub.f32 %v260, %v1898
        %v1900 = vand.u32 %v1899, 4294901760
        %1901 = vmatpush1.msra.mxu0 %v1900
        %1902 = vmatprep.subr.mxu0 0.0
        %v1903 = vand.u32 %v261, 4294901760
        %v1904 = vsub.f32 %v261, %v1903
        %v1905 = vand.u32 %v1904, 4294901760
        %1906 = vmatpush1.msra.mxu0 %v1905
        %1907 = vmatprep.subr.mxu0 0.0
        %v1908 = vand.u32 %v262, 4294901760
        %v1909 = vsub.f32 %v262, %v1908
        %v1910 = vand.u32 %v1909, 4294901760
        %1911 = vmatpush1.msra.mxu0 %v1910
        %1912 = vmatprep.subr.mxu0 0.0
        %v1913 = vand.u32 %v263, 4294901760
        %v1914 = vsub.f32 %v263, %v1913
        %v1915 = vand.u32 %v1914, 4294901760
        %1916 = vmatpush1.msra.mxu0 %v1915
        %1917 = vmatprep.subr.mxu0 0.0
        %v1918 = vand.u32 %v264, 4294901760
        %v1919 = vsub.f32 %v264, %v1918
        %v1920 = vand.u32 %v1919, 4294901760
        %1921 = vmatpush1.msra.mxu0 %v1920
        %1922 = vmatprep.subr.mxu0 0.0
        %v1923 = vand.u32 %v265, 4294901760
        %v1924 = vsub.f32 %v265, %v1923
        %v1925 = vand.u32 %v1924, 4294901760
        %1926 = vmatpush1.msra.mxu0 %v1925
        %1927 = vmatprep.subr.mxu0 0.0
        %v1928 = vand.u32 %v266, 4294901760
        %v1929 = vsub.f32 %v266, %v1928
        %v1930 = vand.u32 %v1929, 4294901760
        %1931 = vmatpush1.msra.mxu0 %v1930
        %1932 = vmatprep.subr.mxu0 0.0
        %v1933 = vand.u32 %v267, 4294901760
        %v1934 = vsub.f32 %v267, %v1933
        %v1935 = vand.u32 %v1934, 4294901760
        %1936 = vmatpush1.msra.mxu0 %v1935
        %1937 = vmatprep.subr.mxu0 0.0
        %v1938 = vand.u32 %v268, 4294901760
        %v1939 = vsub.f32 %v268, %v1938
        %v1940 = vand.u32 %v1939, 4294901760
        %1941 = vmatpush1.msra.mxu0 %v1940
        %1942 = vmatprep.subr.mxu0 0.0
        %v1943 = vand.u32 %v269, 4294901760
        %v1944 = vsub.f32 %v269, %v1943
        %v1945 = vand.u32 %v1944, 4294901760
        %1946 = vmatpush1.msra.mxu0 %v1945
        %1947 = vmatprep.subr.mxu0 0.0
        %v1948 = vand.u32 %v270, 4294901760
        %v1949 = vsub.f32 %v270, %v1948
        %v1950 = vand.u32 %v1949, 4294901760
        %1951 = vmatpush1.msra.mxu0 %v1950
        %1952 = vmatprep.subr.mxu0 0.0
        %v1953 = vand.u32 %v271, 4294901760
        %v1954 = vsub.f32 %v271, %v1953
        %v1955 = vand.u32 %v1954, 4294901760
        %1956 = vmatpush1.msra.mxu0 %v1955
        %1957 = vmatprep.subr.mxu0 0.0
        %v1958 = vand.u32 %v272, 4294901760
        %v1959 = vsub.f32 %v272, %v1958
        %v1960 = vand.u32 %v1959, 4294901760
        %1961 = vmatpush1.msra.mxu0 %v1960
        %1962 = vmatprep.subr.mxu0 0.0
        %v1963 = vand.u32 %v273, 4294901760
        %v1964 = vsub.f32 %v273, %v1963
        %v1965 = vand.u32 %v1964, 4294901760
        %1966 = vmatpush1.msra.mxu0 %v1965
        %1967 = vmatprep.subr.mxu0 0.0
        %v1968 = vand.u32 %v274, 4294901760
        %v1969 = vsub.f32 %v274, %v1968
        %v1970 = vand.u32 %v1969, 4294901760
        %1971 = vmatpush1.msra.mxu0 %v1970
        %1972 = vmatprep.subr.mxu0 0.0
        %v1973 = vand.u32 %v275, 4294901760
        %v1974 = vsub.f32 %v275, %v1973
        %v1975 = vand.u32 %v1974, 4294901760
        %1976 = vmatpush1.msra.mxu0 %v1975
        %1977 = vmatprep.subr.mxu0 0.0
        %v1978 = vand.u32 %v276, 4294901760
        %v1979 = vsub.f32 %v276, %v1978
        %v1980 = vand.u32 %v1979, 4294901760
        %1981 = vmatpush1.msra.mxu0 %v1980
        %1982 = vmatprep.subr.mxu0 0.0
        %v1983 = vand.u32 %v277, 4294901760
        %v1984 = vsub.f32 %v277, %v1983
        %v1985 = vand.u32 %v1984, 4294901760
        %1986 = vmatpush1.msra.mxu0 %v1985
        %1987 = vmatprep.subr.mxu0 0.0
        %v1988 = vand.u32 %v278, 4294901760
        %v1989 = vsub.f32 %v278, %v1988
        %v1990 = vand.u32 %v1989, 4294901760
        %1991 = vmatpush1.msra.mxu0 %v1990
        %1992 = vmatprep.subr.mxu0 0.0
        %v1993 = vand.u32 %v279, 4294901760
        %v1994 = vsub.f32 %v279, %v1993
        %v1995 = vand.u32 %v1994, 4294901760
        %1996 = vmatpush1.msra.mxu0 %v1995
        %1997 = vmatprep.subr.mxu0 0.0
        %v1998 = vand.u32 %v280, 4294901760
        %v1999 = vsub.f32 %v280, %v1998
        %v2000 = vand.u32 %v1999, 4294901760
        %2001 = vmatpush1.msra.mxu0 %v2000
        %2002 = vmatprep.subr.mxu0 0.0
        %v2003 = vand.u32 %v281, 4294901760
        %v2004 = vsub.f32 %v281, %v2003
        %v2005 = vand.u32 %v2004, 4294901760
        %2006 = vmatpush1.msra.mxu0 %v2005
        %2007 = vmatprep.subr.mxu0 0.0
        %v2008 = vand.u32 %v282, 4294901760
        %v2009 = vsub.f32 %v282, %v2008
        %v2010 = vand.u32 %v2009, 4294901760
        %2011 = vmatpush1.msra.mxu0 %v2010
        %2012 = vmatprep.subr.mxu0 0.0
        %v2013 = vand.u32 %v283, 4294901760
        %v2014 = vsub.f32 %v283, %v2013
        %v2015 = vand.u32 %v2014, 4294901760
        %2016 = vmatpush1.msra.mxu0 %v2015
        %2017 = vmatprep.subr.mxu0 0.0
        %v2018 = vand.u32 %v284, 4294901760
        %v2019 = vsub.f32 %v284, %v2018
        %v2020 = vand.u32 %v2019, 4294901760
        %2021 = vmatpush1.msra.mxu0 %v2020
        %2022 = vmatprep.subr.mxu0 0.0
        %v2023 = vand.u32 %v285, 4294901760
        %v2024 = vsub.f32 %v285, %v2023
        %v2025 = vand.u32 %v2024, 4294901760
        %2026 = vmatpush1.msra.mxu0 %v2025
        %2027 = vmatprep.subr.mxu0 0.0
        %v2028 = vand.u32 %v286, 4294901760
        %v2029 = vsub.f32 %v286, %v2028
        %v2030 = vand.u32 %v2029, 4294901760
        %2031 = vmatpush1.msra.mxu0 %v2030
        %2032 = vmatprep.subr.mxu0 0.0
        %v2033 = vand.u32 %v287, 4294901760
        %v2034 = vsub.f32 %v287, %v2033
        %v2035 = vand.u32 %v2034, 4294901760
        %2036 = vmatpush1.msra.mxu0 %v2035
        %2037 = vmatprep.subr.mxu0 0.0
        %v2038 = vand.u32 %v288, 4294901760
        %v2039 = vsub.f32 %v288, %v2038
        %v2040 = vand.u32 %v2039, 4294901760
        %2041 = vmatpush1.msra.mxu0 %v2040
        %2042 = vmatprep.subr.mxu0 0.0
        %v2043 = vand.u32 %v289, 4294901760
        %v2044 = vsub.f32 %v289, %v2043
        %v2045 = vand.u32 %v2044, 4294901760
        %2046 = vmatpush1.msra.mxu0 %v2045
        %2047 = vmatprep.subr.mxu0 0.0
        %v2048 = vand.u32 %v290, 4294901760
        %v2049 = vsub.f32 %v290, %v2048
        %v2050 = vand.u32 %v2049, 4294901760
        %2051 = vmatpush1.msra.mxu0 %v2050
        %v2052 = vand.u32 %v1300, 4294901760
        %2053 = vmatprep.mubr.f32.mxu0 %v2052
        %v2054 = vand.u32 %v1298, 4294901760
        %2055 = vmatmul.mubr.f32.gmra.mrb[0].mxu0 %v2054
        %v2056 = vpop.f32.mrb[0].mxu0
        %v2057 = vadd.f32 %v1889, %v2056
        %v2058 = vpop.f32.mrb[0].mxu0
        %2059 = vdwg.mxu0
        %2060 = vmatprep.subr.mxu0 0.0
        %v2061 = vand.u32 %v259, 4294901760
        %2062 = vmatpush1.msra.mxu0 %v2061
        %2063 = vmatprep.subr.mxu0 0.0
        %v2064 = vand.u32 %v260, 4294901760
        %2065 = vmatpush1.msra.mxu0 %v2064
        %2066 = vmatprep.subr.mxu0 0.0
        %v2067 = vand.u32 %v261, 4294901760
        %2068 = vmatpush1.msra.mxu0 %v2067
        %2069 = vmatprep.subr.mxu0 0.0
        %v2070 = vand.u32 %v262, 4294901760
        %2071 = vmatpush1.msra.mxu0 %v2070
        %2072 = vmatprep.subr.mxu0 0.0
        %v2073 = vand.u32 %v263, 4294901760
        %2074 = vmatpush1.msra.mxu0 %v2073
        %2075 = vmatprep.subr.mxu0 0.0
        %v2076 = vand.u32 %v264, 4294901760
        %2077 = vmatpush1.msra.mxu0 %v2076
        %2078 = vmatprep.subr.mxu0 0.0
        %v2079 = vand.u32 %v265, 4294901760
        %2080 = vmatpush1.msra.mxu0 %v2079
        %2081 = vmatprep.subr.mxu0 0.0
        %v2082 = vand.u32 %v266, 4294901760
        %2083 = vmatpush1.msra.mxu0 %v2082
        %2084 = vmatprep.subr.mxu0 0.0
        %v2085 = vand.u32 %v267, 4294901760
        %2086 = vmatpush1.msra.mxu0 %v2085
        %2087 = vmatprep.subr.mxu0 0.0
        %v2088 = vand.u32 %v268, 4294901760
        %2089 = vmatpush1.msra.mxu0 %v2088
        %2090 = vmatprep.subr.mxu0 0.0
        %v2091 = vand.u32 %v269, 4294901760
        %2092 = vmatpush1.msra.mxu0 %v2091
        %2093 = vmatprep.subr.mxu0 0.0
        %v2094 = vand.u32 %v270, 4294901760
        %2095 = vmatpush1.msra.mxu0 %v2094
        %2096 = vmatprep.subr.mxu0 0.0
        %v2097 = vand.u32 %v271, 4294901760
        %2098 = vmatpush1.msra.mxu0 %v2097
        %2099 = vmatprep.subr.mxu0 0.0
        %v2100 = vand.u32 %v272, 4294901760
        %2101 = vmatpush1.msra.mxu0 %v2100
        %2102 = vmatprep.subr.mxu0 0.0
        %v2103 = vand.u32 %v273, 4294901760
        %2104 = vmatpush1.msra.mxu0 %v2103
        %2105 = vmatprep.subr.mxu0 0.0
        %v2106 = vand.u32 %v274, 4294901760
        %2107 = vmatpush1.msra.mxu0 %v2106
        %2108 = vmatprep.subr.mxu0 0.0
        %v2109 = vand.u32 %v275, 4294901760
        %2110 = vmatpush1.msra.mxu0 %v2109
        %2111 = vmatprep.subr.mxu0 0.0
        %v2112 = vand.u32 %v276, 4294901760
        %2113 = vmatpush1.msra.mxu0 %v2112
        %2114 = vmatprep.subr.mxu0 0.0
        %v2115 = vand.u32 %v277, 4294901760
        %2116 = vmatpush1.msra.mxu0 %v2115
        %2117 = vmatprep.subr.mxu0 0.0
        %v2118 = vand.u32 %v278, 4294901760
        %2119 = vmatpush1.msra.mxu0 %v2118
        %2120 = vmatprep.subr.mxu0 0.0
        %v2121 = vand.u32 %v279, 4294901760
        %2122 = vmatpush1.msra.mxu0 %v2121
        %2123 = vmatprep.subr.mxu0 0.0
        %v2124 = vand.u32 %v280, 4294901760
        %2125 = vmatpush1.msra.mxu0 %v2124
        %2126 = vmatprep.subr.mxu0 0.0
        %v2127 = vand.u32 %v281, 4294901760
        %2128 = vmatpush1.msra.mxu0 %v2127
        %2129 = vmatprep.subr.mxu0 0.0
        %v2130 = vand.u32 %v282, 4294901760
        %2131 = vmatpush1.msra.mxu0 %v2130
        %2132 = vmatprep.subr.mxu0 0.0
        %v2133 = vand.u32 %v283, 4294901760
        %2134 = vmatpush1.msra.mxu0 %v2133
        %2135 = vmatprep.subr.mxu0 0.0
        %v2136 = vand.u32 %v284, 4294901760
        %2137 = vmatpush1.msra.mxu0 %v2136
        %2138 = vmatprep.subr.mxu0 0.0
        %v2139 = vand.u32 %v285, 4294901760
        %2140 = vmatpush1.msra.mxu0 %v2139
        %2141 = vmatprep.subr.mxu0 0.0
        %v2142 = vand.u32 %v286, 4294901760
        %2143 = vmatpush1.msra.mxu0 %v2142
        %2144 = vmatprep.subr.mxu0 0.0
        %v2145 = vand.u32 %v287, 4294901760
        %2146 = vmatpush1.msra.mxu0 %v2145
        %2147 = vmatprep.subr.mxu0 0.0
        %v2148 = vand.u32 %v288, 4294901760
        %2149 = vmatpush1.msra.mxu0 %v2148
        %2150 = vmatprep.subr.mxu0 0.0
        %v2151 = vand.u32 %v289, 4294901760
        %2152 = vmatpush1.msra.mxu0 %v2151
        %2153 = vmatprep.subr.mxu0 0.0
        %v2154 = vand.u32 %v290, 4294901760
        %2155 = vmatpush1.msra.mxu0 %v2154
        %v2156 = vand.u32 %v1300, 4294901760
        %2157 = vmatprep.mubr.f32.mxu0 %v2156
        %v2158 = vand.u32 %v1298, 4294901760
        %2159 = vmatmul.mubr.f32.gmra.mrb[0].mxu0 %v2158
        %v2160 = vpop.f32.mrb[0].mxu0
        %v2161 = vadd.f32 %v2057, %v2160
        %v2162 = vpop.f32.mrb[0].mxu0
        %2163 = vdwg.mxu0
        %s2164 = scalar_lea.vmem %s240, 4 [#allocation2]
        %2165 = vst.msk [vmem:[%s2164] sm:$0xf] %vm1296, %v2161
        %v2166 = vmul.f32 %v390, %v429
        %v2168 = vcombine.high %v2166, %v2166
        %2170 = vmatprep.subr.mxu0 0.0
        %v2171 = vand.u32 %v259, 4294901760
        %2172 = vmatpush1.msra.mxu0 %v2171
        %2173 = vmatprep.subr.mxu0 0.0
        %v2174 = vand.u32 %v260, 4294901760
        %2175 = vmatpush1.msra.mxu0 %v2174
        %2176 = vmatprep.subr.mxu0 0.0
        %v2177 = vand.u32 %v261, 4294901760
        %2178 = vmatpush1.msra.mxu0 %v2177
        %2179 = vmatprep.subr.mxu0 0.0
        %v2180 = vand.u32 %v262, 4294901760
        %2181 = vmatpush1.msra.mxu0 %v2180
        %2182 = vmatprep.subr.mxu0 0.0
        %v2183 = vand.u32 %v263, 4294901760
        %2184 = vmatpush1.msra.mxu0 %v2183
        %2185 = vmatprep.subr.mxu0 0.0
        %v2186 = vand.u32 %v264, 4294901760
        %2187 = vmatpush1.msra.mxu0 %v2186
        %2188 = vmatprep.subr.mxu0 0.0
        %v2189 = vand.u32 %v265, 4294901760
        %2190 = vmatpush1.msra.mxu0 %v2189
        %2191 = vmatprep.subr.mxu0 0.0
        %v2192 = vand.u32 %v266, 4294901760
        %2193 = vmatpush1.msra.mxu0 %v2192
        %2194 = vmatprep.subr.mxu0 0.0
        %v2195 = vand.u32 %v267, 4294901760
        %2196 = vmatpush1.msra.mxu0 %v2195
        %2197 = vmatprep.subr.mxu0 0.0
        %v2198 = vand.u32 %v268, 4294901760
        %2199 = vmatpush1.msra.mxu0 %v2198
        %2200 = vmatprep.subr.mxu0 0.0
        %v2201 = vand.u32 %v269, 4294901760
        %2202 = vmatpush1.msra.mxu0 %v2201
        %2203 = vmatprep.subr.mxu0 0.0
        %v2204 = vand.u32 %v270, 4294901760
        %2205 = vmatpush1.msra.mxu0 %v2204
        %2206 = vmatprep.subr.mxu0 0.0
        %v2207 = vand.u32 %v271, 4294901760
        %2208 = vmatpush1.msra.mxu0 %v2207
        %2209 = vmatprep.subr.mxu0 0.0
        %v2210 = vand.u32 %v272, 4294901760
        %2211 = vmatpush1.msra.mxu0 %v2210
        %2212 = vmatprep.subr.mxu0 0.0
        %v2213 = vand.u32 %v273, 4294901760
        %2214 = vmatpush1.msra.mxu0 %v2213
        %2215 = vmatprep.subr.mxu0 0.0
        %v2216 = vand.u32 %v274, 4294901760
        %2217 = vmatpush1.msra.mxu0 %v2216
        %2218 = vmatprep.subr.mxu0 0.0
        %v2219 = vand.u32 %v275, 4294901760
        %2220 = vmatpush1.msra.mxu0 %v2219
        %2221 = vmatprep.subr.mxu0 0.0
        %v2222 = vand.u32 %v276, 4294901760
        %2223 = vmatpush1.msra.mxu0 %v2222
        %2224 = vmatprep.subr.mxu0 0.0
        %v2225 = vand.u32 %v277, 4294901760
        %2226 = vmatpush1.msra.mxu0 %v2225
        %2227 = vmatprep.subr.mxu0 0.0
        %v2228 = vand.u32 %v278, 4294901760
        %2229 = vmatpush1.msra.mxu0 %v2228
        %2230 = vmatprep.subr.mxu0 0.0
        %v2231 = vand.u32 %v279, 4294901760
        %2232 = vmatpush1.msra.mxu0 %v2231
        %2233 = vmatprep.subr.mxu0 0.0
        %v2234 = vand.u32 %v280, 4294901760
        %2235 = vmatpush1.msra.mxu0 %v2234
        %2236 = vmatprep.subr.mxu0 0.0
        %v2237 = vand.u32 %v281, 4294901760
        %2238 = vmatpush1.msra.mxu0 %v2237
        %2239 = vmatprep.subr.mxu0 0.0
        %v2240 = vand.u32 %v282, 4294901760
        %2241 = vmatpush1.msra.mxu0 %v2240
        %2242 = vmatprep.subr.mxu0 0.0
        %v2243 = vand.u32 %v283, 4294901760
        %2244 = vmatpush1.msra.mxu0 %v2243
        %2245 = vmatprep.subr.mxu0 0.0
        %v2246 = vand.u32 %v284, 4294901760
        %2247 = vmatpush1.msra.mxu0 %v2246
        %2248 = vmatprep.subr.mxu0 0.0
        %v2249 = vand.u32 %v285, 4294901760
        %2250 = vmatpush1.msra.mxu0 %v2249
        %2251 = vmatprep.subr.mxu0 0.0
        %v2252 = vand.u32 %v286, 4294901760
        %2253 = vmatpush1.msra.mxu0 %v2252
        %2254 = vmatprep.subr.mxu0 0.0
        %v2255 = vand.u32 %v287, 4294901760
        %2256 = vmatpush1.msra.mxu0 %v2255
        %2257 = vmatprep.subr.mxu0 0.0
        %v2258 = vand.u32 %v288, 4294901760
        %2259 = vmatpush1.msra.mxu0 %v2258
        %2260 = vmatprep.subr.mxu0 0.0
        %v2261 = vand.u32 %v289, 4294901760
        %2262 = vmatpush1.msra.mxu0 %v2261
        %2263 = vmatprep.subr.mxu0 0.0
        %v2264 = vand.u32 %v290, 4294901760
        %2265 = vmatpush1.msra.mxu0 %v2264
        %v2266 = vand.u32 %v2168, 4294901760
        %v2267 = vsub.f32 %v2168, %v2266
        %v2268 = vand.u32 %v2267, 4294901760
        %v2269 = vsub.f32 %v2267, %v2268
        %v2270 = vand.u32 %v2269, 4294901760
        %2271 = vmatprep.mubr.f32.mxu0 %v2270
        %v2272 = vand.u32 %v2166, 4294901760
        %v2273 = vsub.f32 %v2166, %v2272
        %v2274 = vand.u32 %v2273, 4294901760
        %v2275 = vsub.f32 %v2273, %v2274
        %v2276 = vand.u32 %v2275, 4294901760
        %2277 = vmatmul.mubr.f32.gmra.mrb[0].mxu0 %v2276
        %v2278 = vpop.f32.mrb[0].mxu0
        %v2279 = vadd.f32 0.0, %v2278
        %v2280 = vpop.f32.mrb[0].mxu0
        %2281 = vdwg.mxu0
        %2282 = vmatprep.subr.mxu0 0.0
        %v2283 = vand.u32 %v259, 4294901760
        %v2284 = vsub.f32 %v259, %v2283
        %v2285 = vand.u32 %v2284, 4294901760
        %v2286 = vsub.f32 %v2284, %v2285
        %v2287 = vand.u32 %v2286, 4294901760
        %2288 = vmatpush1.msra.mxu0 %v2287
        %2289 = vmatprep.subr.mxu0 0.0
        %v2290 = vand.u32 %v260, 4294901760
        %v2291 = vsub.f32 %v260, %v2290
        %v2292 = vand.u32 %v2291, 4294901760
        %v2293 = vsub.f32 %v2291, %v2292
        %v2294 = vand.u32 %v2293, 4294901760
        %2295 = vmatpush1.msra.mxu0 %v2294
        %2296 = vmatprep.subr.mxu0 0.0
        %v2297 = vand.u32 %v261, 4294901760
        %v2298 = vsub.f32 %v261, %v2297
        %v2299 = vand.u32 %v2298, 4294901760
        %v2300 = vsub.f32 %v2298, %v2299
        %v2301 = vand.u32 %v2300, 4294901760
        %2302 = vmatpush1.msra.mxu0 %v2301
        %2303 = vmatprep.subr.mxu0 0.0
        %v2304 = vand.u32 %v262, 4294901760
        %v2305 = vsub.f32 %v262, %v2304
        %v2306 = vand.u32 %v2305, 4294901760
        %v2307 = vsub.f32 %v2305, %v2306
        %v2308 = vand.u32 %v2307, 4294901760
        %2309 = vmatpush1.msra.mxu0 %v2308
        %2310 = vmatprep.subr.mxu0 0.0
        %v2311 = vand.u32 %v263, 4294901760
        %v2312 = vsub.f32 %v263, %v2311
        %v2313 = vand.u32 %v2312, 4294901760
        %v2314 = vsub.f32 %v2312, %v2313
        %v2315 = vand.u32 %v2314, 4294901760
        %2316 = vmatpush1.msra.mxu0 %v2315
        %2317 = vmatprep.subr.mxu0 0.0
        %v2318 = vand.u32 %v264, 4294901760
        %v2319 = vsub.f32 %v264, %v2318
        %v2320 = vand.u32 %v2319, 4294901760
        %v2321 = vsub.f32 %v2319, %v2320
        %v2322 = vand.u32 %v2321, 4294901760
        %2323 = vmatpush1.msra.mxu0 %v2322
        %2324 = vmatprep.subr.mxu0 0.0
        %v2325 = vand.u32 %v265, 4294901760
        %v2326 = vsub.f32 %v265, %v2325
        %v2327 = vand.u32 %v2326, 4294901760
        %v2328 = vsub.f32 %v2326, %v2327
        %v2329 = vand.u32 %v2328, 4294901760
        %2330 = vmatpush1.msra.mxu0 %v2329
        %2331 = vmatprep.subr.mxu0 0.0
        %v2332 = vand.u32 %v266, 4294901760
        %v2333 = vsub.f32 %v266, %v2332
        %v2334 = vand.u32 %v2333, 4294901760
        %v2335 = vsub.f32 %v2333, %v2334
        %v2336 = vand.u32 %v2335, 4294901760
        %2337 = vmatpush1.msra.mxu0 %v2336
        %2338 = vmatprep.subr.mxu0 0.0
        %v2339 = vand.u32 %v267, 4294901760
        %v2340 = vsub.f32 %v267, %v2339
        %v2341 = vand.u32 %v2340, 4294901760
        %v2342 = vsub.f32 %v2340, %v2341
        %v2343 = vand.u32 %v2342, 4294901760
        %2344 = vmatpush1.msra.mxu0 %v2343
        %2345 = vmatprep.subr.mxu0 0.0
        %v2346 = vand.u32 %v268, 4294901760
        %v2347 = vsub.f32 %v268, %v2346
        %v2348 = vand.u32 %v2347, 4294901760
        %v2349 = vsub.f32 %v2347, %v2348
        %v2350 = vand.u32 %v2349, 4294901760
        %2351 = vmatpush1.msra.mxu0 %v2350
        %2352 = vmatprep.subr.mxu0 0.0
        %v2353 = vand.u32 %v269, 4294901760
        %v2354 = vsub.f32 %v269, %v2353
        %v2355 = vand.u32 %v2354, 4294901760
        %v2356 = vsub.f32 %v2354, %v2355
        %v2357 = vand.u32 %v2356, 4294901760
        %2358 = vmatpush1.msra.mxu0 %v2357
        %2359 = vmatprep.subr.mxu0 0.0
        %v2360 = vand.u32 %v270, 4294901760
        %v2361 = vsub.f32 %v270, %v2360
        %v2362 = vand.u32 %v2361, 4294901760
        %v2363 = vsub.f32 %v2361, %v2362
        %v2364 = vand.u32 %v2363, 4294901760
        %2365 = vmatpush1.msra.mxu0 %v2364
        %2366 = vmatprep.subr.mxu0 0.0
        %v2367 = vand.u32 %v271, 4294901760
        %v2368 = vsub.f32 %v271, %v2367
        %v2369 = vand.u32 %v2368, 4294901760
        %v2370 = vsub.f32 %v2368, %v2369
        %v2371 = vand.u32 %v2370, 4294901760
        %2372 = vmatpush1.msra.mxu0 %v2371
        %2373 = vmatprep.subr.mxu0 0.0
        %v2374 = vand.u32 %v272, 4294901760
        %v2375 = vsub.f32 %v272, %v2374
        %v2376 = vand.u32 %v2375, 4294901760
        %v2377 = vsub.f32 %v2375, %v2376
        %v2378 = vand.u32 %v2377, 4294901760
        %2379 = vmatpush1.msra.mxu0 %v2378
        %2380 = vmatprep.subr.mxu0 0.0
        %v2381 = vand.u32 %v273, 4294901760
        %v2382 = vsub.f32 %v273, %v2381
        %v2383 = vand.u32 %v2382, 4294901760
        %v2384 = vsub.f32 %v2382, %v2383
        %v2385 = vand.u32 %v2384, 4294901760
        %2386 = vmatpush1.msra.mxu0 %v2385
        %2387 = vmatprep.subr.mxu0 0.0
        %v2388 = vand.u32 %v274, 4294901760
        %v2389 = vsub.f32 %v274, %v2388
        %v2390 = vand.u32 %v2389, 4294901760
        %v2391 = vsub.f32 %v2389, %v2390
        %v2392 = vand.u32 %v2391, 4294901760
        %2393 = vmatpush1.msra.mxu0 %v2392
        %2394 = vmatprep.subr.mxu0 0.0
        %v2395 = vand.u32 %v275, 4294901760
        %v2396 = vsub.f32 %v275, %v2395
        %v2397 = vand.u32 %v2396, 4294901760
        %v2398 = vsub.f32 %v2396, %v2397
        %v2399 = vand.u32 %v2398, 4294901760
        %2400 = vmatpush1.msra.mxu0 %v2399
        %2401 = vmatprep.subr.mxu0 0.0
        %v2402 = vand.u32 %v276, 4294901760
        %v2403 = vsub.f32 %v276, %v2402
        %v2404 = vand.u32 %v2403, 4294901760
        %v2405 = vsub.f32 %v2403, %v2404
        %v2406 = vand.u32 %v2405, 4294901760
        %2407 = vmatpush1.msra.mxu0 %v2406
        %2408 = vmatprep.subr.mxu0 0.0
        %v2409 = vand.u32 %v277, 4294901760
        %v2410 = vsub.f32 %v277, %v2409
        %v2411 = vand.u32 %v2410, 4294901760
        %v2412 = vsub.f32 %v2410, %v2411
        %v2413 = vand.u32 %v2412, 4294901760
        %2414 = vmatpush1.msra.mxu0 %v2413
        %2415 = vmatprep.subr.mxu0 0.0
        %v2416 = vand.u32 %v278, 4294901760
        %v2417 = vsub.f32 %v278, %v2416
        %v2418 = vand.u32 %v2417, 4294901760
        %v2419 = vsub.f32 %v2417, %v2418
        %v2420 = vand.u32 %v2419, 4294901760
        %2421 = vmatpush1.msra.mxu0 %v2420
        %2422 = vmatprep.subr.mxu0 0.0
        %v2423 = vand.u32 %v279, 4294901760
        %v2424 = vsub.f32 %v279, %v2423
        %v2425 = vand.u32 %v2424, 4294901760
        %v2426 = vsub.f32 %v2424, %v2425
        %v2427 = vand.u32 %v2426, 4294901760
        %2428 = vmatpush1.msra.mxu0 %v2427
        %2429 = vmatprep.subr.mxu0 0.0
        %v2430 = vand.u32 %v280, 4294901760
        %v2431 = vsub.f32 %v280, %v2430
        %v2432 = vand.u32 %v2431, 4294901760
        %v2433 = vsub.f32 %v2431, %v2432
        %v2434 = vand.u32 %v2433, 4294901760
        %2435 = vmatpush1.msra.mxu0 %v2434
        %2436 = vmatprep.subr.mxu0 0.0
        %v2437 = vand.u32 %v281, 4294901760
        %v2438 = vsub.f32 %v281, %v2437
        %v2439 = vand.u32 %v2438, 4294901760
        %v2440 = vsub.f32 %v2438, %v2439
        %v2441 = vand.u32 %v2440, 4294901760
        %2442 = vmatpush1.msra.mxu0 %v2441
        %2443 = vmatprep.subr.mxu0 0.0
        %v2444 = vand.u32 %v282, 4294901760
        %v2445 = vsub.f32 %v282, %v2444
        %v2446 = vand.u32 %v2445, 4294901760
        %v2447 = vsub.f32 %v2445, %v2446
        %v2448 = vand.u32 %v2447, 4294901760
        %2449 = vmatpush1.msra.mxu0 %v2448
        %2450 = vmatprep.subr.mxu0 0.0
        %v2451 = vand.u32 %v283, 4294901760
        %v2452 = vsub.f32 %v283, %v2451
        %v2453 = vand.u32 %v2452, 4294901760
        %v2454 = vsub.f32 %v2452, %v2453
        %v2455 = vand.u32 %v2454, 4294901760
        %2456 = vmatpush1.msra.mxu0 %v2455
        %2457 = vmatprep.subr.mxu0 0.0
        %v2458 = vand.u32 %v284, 4294901760
        %v2459 = vsub.f32 %v284, %v2458
        %v2460 = vand.u32 %v2459, 4294901760
        %v2461 = vsub.f32 %v2459, %v2460
        %v2462 = vand.u32 %v2461, 4294901760
        %2463 = vmatpush1.msra.mxu0 %v2462
        %2464 = vmatprep.subr.mxu0 0.0
        %v2465 = vand.u32 %v285, 4294901760
        %v2466 = vsub.f32 %v285, %v2465
        %v2467 = vand.u32 %v2466, 4294901760
        %v2468 = vsub.f32 %v2466, %v2467
        %v2469 = vand.u32 %v2468, 4294901760
        %2470 = vmatpush1.msra.mxu0 %v2469
        %2471 = vmatprep.subr.mxu0 0.0
        %v2472 = vand.u32 %v286, 4294901760
        %v2473 = vsub.f32 %v286, %v2472
        %v2474 = vand.u32 %v2473, 4294901760
        %v2475 = vsub.f32 %v2473, %v2474
        %v2476 = vand.u32 %v2475, 4294901760
        %2477 = vmatpush1.msra.mxu0 %v2476
        %2478 = vmatprep.subr.mxu0 0.0
        %v2479 = vand.u32 %v287, 4294901760
        %v2480 = vsub.f32 %v287, %v2479
        %v2481 = vand.u32 %v2480, 4294901760
        %v2482 = vsub.f32 %v2480, %v2481
        %v2483 = vand.u32 %v2482, 4294901760
        %2484 = vmatpush1.msra.mxu0 %v2483
        %2485 = vmatprep.subr.mxu0 0.0
        %v2486 = vand.u32 %v288, 4294901760
        %v2487 = vsub.f32 %v288, %v2486
        %v2488 = vand.u32 %v2487, 4294901760
        %v2489 = vsub.f32 %v2487, %v2488
        %v2490 = vand.u32 %v2489, 4294901760
        %2491 = vmatpush1.msra.mxu0 %v2490
        %2492 = vmatprep.subr.mxu0 0.0
        %v2493 = vand.u32 %v289, 4294901760
        %v2494 = vsub.f32 %v289, %v2493
        %v2495 = vand.u32 %v2494, 4294901760
        %v2496 = vsub.f32 %v2494, %v2495
        %v2497 = vand.u32 %v2496, 4294901760
        %2498 = vmatpush1.msra.mxu0 %v2497
        %2499 = vmatprep.subr.mxu0 0.0
        %v2500 = vand.u32 %v290, 4294901760
        %v2501 = vsub.f32 %v290, %v2500
        %v2502 = vand.u32 %v2501, 4294901760
        %v2503 = vsub.f32 %v2501, %v2502
        %v2504 = vand.u32 %v2503, 4294901760
        %2505 = vmatpush1.msra.mxu0 %v2504
        %v2506 = vand.u32 %v2168, 4294901760
        %2507 = vmatprep.mubr.f32.mxu0 %v2506
        %v2508 = vand.u32 %v2166, 4294901760
        %2509 = vmatmul.mubr.f32.gmra.mrb[0].mxu0 %v2508
        %v2510 = vpop.f32.mrb[0].mxu0
        %v2511 = vadd.f32 %v2279, %v2510
        %v2512 = vpop.f32.mrb[0].mxu0
        %2513 = vdwg.mxu0
        %2514 = vmatprep.subr.mxu0 0.0
        %v2515 = vand.u32 %v259, 4294901760
        %v2516 = vsub.f32 %v259, %v2515
        %2517 = vmatpush1.msra.mxu0 %v2516
        %2518 = vmatprep.subr.mxu0 0.0
        %v2519 = vand.u32 %v260, 4294901760
        %v2520 = vsub.f32 %v260, %v2519
        %2521 = vmatpush1.msra.mxu0 %v2520
        %2522 = vmatprep.subr.mxu0 0.0
        %v2523 = vand.u32 %v261, 4294901760
        %v2524 = vsub.f32 %v261, %v2523
        %2525 = vmatpush1.msra.mxu0 %v2524
        %2526 = vmatprep.subr.mxu0 0.0
        %v2527 = vand.u32 %v262, 4294901760
        %v2528 = vsub.f32 %v262, %v2527
        %2529 = vmatpush1.msra.mxu0 %v2528
        %2530 = vmatprep.subr.mxu0 0.0
        %v2531 = vand.u32 %v263, 4294901760
        %v2532 = vsub.f32 %v263, %v2531
        %2533 = vmatpush1.msra.mxu0 %v2532
        %2534 = vmatprep.subr.mxu0 0.0
        %v2535 = vand.u32 %v264, 4294901760
        %v2536 = vsub.f32 %v264, %v2535
        %2537 = vmatpush1.msra.mxu0 %v2536
        %2538 = vmatprep.subr.mxu0 0.0
        %v2539 = vand.u32 %v265, 4294901760
        %v2540 = vsub.f32 %v265, %v2539
        %2541 = vmatpush1.msra.mxu0 %v2540
        %2542 = vmatprep.subr.mxu0 0.0
        %v2543 = vand.u32 %v266, 4294901760
        %v2544 = vsub.f32 %v266, %v2543
        %2545 = vmatpush1.msra.mxu0 %v2544
        %2546 = vmatprep.subr.mxu0 0.0
        %v2547 = vand.u32 %v267, 4294901760
        %v2548 = vsub.f32 %v267, %v2547
        %2549 = vmatpush1.msra.mxu0 %v2548
        %2550 = vmatprep.subr.mxu0 0.0
        %v2551 = vand.u32 %v268, 4294901760
        %v2552 = vsub.f32 %v268, %v2551
        %2553 = vmatpush1.msra.mxu0 %v2552
        %2554 = vmatprep.subr.mxu0 0.0
        %v2555 = vand.u32 %v269, 4294901760
        %v2556 = vsub.f32 %v269, %v2555
        %2557 = vmatpush1.msra.mxu0 %v2556
        %2558 = vmatprep.subr.mxu0 0.0
        %v2559 = vand.u32 %v270, 4294901760
        %v2560 = vsub.f32 %v270, %v2559
        %2561 = vmatpush1.msra.mxu0 %v2560
        %2562 = vmatprep.subr.mxu0 0.0
        %v2563 = vand.u32 %v271, 4294901760
        %v2564 = vsub.f32 %v271, %v2563
        %2565 = vmatpush1.msra.mxu0 %v2564
        %2566 = vmatprep.subr.mxu0 0.0
        %v2567 = vand.u32 %v272, 4294901760
        %v2568 = vsub.f32 %v272, %v2567
        %2569 = vmatpush1.msra.mxu0 %v2568
        %2570 = vmatprep.subr.mxu0 0.0
        %v2571 = vand.u32 %v273, 4294901760
        %v2572 = vsub.f32 %v273, %v2571
        %2573 = vmatpush1.msra.mxu0 %v2572
        %2574 = vmatprep.subr.mxu0 0.0
        %v2575 = vand.u32 %v274, 4294901760
        %v2576 = vsub.f32 %v274, %v2575
        %2577 = vmatpush1.msra.mxu0 %v2576
        %2578 = vmatprep.subr.mxu0 0.0
        %v2579 = vand.u32 %v275, 4294901760
        %v2580 = vsub.f32 %v275, %v2579
        %2581 = vmatpush1.msra.mxu0 %v2580
        %2582 = vmatprep.subr.mxu0 0.0
        %v2583 = vand.u32 %v276, 4294901760
        %v2584 = vsub.f32 %v276, %v2583
        %2585 = vmatpush1.msra.mxu0 %v2584
        %2586 = vmatprep.subr.mxu0 0.0
        %v2587 = vand.u32 %v277, 4294901760
        %v2588 = vsub.f32 %v277, %v2587
        %2589 = vmatpush1.msra.mxu0 %v2588
        %2590 = vmatprep.subr.mxu0 0.0
        %v2591 = vand.u32 %v278, 4294901760
        %v2592 = vsub.f32 %v278, %v2591
        %2593 = vmatpush1.msra.mxu0 %v2592
        %2594 = vmatprep.subr.mxu0 0.0
        %v2595 = vand.u32 %v279, 4294901760
        %v2596 = vsub.f32 %v279, %v2595
        %2597 = vmatpush1.msra.mxu0 %v2596
        %2598 = vmatprep.subr.mxu0 0.0
        %v2599 = vand.u32 %v280, 4294901760
        %v2600 = vsub.f32 %v280, %v2599
        %2601 = vmatpush1.msra.mxu0 %v2600
        %2602 = vmatprep.subr.mxu0 0.0
        %v2603 = vand.u32 %v281, 4294901760
        %v2604 = vsub.f32 %v281, %v2603
        %2605 = vmatpush1.msra.mxu0 %v2604
        %2606 = vmatprep.subr.mxu0 0.0
        %v2607 = vand.u32 %v282, 4294901760
        %v2608 = vsub.f32 %v282, %v2607
        %2609 = vmatpush1.msra.mxu0 %v2608
        %2610 = vmatprep.subr.mxu0 0.0
        %v2611 = vand.u32 %v283, 4294901760
        %v2612 = vsub.f32 %v283, %v2611
        %2613 = vmatpush1.msra.mxu0 %v2612
        %2614 = vmatprep.subr.mxu0 0.0
        %v2615 = vand.u32 %v284, 4294901760
        %v2616 = vsub.f32 %v284, %v2615
        %2617 = vmatpush1.msra.mxu0 %v2616
        %2618 = vmatprep.subr.mxu0 0.0
        %v2619 = vand.u32 %v285, 4294901760
        %v2620 = vsub.f32 %v285, %v2619
        %2621 = vmatpush1.msra.mxu0 %v2620
        %2622 = vmatprep.subr.mxu0 0.0
        %v2623 = vand.u32 %v286, 4294901760
        %v2624 = vsub.f32 %v286, %v2623
        %2625 = vmatpush1.msra.mxu0 %v2624
        %2626 = vmatprep.subr.mxu0 0.0
        %v2627 = vand.u32 %v287, 4294901760
        %v2628 = vsub.f32 %v287, %v2627
        %2629 = vmatpush1.msra.mxu0 %v2628
        %2630 = vmatprep.subr.mxu0 0.0
        %v2631 = vand.u32 %v288, 4294901760
        %v2632 = vsub.f32 %v288, %v2631
        %2633 = vmatpush1.msra.mxu0 %v2632
        %2634 = vmatprep.subr.mxu0 0.0
        %v2635 = vand.u32 %v289, 4294901760
        %v2636 = vsub.f32 %v289, %v2635
        %2637 = vmatpush1.msra.mxu0 %v2636
        %2638 = vmatprep.subr.mxu0 0.0
        %v2639 = vand.u32 %v290, 4294901760
        %v2640 = vsub.f32 %v290, %v2639
        %2641 = vmatpush1.msra.mxu0 %v2640
        %v2642 = vand.u32 %v2168, 4294901760
        %v2643 = vsub.f32 %v2168, %v2642
        %2644 = vmatprep.mubr.f32.mxu0 %v2643
        %v2645 = vand.u32 %v2166, 4294901760
        %v2646 = vsub.f32 %v2166, %v2645
        %2647 = vmatmul.mubr.f32.gmra.mrb[0].mxu0 %v2646
        %v2648 = vpop.f32.mrb[0].mxu0
        %v2649 = vadd.f32 %v2511, %v2648
        %v2650 = vpop.f32.mrb[0].mxu0
        %2651 = vdwg.mxu0
        %2652 = vmatprep.subr.mxu0 0.0
        %v2653 = vand.u32 %v259, 4294901760
        %2654 = vmatpush1.msra.mxu0 %v2653
        %2655 = vmatprep.subr.mxu0 0.0
        %v2656 = vand.u32 %v260, 4294901760
        %2657 = vmatpush1.msra.mxu0 %v2656
        %2658 = vmatprep.subr.mxu0 0.0
        %v2659 = vand.u32 %v261, 4294901760
        %2660 = vmatpush1.msra.mxu0 %v2659
        %2661 = vmatprep.subr.mxu0 0.0
        %v2662 = vand.u32 %v262, 4294901760
        %2663 = vmatpush1.msra.mxu0 %v2662
        %2664 = vmatprep.subr.mxu0 0.0
        %v2665 = vand.u32 %v263, 4294901760
        %2666 = vmatpush1.msra.mxu0 %v2665
        %2667 = vmatprep.subr.mxu0 0.0
        %v2668 = vand.u32 %v264, 4294901760
        %2669 = vmatpush1.msra.mxu0 %v2668
        %2670 = vmatprep.subr.mxu0 0.0
        %v2671 = vand.u32 %v265, 4294901760
        %2672 = vmatpush1.msra.mxu0 %v2671
        %2673 = vmatprep.subr.mxu0 0.0
        %v2674 = vand.u32 %v266, 4294901760
        %2675 = vmatpush1.msra.mxu0 %v2674
        %2676 = vmatprep.subr.mxu0 0.0
        %v2677 = vand.u32 %v267, 4294901760
        %2678 = vmatpush1.msra.mxu0 %v2677
        %2679 = vmatprep.subr.mxu0 0.0
        %v2680 = vand.u32 %v268, 4294901760
        %2681 = vmatpush1.msra.mxu0 %v2680
        %2682 = vmatprep.subr.mxu0 0.0
        %v2683 = vand.u32 %v269, 4294901760
        %2684 = vmatpush1.msra.mxu0 %v2683
        %2685 = vmatprep.subr.mxu0 0.0
        %v2686 = vand.u32 %v270, 4294901760
        %2687 = vmatpush1.msra.mxu0 %v2686
        %2688 = vmatprep.subr.mxu0 0.0
        %v2689 = vand.u32 %v271, 4294901760
        %2690 = vmatpush1.msra.mxu0 %v2689
        %2691 = vmatprep.subr.mxu0 0.0
        %v2692 = vand.u32 %v272, 4294901760
        %2693 = vmatpush1.msra.mxu0 %v2692
        %2694 = vmatprep.subr.mxu0 0.0
        %v2695 = vand.u32 %v273, 4294901760
        %2696 = vmatpush1.msra.mxu0 %v2695
        %2697 = vmatprep.subr.mxu0 0.0
        %v2698 = vand.u32 %v274, 4294901760
        %2699 = vmatpush1.msra.mxu0 %v2698
        %2700 = vmatprep.subr.mxu0 0.0
        %v2701 = vand.u32 %v275, 4294901760
        %2702 = vmatpush1.msra.mxu0 %v2701
        %2703 = vmatprep.subr.mxu0 0.0
        %v2704 = vand.u32 %v276, 4294901760
        %2705 = vmatpush1.msra.mxu0 %v2704
        %2706 = vmatprep.subr.mxu0 0.0
        %v2707 = vand.u32 %v277, 4294901760
        %2708 = vmatpush1.msra.mxu0 %v2707
        %2709 = vmatprep.subr.mxu0 0.0
        %v2710 = vand.u32 %v278, 4294901760
        %2711 = vmatpush1.msra.mxu0 %v2710
        %2712 = vmatprep.subr.mxu0 0.0
        %v2713 = vand.u32 %v279, 4294901760
        %2714 = vmatpush1.msra.mxu0 %v2713
        %2715 = vmatprep.subr.mxu0 0.0
        %v2716 = vand.u32 %v280, 4294901760
        %2717 = vmatpush1.msra.mxu0 %v2716
        %2718 = vmatprep.subr.mxu0 0.0
        %v2719 = vand.u32 %v281, 4294901760
        %2720 = vmatpush1.msra.mxu0 %v2719
        %2721 = vmatprep.subr.mxu0 0.0
        %v2722 = vand.u32 %v282, 4294901760
        %2723 = vmatpush1.msra.mxu0 %v2722
        %2724 = vmatprep.subr.mxu0 0.0
        %v2725 = vand.u32 %v283, 4294901760
        %2726 = vmatpush1.msra.mxu0 %v2725
        %2727 = vmatprep.subr.mxu0 0.0
        %v2728 = vand.u32 %v284, 4294901760
        %2729 = vmatpush1.msra.mxu0 %v2728
        %2730 = vmatprep.subr.mxu0 0.0
        %v2731 = vand.u32 %v285, 4294901760
        %2732 = vmatpush1.msra.mxu0 %v2731
        %2733 = vmatprep.subr.mxu0 0.0
        %v2734 = vand.u32 %v286, 4294901760
        %2735 = vmatpush1.msra.mxu0 %v2734
        %2736 = vmatprep.subr.mxu0 0.0
        %v2737 = vand.u32 %v287, 4294901760
        %2738 = vmatpush1.msra.mxu0 %v2737
        %2739 = vmatprep.subr.mxu0 0.0
        %v2740 = vand.u32 %v288, 4294901760
        %2741 = vmatpush1.msra.mxu0 %v2740
        %2742 = vmatprep.subr.mxu0 0.0
        %v2743 = vand.u32 %v289, 4294901760
        %2744 = vmatpush1.msra.mxu0 %v2743
        %2745 = vmatprep.subr.mxu0 0.0
        %v2746 = vand.u32 %v290, 4294901760
        %2747 = vmatpush1.msra.mxu0 %v2746
        %v2748 = vand.u32 %v2168, 4294901760
        %v2749 = vsub.f32 %v2168, %v2748
        %v2750 = vand.u32 %v2749, 4294901760
        %2751 = vmatprep.mubr.f32.mxu0 %v2750
        %v2752 = vand.u32 %v2166, 4294901760
        %v2753 = vsub.f32 %v2166, %v2752
        %v2754 = vand.u32 %v2753, 4294901760
        %2755 = vmatmul.mubr.f32.gmra.mrb[0].mxu0 %v2754
        %v2756 = vpop.f32.mrb[0].mxu0
        %v2757 = vadd.f32 %v2649, %v2756
        %v2758 = vpop.f32.mrb[0].mxu0
        %2759 = vdwg.mxu0
        %2760 = vmatprep.subr.mxu0 0.0
        %v2761 = vand.u32 %v259, 4294901760
        %v2762 = vsub.f32 %v259, %v2761
        %v2763 = vand.u32 %v2762, 4294901760
        %2764 = vmatpush1.msra.mxu0 %v2763
        %2765 = vmatprep.subr.mxu0 0.0
        %v2766 = vand.u32 %v260, 4294901760
        %v2767 = vsub.f32 %v260, %v2766
        %v2768 = vand.u32 %v2767, 4294901760
        %2769 = vmatpush1.msra.mxu0 %v2768
        %2770 = vmatprep.subr.mxu0 0.0
        %v2771 = vand.u32 %v261, 4294901760
        %v2772 = vsub.f32 %v261, %v2771
        %v2773 = vand.u32 %v2772, 4294901760
        %2774 = vmatpush1.msra.mxu0 %v2773
        %2775 = vmatprep.subr.mxu0 0.0
        %v2776 = vand.u32 %v262, 4294901760
        %v2777 = vsub.f32 %v262, %v2776
        %v2778 = vand.u32 %v2777, 4294901760
        %2779 = vmatpush1.msra.mxu0 %v2778
        %2780 = vmatprep.subr.mxu0 0.0
        %v2781 = vand.u32 %v263, 4294901760
        %v2782 = vsub.f32 %v263, %v2781
        %v2783 = vand.u32 %v2782, 4294901760
        %2784 = vmatpush1.msra.mxu0 %v2783
        %2785 = vmatprep.subr.mxu0 0.0
        %v2786 = vand.u32 %v264, 4294901760
        %v2787 = vsub.f32 %v264, %v2786
        %v2788 = vand.u32 %v2787, 4294901760
        %2789 = vmatpush1.msra.mxu0 %v2788
        %2790 = vmatprep.subr.mxu0 0.0
        %v2791 = vand.u32 %v265, 4294901760
        %v2792 = vsub.f32 %v265, %v2791
        %v2793 = vand.u32 %v2792, 4294901760
        %2794 = vmatpush1.msra.mxu0 %v2793
        %2795 = vmatprep.subr.mxu0 0.0
        %v2796 = vand.u32 %v266, 4294901760
        %v2797 = vsub.f32 %v266, %v2796
        %v2798 = vand.u32 %v2797, 4294901760
        %2799 = vmatpush1.msra.mxu0 %v2798
        %2800 = vmatprep.subr.mxu0 0.0
        %v2801 = vand.u32 %v267, 4294901760
        %v2802 = vsub.f32 %v267, %v2801
        %v2803 = vand.u32 %v2802, 4294901760
        %2804 = vmatpush1.msra.mxu0 %v2803
        %2805 = vmatprep.subr.mxu0 0.0
        %v2806 = vand.u32 %v268, 4294901760
        %v2807 = vsub.f32 %v268, %v2806
        %v2808 = vand.u32 %v2807, 4294901760
        %2809 = vmatpush1.msra.mxu0 %v2808
        %2810 = vmatprep.subr.mxu0 0.0
        %v2811 = vand.u32 %v269, 4294901760
        %v2812 = vsub.f32 %v269, %v2811
        %v2813 = vand.u32 %v2812, 4294901760
        %2814 = vmatpush1.msra.mxu0 %v2813
        %2815 = vmatprep.subr.mxu0 0.0
        %v2816 = vand.u32 %v270, 4294901760
        %v2817 = vsub.f32 %v270, %v2816
        %v2818 = vand.u32 %v2817, 4294901760
        %2819 = vmatpush1.msra.mxu0 %v2818
        %2820 = vmatprep.subr.mxu0 0.0
        %v2821 = vand.u32 %v271, 4294901760
        %v2822 = vsub.f32 %v271, %v2821
        %v2823 = vand.u32 %v2822, 4294901760
        %2824 = vmatpush1.msra.mxu0 %v2823
        %2825 = vmatprep.subr.mxu0 0.0
        %v2826 = vand.u32 %v272, 4294901760
        %v2827 = vsub.f32 %v272, %v2826
        %v2828 = vand.u32 %v2827, 4294901760
        %2829 = vmatpush1.msra.mxu0 %v2828
        %2830 = vmatprep.subr.mxu0 0.0
        %v2831 = vand.u32 %v273, 4294901760
        %v2832 = vsub.f32 %v273, %v2831
        %v2833 = vand.u32 %v2832, 4294901760
        %2834 = vmatpush1.msra.mxu0 %v2833
        %2835 = vmatprep.subr.mxu0 0.0
        %v2836 = vand.u32 %v274, 4294901760
        %v2837 = vsub.f32 %v274, %v2836
        %v2838 = vand.u32 %v2837, 4294901760
        %2839 = vmatpush1.msra.mxu0 %v2838
        %2840 = vmatprep.subr.mxu0 0.0
        %v2841 = vand.u32 %v275, 4294901760
        %v2842 = vsub.f32 %v275, %v2841
        %v2843 = vand.u32 %v2842, 4294901760
        %2844 = vmatpush1.msra.mxu0 %v2843
        %2845 = vmatprep.subr.mxu0 0.0
        %v2846 = vand.u32 %v276, 4294901760
        %v2847 = vsub.f32 %v276, %v2846
        %v2848 = vand.u32 %v2847, 4294901760
        %2849 = vmatpush1.msra.mxu0 %v2848
        %2850 = vmatprep.subr.mxu0 0.0
        %v2851 = vand.u32 %v277, 4294901760
        %v2852 = vsub.f32 %v277, %v2851
        %v2853 = vand.u32 %v2852, 4294901760
        %2854 = vmatpush1.msra.mxu0 %v2853
        %2855 = vmatprep.subr.mxu0 0.0
        %v2856 = vand.u32 %v278, 4294901760
        %v2857 = vsub.f32 %v278, %v2856
        %v2858 = vand.u32 %v2857, 4294901760
        %2859 = vmatpush1.msra.mxu0 %v2858
        %2860 = vmatprep.subr.mxu0 0.0
        %v2861 = vand.u32 %v279, 4294901760
        %v2862 = vsub.f32 %v279, %v2861
        %v2863 = vand.u32 %v2862, 4294901760
        %2864 = vmatpush1.msra.mxu0 %v2863
        %2865 = vmatprep.subr.mxu0 0.0
        %v2866 = vand.u32 %v280, 4294901760
        %v2867 = vsub.f32 %v280, %v2866
        %v2868 = vand.u32 %v2867, 4294901760
        %2869 = vmatpush1.msra.mxu0 %v2868
        %2870 = vmatprep.subr.mxu0 0.0
        %v2871 = vand.u32 %v281, 4294901760
        %v2872 = vsub.f32 %v281, %v2871
        %v2873 = vand.u32 %v2872, 4294901760
        %2874 = vmatpush1.msra.mxu0 %v2873
        %2875 = vmatprep.subr.mxu0 0.0
        %v2876 = vand.u32 %v282, 4294901760
        %v2877 = vsub.f32 %v282, %v2876
        %v2878 = vand.u32 %v2877, 4294901760
        %2879 = vmatpush1.msra.mxu0 %v2878
        %2880 = vmatprep.subr.mxu0 0.0
        %v2881 = vand.u32 %v283, 4294901760
        %v2882 = vsub.f32 %v283, %v2881
        %v2883 = vand.u32 %v2882, 4294901760
        %2884 = vmatpush1.msra.mxu0 %v2883
        %2885 = vmatprep.subr.mxu0 0.0
        %v2886 = vand.u32 %v284, 4294901760
        %v2887 = vsub.f32 %v284, %v2886
        %v2888 = vand.u32 %v2887, 4294901760
        %2889 = vmatpush1.msra.mxu0 %v2888
        %2890 = vmatprep.subr.mxu0 0.0
        %v2891 = vand.u32 %v285, 4294901760
        %v2892 = vsub.f32 %v285, %v2891
        %v2893 = vand.u32 %v2892, 4294901760
        %2894 = vmatpush1.msra.mxu0 %v2893
        %2895 = vmatprep.subr.mxu0 0.0
        %v2896 = vand.u32 %v286, 4294901760
        %v2897 = vsub.f32 %v286, %v2896
        %v2898 = vand.u32 %v2897, 4294901760
        %2899 = vmatpush1.msra.mxu0 %v2898
        %2900 = vmatprep.subr.mxu0 0.0
        %v2901 = vand.u32 %v287, 4294901760
        %v2902 = vsub.f32 %v287, %v2901
        %v2903 = vand.u32 %v2902, 4294901760
        %2904 = vmatpush1.msra.mxu0 %v2903
        %2905 = vmatprep.subr.mxu0 0.0
        %v2906 = vand.u32 %v288, 4294901760
        %v2907 = vsub.f32 %v288, %v2906
        %v2908 = vand.u32 %v2907, 4294901760
        %2909 = vmatpush1.msra.mxu0 %v2908
        %2910 = vmatprep.subr.mxu0 0.0
        %v2911 = vand.u32 %v289, 4294901760
        %v2912 = vsub.f32 %v289, %v2911
        %v2913 = vand.u32 %v2912, 4294901760
        %2914 = vmatpush1.msra.mxu0 %v2913
        %2915 = vmatprep.subr.mxu0 0.0
        %v2916 = vand.u32 %v290, 4294901760
        %v2917 = vsub.f32 %v290, %v2916
        %v2918 = vand.u32 %v2917, 4294901760
        %2919 = vmatpush1.msra.mxu0 %v2918
        %v2920 = vand.u32 %v2168, 4294901760
        %2921 = vmatprep.mubr.f32.mxu0 %v2920
        %v2922 = vand.u32 %v2166, 4294901760
        %2923 = vmatmul.mubr.f32.gmra.mrb[0].mxu0 %v2922
        %v2924 = vpop.f32.mrb[0].mxu0
        %v2925 = vadd.f32 %v2757, %v2924
        %v2926 = vpop.f32.mrb[0].mxu0
        %2927 = vdwg.mxu0
        %2928 = vmatprep.subr.mxu0 0.0
        %v2929 = vand.u32 %v259, 4294901760
        %2930 = vmatpush1.msra.mxu0 %v2929
        %2931 = vmatprep.subr.mxu0 0.0
        %v2932 = vand.u32 %v260, 4294901760
        %2933 = vmatpush1.msra.mxu0 %v2932
        %2934 = vmatprep.subr.mxu0 0.0
        %v2935 = vand.u32 %v261, 4294901760
        %2936 = vmatpush1.msra.mxu0 %v2935
        %2937 = vmatprep.subr.mxu0 0.0
        %v2938 = vand.u32 %v262, 4294901760
        %2939 = vmatpush1.msra.mxu0 %v2938
        %2940 = vmatprep.subr.mxu0 0.0
        %v2941 = vand.u32 %v263, 4294901760
        %2942 = vmatpush1.msra.mxu0 %v2941
        %2943 = vmatprep.subr.mxu0 0.0
        %v2944 = vand.u32 %v264, 4294901760
        %2945 = vmatpush1.msra.mxu0 %v2944
        %2946 = vmatprep.subr.mxu0 0.0
        %v2947 = vand.u32 %v265, 4294901760
        %2948 = vmatpush1.msra.mxu0 %v2947
        %2949 = vmatprep.subr.mxu0 0.0
        %v2950 = vand.u32 %v266, 4294901760
        %2951 = vmatpush1.msra.mxu0 %v2950
        %2952 = vmatprep.subr.mxu0 0.0
        %v2953 = vand.u32 %v267, 4294901760
        %2954 = vmatpush1.msra.mxu0 %v2953
        %2955 = vmatprep.subr.mxu0 0.0
        %v2956 = vand.u32 %v268, 4294901760
        %2957 = vmatpush1.msra.mxu0 %v2956
        %2958 = vmatprep.subr.mxu0 0.0
        %v2959 = vand.u32 %v269, 4294901760
        %2960 = vmatpush1.msra.mxu0 %v2959
        %2961 = vmatprep.subr.mxu0 0.0
        %v2962 = vand.u32 %v270, 4294901760
        %2963 = vmatpush1.msra.mxu0 %v2962
        %2964 = vmatprep.subr.mxu0 0.0
        %v2965 = vand.u32 %v271, 4294901760
        %2966 = vmatpush1.msra.mxu0 %v2965
        %2967 = vmatprep.subr.mxu0 0.0
        %v2968 = vand.u32 %v272, 4294901760
        %2969 = vmatpush1.msra.mxu0 %v2968
        %2970 = vmatprep.subr.mxu0 0.0
        %v2971 = vand.u32 %v273, 4294901760
        %2972 = vmatpush1.msra.mxu0 %v2971
        %2973 = vmatprep.subr.mxu0 0.0
        %v2974 = vand.u32 %v274, 4294901760
        %2975 = vmatpush1.msra.mxu0 %v2974
        %2976 = vmatprep.subr.mxu0 0.0
        %v2977 = vand.u32 %v275, 4294901760
        %2978 = vmatpush1.msra.mxu0 %v2977
        %2979 = vmatprep.subr.mxu0 0.0
        %v2980 = vand.u32 %v276, 4294901760
        %2981 = vmatpush1.msra.mxu0 %v2980
        %2982 = vmatprep.subr.mxu0 0.0
        %v2983 = vand.u32 %v277, 4294901760
        %2984 = vmatpush1.msra.mxu0 %v2983
        %2985 = vmatprep.subr.mxu0 0.0
        %v2986 = vand.u32 %v278, 4294901760
        %2987 = vmatpush1.msra.mxu0 %v2986
        %2988 = vmatprep.subr.mxu0 0.0
        %v2989 = vand.u32 %v279, 4294901760
        %2990 = vmatpush1.msra.mxu0 %v2989
        %2991 = vmatprep.subr.mxu0 0.0
        %v2992 = vand.u32 %v280, 4294901760
        %2993 = vmatpush1.msra.mxu0 %v2992
        %2994 = vmatprep.subr.mxu0 0.0
        %v2995 = vand.u32 %v281, 4294901760
        %2996 = vmatpush1.msra.mxu0 %v2995
        %2997 = vmatprep.subr.mxu0 0.0
        %v2998 = vand.u32 %v282, 4294901760
        %2999 = vmatpush1.msra.mxu0 %v2998
        %3000 = vmatprep.subr.mxu0 0.0
        %v3001 = vand.u32 %v283, 4294901760
        %3002 = vmatpush1.msra.mxu0 %v3001
        %3003 = vmatprep.subr.mxu0 0.0
        %v3004 = vand.u32 %v284, 4294901760
        %3005 = vmatpush1.msra.mxu0 %v3004
        %3006 = vmatprep.subr.mxu0 0.0
        %v3007 = vand.u32 %v285, 4294901760
        %3008 = vmatpush1.msra.mxu0 %v3007
        %3009 = vmatprep.subr.mxu0 0.0
        %v3010 = vand.u32 %v286, 4294901760
        %3011 = vmatpush1.msra.mxu0 %v3010
        %3012 = vmatprep.subr.mxu0 0.0
        %v3013 = vand.u32 %v287, 4294901760
        %3014 = vmatpush1.msra.mxu0 %v3013
        %3015 = vmatprep.subr.mxu0 0.0
        %v3016 = vand.u32 %v288, 4294901760
        %3017 = vmatpush1.msra.mxu0 %v3016
        %3018 = vmatprep.subr.mxu0 0.0
        %v3019 = vand.u32 %v289, 4294901760
        %3020 = vmatpush1.msra.mxu0 %v3019
        %3021 = vmatprep.subr.mxu0 0.0
        %v3022 = vand.u32 %v290, 4294901760
        %3023 = vmatpush1.msra.mxu0 %v3022
        %v3024 = vand.u32 %v2168, 4294901760
        %3025 = vmatprep.mubr.f32.mxu0 %v3024
        %v3026 = vand.u32 %v2166, 4294901760
        %3027 = vmatmul.mubr.f32.gmra.mrb[0].mxu0 %v3026
        %v3028 = vpop.f32.mrb[0].mxu0
        %v3029 = vadd.f32 %v2925, %v3028
        %v3030 = vpop.f32.mrb[0].mxu0
        %3031 = vdwg.mxu0
        %s3032 = scalar_lea.vmem %s240, 8 [#allocation2]
        %3033 = vst.msk [vmem:[%s3032] sm:$0xf] %vm1296, %v3029
        %v3034 = vmul.f32 %v424, %v429
        %v3036 = vcombine.high %v3034, %v3034
        %3038 = vmatprep.subr.mxu0 0.0
        %v3039 = vand.u32 %v259, 4294901760
        %3040 = vmatpush1.msra.mxu0 %v3039
        %3041 = vmatprep.subr.mxu0 0.0
        %v3042 = vand.u32 %v260, 4294901760
        %3043 = vmatpush1.msra.mxu0 %v3042
        %3044 = vmatprep.subr.mxu0 0.0
        %v3045 = vand.u32 %v261, 4294901760
        %3046 = vmatpush1.msra.mxu0 %v3045
        %3047 = vmatprep.subr.mxu0 0.0
        %v3048 = vand.u32 %v262, 4294901760
        %3049 = vmatpush1.msra.mxu0 %v3048
        %3050 = vmatprep.subr.mxu0 0.0
        %v3051 = vand.u32 %v263, 4294901760
        %3052 = vmatpush1.msra.mxu0 %v3051
        %3053 = vmatprep.subr.mxu0 0.0
        %v3054 = vand.u32 %v264, 4294901760
        %3055 = vmatpush1.msra.mxu0 %v3054
        %3056 = vmatprep.subr.mxu0 0.0
        %v3057 = vand.u32 %v265, 4294901760
        %3058 = vmatpush1.msra.mxu0 %v3057
        %3059 = vmatprep.subr.mxu0 0.0
        %v3060 = vand.u32 %v266, 4294901760
        %3061 = vmatpush1.msra.mxu0 %v3060
        %3062 = vmatprep.subr.mxu0 0.0
        %v3063 = vand.u32 %v267, 4294901760
        %3064 = vmatpush1.msra.mxu0 %v3063
        %3065 = vmatprep.subr.mxu0 0.0
        %v3066 = vand.u32 %v268, 4294901760
        %3067 = vmatpush1.msra.mxu0 %v3066
        %3068 = vmatprep.subr.mxu0 0.0
        %v3069 = vand.u32 %v269, 4294901760
        %3070 = vmatpush1.msra.mxu0 %v3069
        %3071 = vmatprep.subr.mxu0 0.0
        %v3072 = vand.u32 %v270, 4294901760
        %3073 = vmatpush1.msra.mxu0 %v3072
        %3074 = vmatprep.subr.mxu0 0.0
        %v3075 = vand.u32 %v271, 4294901760
        %3076 = vmatpush1.msra.mxu0 %v3075
        %3077 = vmatprep.subr.mxu0 0.0
        %v3078 = vand.u32 %v272, 4294901760
        %3079 = vmatpush1.msra.mxu0 %v3078
        %3080 = vmatprep.subr.mxu0 0.0
        %v3081 = vand.u32 %v273, 4294901760
        %3082 = vmatpush1.msra.mxu0 %v3081
        %3083 = vmatprep.subr.mxu0 0.0
        %v3084 = vand.u32 %v274, 4294901760
        %3085 = vmatpush1.msra.mxu0 %v3084
        %3086 = vmatprep.subr.mxu0 0.0
        %v3087 = vand.u32 %v275, 4294901760
        %3088 = vmatpush1.msra.mxu0 %v3087
        %3089 = vmatprep.subr.mxu0 0.0
        %v3090 = vand.u32 %v276, 4294901760
        %3091 = vmatpush1.msra.mxu0 %v3090
        %3092 = vmatprep.subr.mxu0 0.0
        %v3093 = vand.u32 %v277, 4294901760
        %3094 = vmatpush1.msra.mxu0 %v3093
        %3095 = vmatprep.subr.mxu0 0.0
        %v3096 = vand.u32 %v278, 4294901760
        %3097 = vmatpush1.msra.mxu0 %v3096
        %3098 = vmatprep.subr.mxu0 0.0
        %v3099 = vand.u32 %v279, 4294901760
        %3100 = vmatpush1.msra.mxu0 %v3099
        %3101 = vmatprep.subr.mxu0 0.0
        %v3102 = vand.u32 %v280, 4294901760
        %3103 = vmatpush1.msra.mxu0 %v3102
        %3104 = vmatprep.subr.mxu0 0.0
        %v3105 = vand.u32 %v281, 4294901760
        %3106 = vmatpush1.msra.mxu0 %v3105
        %3107 = vmatprep.subr.mxu0 0.0
        %v3108 = vand.u32 %v282, 4294901760
        %3109 = vmatpush1.msra.mxu0 %v3108
        %3110 = vmatprep.subr.mxu0 0.0
        %v3111 = vand.u32 %v283, 4294901760
        %3112 = vmatpush1.msra.mxu0 %v3111
        %3113 = vmatprep.subr.mxu0 0.0
        %v3114 = vand.u32 %v284, 4294901760
        %3115 = vmatpush1.msra.mxu0 %v3114
        %3116 = vmatprep.subr.mxu0 0.0
        %v3117 = vand.u32 %v285, 4294901760
        %3118 = vmatpush1.msra.mxu0 %v3117
        %3119 = vmatprep.subr.mxu0 0.0
        %v3120 = vand.u32 %v286, 4294901760
        %3121 = vmatpush1.msra.mxu0 %v3120
        %3122 = vmatprep.subr.mxu0 0.0
        %v3123 = vand.u32 %v287, 4294901760
        %3124 = vmatpush1.msra.mxu0 %v3123
        %3125 = vmatprep.subr.mxu0 0.0
        %v3126 = vand.u32 %v288, 4294901760
        %3127 = vmatpush1.msra.mxu0 %v3126
        %3128 = vmatprep.subr.mxu0 0.0
        %v3129 = vand.u32 %v289, 4294901760
        %3130 = vmatpush1.msra.mxu0 %v3129
        %3131 = vmatprep.subr.mxu0 0.0
        %v3132 = vand.u32 %v290, 4294901760
        %3133 = vmatpush1.msra.mxu0 %v3132
        %v3134 = vand.u32 %v3036, 4294901760
        %v3135 = vsub.f32 %v3036, %v3134
        %v3136 = vand.u32 %v3135, 4294901760
        %v3137 = vsub.f32 %v3135, %v3136
        %v3138 = vand.u32 %v3137, 4294901760
        %3139 = vmatprep.mubr.f32.mxu0 %v3138
        %v3140 = vand.u32 %v3034, 4294901760
        %v3141 = vsub.f32 %v3034, %v3140
        %v3142 = vand.u32 %v3141, 4294901760
        %v3143 = vsub.f32 %v3141, %v3142
        %v3144 = vand.u32 %v3143, 4294901760
        %3145 = vmatmul.mubr.f32.gmra.mrb[0].mxu0 %v3144
        %v3146 = vpop.f32.mrb[0].mxu0
        %v3147 = vadd.f32 0.0, %v3146
        %v3148 = vpop.f32.mrb[0].mxu0
        %3149 = vdwg.mxu0
        %3150 = vmatprep.subr.mxu0 0.0
        %v3151 = vand.u32 %v259, 4294901760
        %v3152 = vsub.f32 %v259, %v3151
        %v3153 = vand.u32 %v3152, 4294901760
        %v3154 = vsub.f32 %v3152, %v3153
        %v3155 = vand.u32 %v3154, 4294901760
        %3156 = vmatpush1.msra.mxu0 %v3155
        %3157 = vmatprep.subr.mxu0 0.0
        %v3158 = vand.u32 %v260, 4294901760
        %v3159 = vsub.f32 %v260, %v3158
        %v3160 = vand.u32 %v3159, 4294901760
        %v3161 = vsub.f32 %v3159, %v3160
        %v3162 = vand.u32 %v3161, 4294901760
        %3163 = vmatpush1.msra.mxu0 %v3162
        %3164 = vmatprep.subr.mxu0 0.0
        %v3165 = vand.u32 %v261, 4294901760
        %v3166 = vsub.f32 %v261, %v3165
        %v3167 = vand.u32 %v3166, 4294901760
        %v3168 = vsub.f32 %v3166, %v3167
        %v3169 = vand.u32 %v3168, 4294901760
        %3170 = vmatpush1.msra.mxu0 %v3169
        %3171 = vmatprep.subr.mxu0 0.0
        %v3172 = vand.u32 %v262, 4294901760
        %v3173 = vsub.f32 %v262, %v3172
        %v3174 = vand.u32 %v3173, 4294901760
        %v3175 = vsub.f32 %v3173, %v3174
        %v3176 = vand.u32 %v3175, 4294901760
        %3177 = vmatpush1.msra.mxu0 %v3176
        %3178 = vmatprep.subr.mxu0 0.0
        %v3179 = vand.u32 %v263, 4294901760
        %v3180 = vsub.f32 %v263, %v3179
        %v3181 = vand.u32 %v3180, 4294901760
        %v3182 = vsub.f32 %v3180, %v3181
        %v3183 = vand.u32 %v3182, 4294901760
        %3184 = vmatpush1.msra.mxu0 %v3183
        %3185 = vmatprep.subr.mxu0 0.0
        %v3186 = vand.u32 %v264, 4294901760
        %v3187 = vsub.f32 %v264, %v3186
        %v3188 = vand.u32 %v3187, 4294901760
        %v3189 = vsub.f32 %v3187, %v3188
        %v3190 = vand.u32 %v3189, 4294901760
        %3191 = vmatpush1.msra.mxu0 %v3190
        %3192 = vmatprep.subr.mxu0 0.0
        %v3193 = vand.u32 %v265, 4294901760
        %v3194 = vsub.f32 %v265, %v3193
        %v3195 = vand.u32 %v3194, 4294901760
        %v3196 = vsub.f32 %v3194, %v3195
        %v3197 = vand.u32 %v3196, 4294901760
        %3198 = vmatpush1.msra.mxu0 %v3197
        %3199 = vmatprep.subr.mxu0 0.0
        %v3200 = vand.u32 %v266, 4294901760
        %v3201 = vsub.f32 %v266, %v3200
        %v3202 = vand.u32 %v3201, 4294901760
        %v3203 = vsub.f32 %v3201, %v3202
        %v3204 = vand.u32 %v3203, 4294901760
        %3205 = vmatpush1.msra.mxu0 %v3204
        %3206 = vmatprep.subr.mxu0 0.0
        %v3207 = vand.u32 %v267, 4294901760
        %v3208 = vsub.f32 %v267, %v3207
        %v3209 = vand.u32 %v3208, 4294901760
        %v3210 = vsub.f32 %v3208, %v3209
        %v3211 = vand.u32 %v3210, 4294901760
        %3212 = vmatpush1.msra.mxu0 %v3211
        %3213 = vmatprep.subr.mxu0 0.0
        %v3214 = vand.u32 %v268, 4294901760
        %v3215 = vsub.f32 %v268, %v3214
        %v3216 = vand.u32 %v3215, 4294901760
        %v3217 = vsub.f32 %v3215, %v3216
        %v3218 = vand.u32 %v3217, 4294901760
        %3219 = vmatpush1.msra.mxu0 %v3218
        %3220 = vmatprep.subr.mxu0 0.0
        %v3221 = vand.u32 %v269, 4294901760
        %v3222 = vsub.f32 %v269, %v3221
        %v3223 = vand.u32 %v3222, 4294901760
        %v3224 = vsub.f32 %v3222, %v3223
        %v3225 = vand.u32 %v3224, 4294901760
        %3226 = vmatpush1.msra.mxu0 %v3225
        %3227 = vmatprep.subr.mxu0 0.0
        %v3228 = vand.u32 %v270, 4294901760
        %v3229 = vsub.f32 %v270, %v3228
        %v3230 = vand.u32 %v3229, 4294901760
        %v3231 = vsub.f32 %v3229, %v3230
        %v3232 = vand.u32 %v3231, 4294901760
        %3233 = vmatpush1.msra.mxu0 %v3232
        %3234 = vmatprep.subr.mxu0 0.0
        %v3235 = vand.u32 %v271, 4294901760
        %v3236 = vsub.f32 %v271, %v3235
        %v3237 = vand.u32 %v3236, 4294901760
        %v3238 = vsub.f32 %v3236, %v3237
        %v3239 = vand.u32 %v3238, 4294901760
        %3240 = vmatpush1.msra.mxu0 %v3239
        %3241 = vmatprep.subr.mxu0 0.0
        %v3242 = vand.u32 %v272, 4294901760
        %v3243 = vsub.f32 %v272, %v3242
        %v3244 = vand.u32 %v3243, 4294901760
        %v3245 = vsub.f32 %v3243, %v3244
        %v3246 = vand.u32 %v3245, 4294901760
        %3247 = vmatpush1.msra.mxu0 %v3246
        %3248 = vmatprep.subr.mxu0 0.0
        %v3249 = vand.u32 %v273, 4294901760
        %v3250 = vsub.f32 %v273, %v3249
        %v3251 = vand.u32 %v3250, 4294901760
        %v3252 = vsub.f32 %v3250, %v3251
        %v3253 = vand.u32 %v3252, 4294901760
        %3254 = vmatpush1.msra.mxu0 %v3253
        %3255 = vmatprep.subr.mxu0 0.0
        %v3256 = vand.u32 %v274, 4294901760
        %v3257 = vsub.f32 %v274, %v3256
        %v3258 = vand.u32 %v3257, 4294901760
        %v3259 = vsub.f32 %v3257, %v3258
        %v3260 = vand.u32 %v3259, 4294901760
        %3261 = vmatpush1.msra.mxu0 %v3260
        %3262 = vmatprep.subr.mxu0 0.0
        %v3263 = vand.u32 %v275, 4294901760
        %v3264 = vsub.f32 %v275, %v3263
        %v3265 = vand.u32 %v3264, 4294901760
        %v3266 = vsub.f32 %v3264, %v3265
        %v3267 = vand.u32 %v3266, 4294901760
        %3268 = vmatpush1.msra.mxu0 %v3267
        %3269 = vmatprep.subr.mxu0 0.0
        %v3270 = vand.u32 %v276, 4294901760
        %v3271 = vsub.f32 %v276, %v3270
        %v3272 = vand.u32 %v3271, 4294901760
        %v3273 = vsub.f32 %v3271, %v3272
        %v3274 = vand.u32 %v3273, 4294901760
        %3275 = vmatpush1.msra.mxu0 %v3274
        %3276 = vmatprep.subr.mxu0 0.0
        %v3277 = vand.u32 %v277, 4294901760
        %v3278 = vsub.f32 %v277, %v3277
        %v3279 = vand.u32 %v3278, 4294901760
        %v3280 = vsub.f32 %v3278, %v3279
        %v3281 = vand.u32 %v3280, 4294901760
        %3282 = vmatpush1.msra.mxu0 %v3281
        %3283 = vmatprep.subr.mxu0 0.0
        %v3284 = vand.u32 %v278, 4294901760
        %v3285 = vsub.f32 %v278, %v3284
        %v3286 = vand.u32 %v3285, 4294901760
        %v3287 = vsub.f32 %v3285, %v3286
        %v3288 = vand.u32 %v3287, 4294901760
        %3289 = vmatpush1.msra.mxu0 %v3288
        %3290 = vmatprep.subr.mxu0 0.0
        %v3291 = vand.u32 %v279, 4294901760
        %v3292 = vsub.f32 %v279, %v3291
        %v3293 = vand.u32 %v3292, 4294901760
        %v3294 = vsub.f32 %v3292, %v3293
        %v3295 = vand.u32 %v3294, 4294901760
        %3296 = vmatpush1.msra.mxu0 %v3295
        %3297 = vmatprep.subr.mxu0 0.0
        %v3298 = vand.u32 %v280, 4294901760
        %v3299 = vsub.f32 %v280, %v3298
        %v3300 = vand.u32 %v3299, 4294901760
        %v3301 = vsub.f32 %v3299, %v3300
        %v3302 = vand.u32 %v3301, 4294901760
        %3303 = vmatpush1.msra.mxu0 %v3302
        %3304 = vmatprep.subr.mxu0 0.0
        %v3305 = vand.u32 %v281, 4294901760
        %v3306 = vsub.f32 %v281, %v3305
        %v3307 = vand.u32 %v3306, 4294901760
        %v3308 = vsub.f32 %v3306, %v3307
        %v3309 = vand.u32 %v3308, 4294901760
        %3310 = vmatpush1.msra.mxu0 %v3309
        %3311 = vmatprep.subr.mxu0 0.0
        %v3312 = vand.u32 %v282, 4294901760
        %v3313 = vsub.f32 %v282, %v3312
        %v3314 = vand.u32 %v3313, 4294901760
        %v3315 = vsub.f32 %v3313, %v3314
        %v3316 = vand.u32 %v3315, 4294901760
        %3317 = vmatpush1.msra.mxu0 %v3316
        %3318 = vmatprep.subr.mxu0 0.0
        %v3319 = vand.u32 %v283, 4294901760
        %v3320 = vsub.f32 %v283, %v3319
        %v3321 = vand.u32 %v3320, 4294901760
        %v3322 = vsub.f32 %v3320, %v3321
        %v3323 = vand.u32 %v3322, 4294901760
        %3324 = vmatpush1.msra.mxu0 %v3323
        %3325 = vmatprep.subr.mxu0 0.0
        %v3326 = vand.u32 %v284, 4294901760
        %v3327 = vsub.f32 %v284, %v3326
        %v3328 = vand.u32 %v3327, 4294901760
        %v3329 = vsub.f32 %v3327, %v3328
        %v3330 = vand.u32 %v3329, 4294901760
        %3331 = vmatpush1.msra.mxu0 %v3330
        %3332 = vmatprep.subr.mxu0 0.0
        %v3333 = vand.u32 %v285, 4294901760
        %v3334 = vsub.f32 %v285, %v3333
        %v3335 = vand.u32 %v3334, 4294901760
        %v3336 = vsub.f32 %v3334, %v3335
        %v3337 = vand.u32 %v3336, 4294901760
        %3338 = vmatpush1.msra.mxu0 %v3337
        %3339 = vmatprep.subr.mxu0 0.0
        %v3340 = vand.u32 %v286, 4294901760
        %v3341 = vsub.f32 %v286, %v3340
        %v3342 = vand.u32 %v3341, 4294901760
        %v3343 = vsub.f32 %v3341, %v3342
        %v3344 = vand.u32 %v3343, 4294901760
        %3345 = vmatpush1.msra.mxu0 %v3344
        %3346 = vmatprep.subr.mxu0 0.0
        %v3347 = vand.u32 %v287, 4294901760
        %v3348 = vsub.f32 %v287, %v3347
        %v3349 = vand.u32 %v3348, 4294901760
        %v3350 = vsub.f32 %v3348, %v3349
        %v3351 = vand.u32 %v3350, 4294901760
        %3352 = vmatpush1.msra.mxu0 %v3351
        %3353 = vmatprep.subr.mxu0 0.0
        %v3354 = vand.u32 %v288, 4294901760
        %v3355 = vsub.f32 %v288, %v3354
        %v3356 = vand.u32 %v3355, 4294901760
        %v3357 = vsub.f32 %v3355, %v3356
        %v3358 = vand.u32 %v3357, 4294901760
        %3359 = vmatpush1.msra.mxu0 %v3358
        %3360 = vmatprep.subr.mxu0 0.0
        %v3361 = vand.u32 %v289, 4294901760
        %v3362 = vsub.f32 %v289, %v3361
        %v3363 = vand.u32 %v3362, 4294901760
        %v3364 = vsub.f32 %v3362, %v3363
        %v3365 = vand.u32 %v3364, 4294901760
        %3366 = vmatpush1.msra.mxu0 %v3365
        %3367 = vmatprep.subr.mxu0 0.0
        %v3368 = vand.u32 %v290, 4294901760
        %v3369 = vsub.f32 %v290, %v3368
        %v3370 = vand.u32 %v3369, 4294901760
        %v3371 = vsub.f32 %v3369, %v3370
        %v3372 = vand.u32 %v3371, 4294901760
        %3373 = vmatpush1.msra.mxu0 %v3372
        %v3374 = vand.u32 %v3036, 4294901760
        %3375 = vmatprep.mubr.f32.mxu0 %v3374
        %v3376 = vand.u32 %v3034, 4294901760
        %3377 = vmatmul.mubr.f32.gmra.mrb[0].mxu0 %v3376
        %v3378 = vpop.f32.mrb[0].mxu0
        %v3379 = vadd.f32 %v3147, %v3378
        %v3380 = vpop.f32.mrb[0].mxu0
        %3381 = vdwg.mxu0
        %3382 = vmatprep.subr.mxu0 0.0
        %v3383 = vand.u32 %v259, 4294901760
        %v3384 = vsub.f32 %v259, %v3383
        %3385 = vmatpush1.msra.mxu0 %v3384
        %3386 = vmatprep.subr.mxu0 0.0
        %v3387 = vand.u32 %v260, 4294901760
        %v3388 = vsub.f32 %v260, %v3387
        %3389 = vmatpush1.msra.mxu0 %v3388
        %3390 = vmatprep.subr.mxu0 0.0
        %v3391 = vand.u32 %v261, 4294901760
        %v3392 = vsub.f32 %v261, %v3391
        %3393 = vmatpush1.msra.mxu0 %v3392
        %3394 = vmatprep.subr.mxu0 0.0
        %v3395 = vand.u32 %v262, 4294901760
        %v3396 = vsub.f32 %v262, %v3395
        %3397 = vmatpush1.msra.mxu0 %v3396
        %3398 = vmatprep.subr.mxu0 0.0
        %v3399 = vand.u32 %v263, 4294901760
        %v3400 = vsub.f32 %v263, %v3399
        %3401 = vmatpush1.msra.mxu0 %v3400
        %3402 = vmatprep.subr.mxu0 0.0
        %v3403 = vand.u32 %v264, 4294901760
        %v3404 = vsub.f32 %v264, %v3403
        %3405 = vmatpush1.msra.mxu0 %v3404
        %3406 = vmatprep.subr.mxu0 0.0
        %v3407 = vand.u32 %v265, 4294901760
        %v3408 = vsub.f32 %v265, %v3407
        %3409 = vmatpush1.msra.mxu0 %v3408
        %3410 = vmatprep.subr.mxu0 0.0
        %v3411 = vand.u32 %v266, 4294901760
        %v3412 = vsub.f32 %v266, %v3411
        %3413 = vmatpush1.msra.mxu0 %v3412
        %3414 = vmatprep.subr.mxu0 0.0
        %v3415 = vand.u32 %v267, 4294901760
        %v3416 = vsub.f32 %v267, %v3415
        %3417 = vmatpush1.msra.mxu0 %v3416
        %3418 = vmatprep.subr.mxu0 0.0
        %v3419 = vand.u32 %v268, 4294901760
        %v3420 = vsub.f32 %v268, %v3419
        %3421 = vmatpush1.msra.mxu0 %v3420
        %3422 = vmatprep.subr.mxu0 0.0
        %v3423 = vand.u32 %v269, 4294901760
        %v3424 = vsub.f32 %v269, %v3423
        %3425 = vmatpush1.msra.mxu0 %v3424
        %3426 = vmatprep.subr.mxu0 0.0
        %v3427 = vand.u32 %v270, 4294901760
        %v3428 = vsub.f32 %v270, %v3427
        %3429 = vmatpush1.msra.mxu0 %v3428
        %3430 = vmatprep.subr.mxu0 0.0
        %v3431 = vand.u32 %v271, 4294901760
        %v3432 = vsub.f32 %v271, %v3431
        %3433 = vmatpush1.msra.mxu0 %v3432
        %3434 = vmatprep.subr.mxu0 0.0
        %v3435 = vand.u32 %v272, 4294901760
        %v3436 = vsub.f32 %v272, %v3435
        %3437 = vmatpush1.msra.mxu0 %v3436
        %3438 = vmatprep.subr.mxu0 0.0
        %v3439 = vand.u32 %v273, 4294901760
        %v3440 = vsub.f32 %v273, %v3439
        %3441 = vmatpush1.msra.mxu0 %v3440
        %3442 = vmatprep.subr.mxu0 0.0
        %v3443 = vand.u32 %v274, 4294901760
        %v3444 = vsub.f32 %v274, %v3443
        %3445 = vmatpush1.msra.mxu0 %v3444
        %3446 = vmatprep.subr.mxu0 0.0
        %v3447 = vand.u32 %v275, 4294901760
        %v3448 = vsub.f32 %v275, %v3447
        %3449 = vmatpush1.msra.mxu0 %v3448
        %3450 = vmatprep.subr.mxu0 0.0
        %v3451 = vand.u32 %v276, 4294901760
        %v3452 = vsub.f32 %v276, %v3451
        %3453 = vmatpush1.msra.mxu0 %v3452
        %3454 = vmatprep.subr.mxu0 0.0
        %v3455 = vand.u32 %v277, 4294901760
        %v3456 = vsub.f32 %v277, %v3455
        %3457 = vmatpush1.msra.mxu0 %v3456
        %3458 = vmatprep.subr.mxu0 0.0
        %v3459 = vand.u32 %v278, 4294901760
        %v3460 = vsub.f32 %v278, %v3459
        %3461 = vmatpush1.msra.mxu0 %v3460
        %3462 = vmatprep.subr.mxu0 0.0
        %v3463 = vand.u32 %v279, 4294901760
        %v3464 = vsub.f32 %v279, %v3463
        %3465 = vmatpush1.msra.mxu0 %v3464
        %3466 = vmatprep.subr.mxu0 0.0
        %v3467 = vand.u32 %v280, 4294901760
        %v3468 = vsub.f32 %v280, %v3467
        %3469 = vmatpush1.msra.mxu0 %v3468
        %3470 = vmatprep.subr.mxu0 0.0
        %v3471 = vand.u32 %v281, 4294901760
        %v3472 = vsub.f32 %v281, %v3471
        %3473 = vmatpush1.msra.mxu0 %v3472
        %3474 = vmatprep.subr.mxu0 0.0
        %v3475 = vand.u32 %v282, 4294901760
        %v3476 = vsub.f32 %v282, %v3475
        %3477 = vmatpush1.msra.mxu0 %v3476
        %3478 = vmatprep.subr.mxu0 0.0
        %v3479 = vand.u32 %v283, 4294901760
        %v3480 = vsub.f32 %v283, %v3479
        %3481 = vmatpush1.msra.mxu0 %v3480
        %3482 = vmatprep.subr.mxu0 0.0
        %v3483 = vand.u32 %v284, 4294901760
        %v3484 = vsub.f32 %v284, %v3483
        %3485 = vmatpush1.msra.mxu0 %v3484
        %3486 = vmatprep.subr.mxu0 0.0
        %v3487 = vand.u32 %v285, 4294901760
        %v3488 = vsub.f32 %v285, %v3487
        %3489 = vmatpush1.msra.mxu0 %v3488
        %3490 = vmatprep.subr.mxu0 0.0
        %v3491 = vand.u32 %v286, 4294901760
        %v3492 = vsub.f32 %v286, %v3491
        %3493 = vmatpush1.msra.mxu0 %v3492
        %3494 = vmatprep.subr.mxu0 0.0
        %v3495 = vand.u32 %v287, 4294901760
        %v3496 = vsub.f32 %v287, %v3495
        %3497 = vmatpush1.msra.mxu0 %v3496
        %3498 = vmatprep.subr.mxu0 0.0
        %v3499 = vand.u32 %v288, 4294901760
        %v3500 = vsub.f32 %v288, %v3499
        %3501 = vmatpush1.msra.mxu0 %v3500
        %3502 = vmatprep.subr.mxu0 0.0
        %v3503 = vand.u32 %v289, 4294901760
        %v3504 = vsub.f32 %v289, %v3503
        %3505 = vmatpush1.msra.mxu0 %v3504
        %3506 = vmatprep.subr.mxu0 0.0
        %v3507 = vand.u32 %v290, 4294901760
        %v3508 = vsub.f32 %v290, %v3507
        %3509 = vmatpush1.msra.mxu0 %v3508
        %v3510 = vand.u32 %v3036, 4294901760
        %v3511 = vsub.f32 %v3036, %v3510
        %3512 = vmatprep.mubr.f32.mxu0 %v3511
        %v3513 = vand.u32 %v3034, 4294901760
        %v3514 = vsub.f32 %v3034, %v3513
        %3515 = vmatmul.mubr.f32.gmra.mrb[0].mxu0 %v3514
        %v3516 = vpop.f32.mrb[0].mxu0
        %v3517 = vadd.f32 %v3379, %v3516
        %v3518 = vpop.f32.mrb[0].mxu0
        %3519 = vdwg.mxu0
        %3520 = vmatprep.subr.mxu0 0.0
        %v3521 = vand.u32 %v259, 4294901760
        %3522 = vmatpush1.msra.mxu0 %v3521
        %3523 = vmatprep.subr.mxu0 0.0
        %v3524 = vand.u32 %v260, 4294901760
        %3525 = vmatpush1.msra.mxu0 %v3524
        %3526 = vmatprep.subr.mxu0 0.0
        %v3527 = vand.u32 %v261, 4294901760
        %3528 = vmatpush1.msra.mxu0 %v3527
        %3529 = vmatprep.subr.mxu0 0.0
        %v3530 = vand.u32 %v262, 4294901760
        %3531 = vmatpush1.msra.mxu0 %v3530
        %3532 = vmatprep.subr.mxu0 0.0
        %v3533 = vand.u32 %v263, 4294901760
        %3534 = vmatpush1.msra.mxu0 %v3533
        %3535 = vmatprep.subr.mxu0 0.0
        %v3536 = vand.u32 %v264, 4294901760
        %3537 = vmatpush1.msra.mxu0 %v3536
        %3538 = vmatprep.subr.mxu0 0.0
        %v3539 = vand.u32 %v265, 4294901760
        %3540 = vmatpush1.msra.mxu0 %v3539
        %3541 = vmatprep.subr.mxu0 0.0
        %v3542 = vand.u32 %v266, 4294901760
        %3543 = vmatpush1.msra.mxu0 %v3542
        %3544 = vmatprep.subr.mxu0 0.0
        %v3545 = vand.u32 %v267, 4294901760
        %3546 = vmatpush1.msra.mxu0 %v3545
        %3547 = vmatprep.subr.mxu0 0.0
        %v3548 = vand.u32 %v268, 4294901760
        %3549 = vmatpush1.msra.mxu0 %v3548
        %3550 = vmatprep.subr.mxu0 0.0
        %v3551 = vand.u32 %v269, 4294901760
        %3552 = vmatpush1.msra.mxu0 %v3551
        %3553 = vmatprep.subr.mxu0 0.0
        %v3554 = vand.u32 %v270, 4294901760
        %3555 = vmatpush1.msra.mxu0 %v3554
        %3556 = vmatprep.subr.mxu0 0.0
        %v3557 = vand.u32 %v271, 4294901760
        %3558 = vmatpush1.msra.mxu0 %v3557
        %3559 = vmatprep.subr.mxu0 0.0
        %v3560 = vand.u32 %v272, 4294901760
        %3561 = vmatpush1.msra.mxu0 %v3560
        %3562 = vmatprep.subr.mxu0 0.0
        %v3563 = vand.u32 %v273, 4294901760
        %3564 = vmatpush1.msra.mxu0 %v3563
        %3565 = vmatprep.subr.mxu0 0.0
        %v3566 = vand.u32 %v274, 4294901760
        %3567 = vmatpush1.msra.mxu0 %v3566
        %3568 = vmatprep.subr.mxu0 0.0
        %v3569 = vand.u32 %v275, 4294901760
        %3570 = vmatpush1.msra.mxu0 %v3569
        %3571 = vmatprep.subr.mxu0 0.0
        %v3572 = vand.u32 %v276, 4294901760
        %3573 = vmatpush1.msra.mxu0 %v3572
        %3574 = vmatprep.subr.mxu0 0.0
        %v3575 = vand.u32 %v277, 4294901760
        %3576 = vmatpush1.msra.mxu0 %v3575
        %3577 = vmatprep.subr.mxu0 0.0
        %v3578 = vand.u32 %v278, 4294901760
        %3579 = vmatpush1.msra.mxu0 %v3578
        %3580 = vmatprep.subr.mxu0 0.0
        %v3581 = vand.u32 %v279, 4294901760
        %3582 = vmatpush1.msra.mxu0 %v3581
        %3583 = vmatprep.subr.mxu0 0.0
        %v3584 = vand.u32 %v280, 4294901760
        %3585 = vmatpush1.msra.mxu0 %v3584
        %3586 = vmatprep.subr.mxu0 0.0
        %v3587 = vand.u32 %v281, 4294901760
        %3588 = vmatpush1.msra.mxu0 %v3587
        %3589 = vmatprep.subr.mxu0 0.0
        %v3590 = vand.u32 %v282, 4294901760
        %3591 = vmatpush1.msra.mxu0 %v3590
        %3592 = vmatprep.subr.mxu0 0.0
        %v3593 = vand.u32 %v283, 4294901760
        %3594 = vmatpush1.msra.mxu0 %v3593
        %3595 = vmatprep.subr.mxu0 0.0
        %v3596 = vand.u32 %v284, 4294901760
        %3597 = vmatpush1.msra.mxu0 %v3596
        %3598 = vmatprep.subr.mxu0 0.0
        %v3599 = vand.u32 %v285, 4294901760
        %3600 = vmatpush1.msra.mxu0 %v3599
        %3601 = vmatprep.subr.mxu0 0.0
        %v3602 = vand.u32 %v286, 4294901760
        %3603 = vmatpush1.msra.mxu0 %v3602
        %3604 = vmatprep.subr.mxu0 0.0
        %v3605 = vand.u32 %v287, 4294901760
        %3606 = vmatpush1.msra.mxu0 %v3605
        %3607 = vmatprep.subr.mxu0 0.0
        %v3608 = vand.u32 %v288, 4294901760
        %3609 = vmatpush1.msra.mxu0 %v3608
        %3610 = vmatprep.subr.mxu0 0.0
        %v3611 = vand.u32 %v289, 4294901760
        %3612 = vmatpush1.msra.mxu0 %v3611
        %3613 = vmatprep.subr.mxu0 0.0
        %v3614 = vand.u32 %v290, 4294901760
        %3615 = vmatpush1.msra.mxu0 %v3614
        %v3616 = vand.u32 %v3036, 4294901760
        %v3617 = vsub.f32 %v3036, %v3616
        %v3618 = vand.u32 %v3617, 4294901760
        %3619 = vmatprep.mubr.f32.mxu0 %v3618
        %v3620 = vand.u32 %v3034, 4294901760
        %v3621 = vsub.f32 %v3034, %v3620
        %v3622 = vand.u32 %v3621, 4294901760
        %3623 = vmatmul.mubr.f32.gmra.mrb[0].mxu0 %v3622
        %v3624 = vpop.f32.mrb[0].mxu0
        %v3625 = vadd.f32 %v3517, %v3624
        %v3626 = vpop.f32.mrb[0].mxu0
        %3627 = vdwg.mxu0
        %3628 = vmatprep.subr.mxu0 0.0
        %v3629 = vand.u32 %v259, 4294901760
        %v3630 = vsub.f32 %v259, %v3629
        %v3631 = vand.u32 %v3630, 4294901760
        %3632 = vmatpush1.msra.mxu0 %v3631
        %3633 = vmatprep.subr.mxu0 0.0
        %v3634 = vand.u32 %v260, 4294901760
        %v3635 = vsub.f32 %v260, %v3634
        %v3636 = vand.u32 %v3635, 4294901760
        %3637 = vmatpush1.msra.mxu0 %v3636
        %3638 = vmatprep.subr.mxu0 0.0
        %v3639 = vand.u32 %v261, 4294901760
        %v3640 = vsub.f32 %v261, %v3639
        %v3641 = vand.u32 %v3640, 4294901760
        %3642 = vmatpush1.msra.mxu0 %v3641
        %3643 = vmatprep.subr.mxu0 0.0
        %v3644 = vand.u32 %v262, 4294901760
        %v3645 = vsub.f32 %v262, %v3644
        %v3646 = vand.u32 %v3645, 4294901760
        %3647 = vmatpush1.msra.mxu0 %v3646
        %3648 = vmatprep.subr.mxu0 0.0
        %v3649 = vand.u32 %v263, 4294901760
        %v3650 = vsub.f32 %v263, %v3649
        %v3651 = vand.u32 %v3650, 4294901760
        %3652 = vmatpush1.msra.mxu0 %v3651
        %3653 = vmatprep.subr.mxu0 0.0
        %v3654 = vand.u32 %v264, 4294901760
        %v3655 = vsub.f32 %v264, %v3654
        %v3656 = vand.u32 %v3655, 4294901760
        %3657 = vmatpush1.msra.mxu0 %v3656
        %3658 = vmatprep.subr.mxu0 0.0
        %v3659 = vand.u32 %v265, 4294901760
        %v3660 = vsub.f32 %v265, %v3659
        %v3661 = vand.u32 %v3660, 4294901760
        %3662 = vmatpush1.msra.mxu0 %v3661
        %3663 = vmatprep.subr.mxu0 0.0
        %v3664 = vand.u32 %v266, 4294901760
        %v3665 = vsub.f32 %v266, %v3664
        %v3666 = vand.u32 %v3665, 4294901760
        %3667 = vmatpush1.msra.mxu0 %v3666
        %3668 = vmatprep.subr.mxu0 0.0
        %v3669 = vand.u32 %v267, 4294901760
        %v3670 = vsub.f32 %v267, %v3669
        %v3671 = vand.u32 %v3670, 4294901760
        %3672 = vmatpush1.msra.mxu0 %v3671
        %3673 = vmatprep.subr.mxu0 0.0
        %v3674 = vand.u32 %v268, 4294901760
        %v3675 = vsub.f32 %v268, %v3674
        %v3676 = vand.u32 %v3675, 4294901760
        %3677 = vmatpush1.msra.mxu0 %v3676
        %3678 = vmatprep.subr.mxu0 0.0
        %v3679 = vand.u32 %v269, 4294901760
        %v3680 = vsub.f32 %v269, %v3679
        %v3681 = vand.u32 %v3680, 4294901760
        %3682 = vmatpush1.msra.mxu0 %v3681
        %3683 = vmatprep.subr.mxu0 0.0
        %v3684 = vand.u32 %v270, 4294901760
        %v3685 = vsub.f32 %v270, %v3684
        %v3686 = vand.u32 %v3685, 4294901760
        %3687 = vmatpush1.msra.mxu0 %v3686
        %3688 = vmatprep.subr.mxu0 0.0
        %v3689 = vand.u32 %v271, 4294901760
        %v3690 = vsub.f32 %v271, %v3689
        %v3691 = vand.u32 %v3690, 4294901760
        %3692 = vmatpush1.msra.mxu0 %v3691
        %3693 = vmatprep.subr.mxu0 0.0
        %v3694 = vand.u32 %v272, 4294901760
        %v3695 = vsub.f32 %v272, %v3694
        %v3696 = vand.u32 %v3695, 4294901760
        %3697 = vmatpush1.msra.mxu0 %v3696
        %3698 = vmatprep.subr.mxu0 0.0
        %v3699 = vand.u32 %v273, 4294901760
        %v3700 = vsub.f32 %v273, %v3699
        %v3701 = vand.u32 %v3700, 4294901760
        %3702 = vmatpush1.msra.mxu0 %v3701
        %3703 = vmatprep.subr.mxu0 0.0
        %v3704 = vand.u32 %v274, 4294901760
        %v3705 = vsub.f32 %v274, %v3704
        %v3706 = vand.u32 %v3705, 4294901760
        %3707 = vmatpush1.msra.mxu0 %v3706
        %3708 = vmatprep.subr.mxu0 0.0
        %v3709 = vand.u32 %v275, 4294901760
        %v3710 = vsub.f32 %v275, %v3709
        %v3711 = vand.u32 %v3710, 4294901760
        %3712 = vmatpush1.msra.mxu0 %v3711
        %3713 = vmatprep.subr.mxu0 0.0
        %v3714 = vand.u32 %v276, 4294901760
        %v3715 = vsub.f32 %v276, %v3714
        %v3716 = vand.u32 %v3715, 4294901760
        %3717 = vmatpush1.msra.mxu0 %v3716
        %3718 = vmatprep.subr.mxu0 0.0
        %v3719 = vand.u32 %v277, 4294901760
        %v3720 = vsub.f32 %v277, %v3719
        %v3721 = vand.u32 %v3720, 4294901760
        %3722 = vmatpush1.msra.mxu0 %v3721
        %3723 = vmatprep.subr.mxu0 0.0
        %v3724 = vand.u32 %v278, 4294901760
        %v3725 = vsub.f32 %v278, %v3724
        %v3726 = vand.u32 %v3725, 4294901760
        %3727 = vmatpush1.msra.mxu0 %v3726
        %3728 = vmatprep.subr.mxu0 0.0
        %v3729 = vand.u32 %v279, 4294901760
        %v3730 = vsub.f32 %v279, %v3729
        %v3731 = vand.u32 %v3730, 4294901760
        %3732 = vmatpush1.msra.mxu0 %v3731
        %3733 = vmatprep.subr.mxu0 0.0
        %v3734 = vand.u32 %v280, 4294901760
        %v3735 = vsub.f32 %v280, %v3734
        %v3736 = vand.u32 %v3735, 4294901760
        %3737 = vmatpush1.msra.mxu0 %v3736
        %3738 = vmatprep.subr.mxu0 0.0
        %v3739 = vand.u32 %v281, 4294901760
        %v3740 = vsub.f32 %v281, %v3739
        %v3741 = vand.u32 %v3740, 4294901760
        %3742 = vmatpush1.msra.mxu0 %v3741
        %3743 = vmatprep.subr.mxu0 0.0
        %v3744 = vand.u32 %v282, 4294901760
        %v3745 = vsub.f32 %v282, %v3744
        %v3746 = vand.u32 %v3745, 4294901760
        %3747 = vmatpush1.msra.mxu0 %v3746
        %3748 = vmatprep.subr.mxu0 0.0
        %v3749 = vand.u32 %v283, 4294901760
        %v3750 = vsub.f32 %v283, %v3749
        %v3751 = vand.u32 %v3750, 4294901760
        %3752 = vmatpush1.msra.mxu0 %v3751
        %3753 = vmatprep.subr.mxu0 0.0
        %v3754 = vand.u32 %v284, 4294901760
        %v3755 = vsub.f32 %v284, %v3754
        %v3756 = vand.u32 %v3755, 4294901760
        %3757 = vmatpush1.msra.mxu0 %v3756
        %3758 = vmatprep.subr.mxu0 0.0
        %v3759 = vand.u32 %v285, 4294901760
        %v3760 = vsub.f32 %v285, %v3759
        %v3761 = vand.u32 %v3760, 4294901760
        %3762 = vmatpush1.msra.mxu0 %v3761
        %3763 = vmatprep.subr.mxu0 0.0
        %v3764 = vand.u32 %v286, 4294901760
        %v3765 = vsub.f32 %v286, %v3764
        %v3766 = vand.u32 %v3765, 4294901760
        %3767 = vmatpush1.msra.mxu0 %v3766
        %3768 = vmatprep.subr.mxu0 0.0
        %v3769 = vand.u32 %v287, 4294901760
        %v3770 = vsub.f32 %v287, %v3769
        %v3771 = vand.u32 %v3770, 4294901760
        %3772 = vmatpush1.msra.mxu0 %v3771
        %3773 = vmatprep.subr.mxu0 0.0
        %v3774 = vand.u32 %v288, 4294901760
        %v3775 = vsub.f32 %v288, %v3774
        %v3776 = vand.u32 %v3775, 4294901760
        %3777 = vmatpush1.msra.mxu0 %v3776
        %3778 = vmatprep.subr.mxu0 0.0
        %v3779 = vand.u32 %v289, 4294901760
        %v3780 = vsub.f32 %v289, %v3779
        %v3781 = vand.u32 %v3780, 4294901760
        %3782 = vmatpush1.msra.mxu0 %v3781
        %3783 = vmatprep.subr.mxu0 0.0
        %v3784 = vand.u32 %v290, 4294901760
        %v3785 = vsub.f32 %v290, %v3784
        %v3786 = vand.u32 %v3785, 4294901760
        %3787 = vmatpush1.msra.mxu0 %v3786
        %v3788 = vand.u32 %v3036, 4294901760
        %3789 = vmatprep.mubr.f32.mxu0 %v3788
        %v3790 = vand.u32 %v3034, 4294901760
        %3791 = vmatmul.mubr.f32.gmra.mrb[0].mxu0 %v3790
        %v3792 = vpop.f32.mrb[0].mxu0
        %v3793 = vadd.f32 %v3625, %v3792
        %v3794 = vpop.f32.mrb[0].mxu0
        %3795 = vdwg.mxu0
        %3796 = vmatprep.subr.mxu0 0.0
        %v3797 = vand.u32 %v259, 4294901760
        %3798 = vmatpush1.msra.mxu0 %v3797
        %3799 = vmatprep.subr.mxu0 0.0
        %v3800 = vand.u32 %v260, 4294901760
        %3801 = vmatpush1.msra.mxu0 %v3800
        %3802 = vmatprep.subr.mxu0 0.0
        %v3803 = vand.u32 %v261, 4294901760
        %3804 = vmatpush1.msra.mxu0 %v3803
        %3805 = vmatprep.subr.mxu0 0.0
        %v3806 = vand.u32 %v262, 4294901760
        %3807 = vmatpush1.msra.mxu0 %v3806
        %3808 = vmatprep.subr.mxu0 0.0
        %v3809 = vand.u32 %v263, 4294901760
        %3810 = vmatpush1.msra.mxu0 %v3809
        %3811 = vmatprep.subr.mxu0 0.0
        %v3812 = vand.u32 %v264, 4294901760
        %3813 = vmatpush1.msra.mxu0 %v3812
        %3814 = vmatprep.subr.mxu0 0.0
        %v3815 = vand.u32 %v265, 4294901760
        %3816 = vmatpush1.msra.mxu0 %v3815
        %3817 = vmatprep.subr.mxu0 0.0
        %v3818 = vand.u32 %v266, 4294901760
        %3819 = vmatpush1.msra.mxu0 %v3818
        %3820 = vmatprep.subr.mxu0 0.0
        %v3821 = vand.u32 %v267, 4294901760
        %3822 = vmatpush1.msra.mxu0 %v3821
        %3823 = vmatprep.subr.mxu0 0.0
        %v3824 = vand.u32 %v268, 4294901760
        %3825 = vmatpush1.msra.mxu0 %v3824
        %3826 = vmatprep.subr.mxu0 0.0
        %v3827 = vand.u32 %v269, 4294901760
        %3828 = vmatpush1.msra.mxu0 %v3827
        %3829 = vmatprep.subr.mxu0 0.0
        %v3830 = vand.u32 %v270, 4294901760
        %3831 = vmatpush1.msra.mxu0 %v3830
        %3832 = vmatprep.subr.mxu0 0.0
        %v3833 = vand.u32 %v271, 4294901760
        %3834 = vmatpush1.msra.mxu0 %v3833
        %3835 = vmatprep.subr.mxu0 0.0
        %v3836 = vand.u32 %v272, 4294901760
        %3837 = vmatpush1.msra.mxu0 %v3836
        %3838 = vmatprep.subr.mxu0 0.0
        %v3839 = vand.u32 %v273, 4294901760
        %3840 = vmatpush1.msra.mxu0 %v3839
        %3841 = vmatprep.subr.mxu0 0.0
        %v3842 = vand.u32 %v274, 4294901760
        %3843 = vmatpush1.msra.mxu0 %v3842
        %3844 = vmatprep.subr.mxu0 0.0
        %v3845 = vand.u32 %v275, 4294901760
        %3846 = vmatpush1.msra.mxu0 %v3845
        %3847 = vmatprep.subr.mxu0 0.0
        %v3848 = vand.u32 %v276, 4294901760
        %3849 = vmatpush1.msra.mxu0 %v3848
        %3850 = vmatprep.subr.mxu0 0.0
        %v3851 = vand.u32 %v277, 4294901760
        %3852 = vmatpush1.msra.mxu0 %v3851
        %3853 = vmatprep.subr.mxu0 0.0
        %v3854 = vand.u32 %v278, 4294901760
        %3855 = vmatpush1.msra.mxu0 %v3854
        %3856 = vmatprep.subr.mxu0 0.0
        %v3857 = vand.u32 %v279, 4294901760
        %3858 = vmatpush1.msra.mxu0 %v3857
        %3859 = vmatprep.subr.mxu0 0.0
        %v3860 = vand.u32 %v280, 4294901760
        %3861 = vmatpush1.msra.mxu0 %v3860
        %3862 = vmatprep.subr.mxu0 0.0
        %v3863 = vand.u32 %v281, 4294901760
        %3864 = vmatpush1.msra.mxu0 %v3863
        %3865 = vmatprep.subr.mxu0 0.0
        %v3866 = vand.u32 %v282, 4294901760
        %3867 = vmatpush1.msra.mxu0 %v3866
        %3868 = vmatprep.subr.mxu0 0.0
        %v3869 = vand.u32 %v283, 4294901760
        %3870 = vmatpush1.msra.mxu0 %v3869
        %3871 = vmatprep.subr.mxu0 0.0
        %v3872 = vand.u32 %v284, 4294901760
        %3873 = vmatpush1.msra.mxu0 %v3872
        %3874 = vmatprep.subr.mxu0 0.0
        %v3875 = vand.u32 %v285, 4294901760
        %3876 = vmatpush1.msra.mxu0 %v3875
        %3877 = vmatprep.subr.mxu0 0.0
        %v3878 = vand.u32 %v286, 4294901760
        %3879 = vmatpush1.msra.mxu0 %v3878
        %3880 = vmatprep.subr.mxu0 0.0
        %v3881 = vand.u32 %v287, 4294901760
        %3882 = vmatpush1.msra.mxu0 %v3881
        %3883 = vmatprep.subr.mxu0 0.0
        %v3884 = vand.u32 %v288, 4294901760
        %3885 = vmatpush1.msra.mxu0 %v3884
        %3886 = vmatprep.subr.mxu0 0.0
        %v3887 = vand.u32 %v289, 4294901760
        %3888 = vmatpush1.msra.mxu0 %v3887
        %3889 = vmatprep.subr.mxu0 0.0
        %v3890 = vand.u32 %v290, 4294901760
        %3891 = vmatpush1.msra.mxu0 %v3890
        %v3892 = vand.u32 %v3036, 4294901760
        %3893 = vmatprep.mubr.f32.mxu0 %v3892
        %v3894 = vand.u32 %v3034, 4294901760
        %3895 = vmatmul.mubr.f32.gmra.mrb[0].mxu0 %v3894
        %v3896 = vpop.f32.mrb[0].mxu0
        %v3897 = vadd.f32 %v3793, %v3896
        %v3898 = vpop.f32.mrb[0].mxu0
        %3899 = vdwg.mxu0
        %s3900 = scalar_lea.vmem %s240, 12 [#allocation2]
        %3901 = vst.msk [vmem:[%s3900] sm:$0xf] %vm1296, %v3897
        %s3902 = sand.u32 %s141, 1
        %s3903 = scalar_lea.sflag [#allocation3], %s3902
        %s3904 = sand.u32 %s141, 1
        %s3905 = smul.addr %s3904, 16
        %s3906 = scalar_lea.vmem [#allocation2], %s3905
        // Predicated region
        $region37: #{tpu_custom_call.1} parent=35 // pred_check
          %p3907 = pneg %p151
        $region38: #{tpu_custom_call.1} parent=35 // pred_check_branch
          %3909 = sbr.rel (%p3907) target = $region40
        $region39: #{tpu_custom_call.1} parent=35 // pred_region
          %s3911 = ssub.s32 256, 256
          %3912 = vsyncadd %s3903, %s3911
          %s3913 = smul.addr %s22, 4
          %s3914 = sadd.s32 %s23, %s3913
          %s3915 = smul.addr %s3914, 64
          %s3916 = scalar_lea.hbm %s4, %s3915
          %s3917 = sshll.u32 %s3906, 4
          %s3918 = int_to_ptr.vmem [resolvable:$true] %s3917
          %3923 = dma.vmem_to_hbm [thread:$0]  %s3918, 256, %s3916, %s3903, 64, 64, 4
        $region40: #{tpu_custom_call.1} parent=35 // pred_fallthru
          _
      $region36: #{tpu_custom_call.1} parent=5 // pred_fallthru
        _
      %p3924 = scmp.le.s32.totalorder 2, %s13
      // Predicated region
      $region41: #{tpu_custom_call.1} parent=5 // pred_check
        %p3925 = pneg %p3924
      $region42: #{tpu_custom_call.1} parent=5 // pred_check_branch
        %3927 = sbr.rel (%p3925) target = $region44
      $region43: #{tpu_custom_call.1} parent=5 // pred_region
        %s3928 = ssub.s32 %s13, 2
        // Predicated region
        $region45: #{tpu_custom_call.1} parent=43 // pred_check
          %p3929 = pneg %p157
        $region46: #{tpu_custom_call.1} parent=43 // pred_check_branch
          %3931 = sbr.rel (%p3929) target = $region48
        $region47: #{tpu_custom_call.1} parent=43 // pred_region
          %s3932 = sand.u32 %s142, 1
          %s3933 = scalar_lea.sflag [#allocation3], %s3932
          %s3934 = sand.u32 %s142, 1
          %s3935 = smul.addr %s3934, 16
          %s3936 = scalar_lea.vmem [#allocation2], %s3935
          %3937 = dma.done %s3933, 256
        $region48: #{tpu_custom_call.1} parent=43 // pred_fallthru
          _
      $region44: #{tpu_custom_call.1} parent=5 // pred_fallthru
        _
    $region6: #{tpu_custom_call.1} parent=1 // loop_footer
      %s17 = sadd.s32 1, %s13
    $region7: #{tpu_custom_call.1} parent=1 // loop_footer_branch
      %12 = sbr.rel target = $region3
    $region8: #{tpu_custom_call.1} parent=1 // loop_exit
      _
    %3938 = vsyncpa [#allocation3], 1
    %s3939 = scalar_lea.sflag [#allocation3], 1
    %3940 = vsyncpa %s3939, 1

</llo_original>
